<compile_context>
chip_gen: v7x
topology: tpu7x:2x2x1
jax: 0.10.0
libtpu: 0.0.40
codegen_flags: <defaults>
</compile_context>

<pallas_src>
import functools
import math

import jax
import jax.numpy as jnp
from jax.experimental import pallas as pl
from jax.experimental.pallas import tpu as pltpu


# ---------------------------------------------------------------------------
# Fused kernel: Bt batch elements per grid step.
# ---------------------------------------------------------------------------
def _down_kernel(x_ref, w1_ref, b1_ref, w2_ref, b2_ref, o_ref,
                 xp_ref, y1p_ref, *, H, W, Cin, Co, K, P, Bt):
    # x_ref : (Bt, H, W, Cin)     NHWC input, f32
    # w1_ref: (K*K*Cin, Co)       conv1 weight, BN1 folded, bf16, rows (ky,kx,cin)
    # b1_ref: (1, Co)             conv1 bias with BN1 folded, f32
    # w2_ref: (K*K*Co, Co)        conv2 weight, BN2 folded, bf16
    # b2_ref: (1, Co)
    # o_ref : (Bt, H2*W2, Co)     lane-dense output, f32
    f32 = jnp.float32
    Hh, Wh = H // 2, W // 2
    Hp, Wp = Hh + 2 * P, Wh + 2 * P
    H1, W1 = Hp - (K - 1), Wp - (K - 1)
    Hp2, Wp2 = H1 + 2 * P, W1 + 2 * P
    H2, W2 = Hp2 - (K - 1), Wp2 - (K - 1)

    # ---------------- MaxPool2d(2): fully in registers ----------------
    # Column pairs via strided sublane reads straight off the input block,
    # row pairs via a free outer-dim reshape + max; only the pooled map is
    # ever stored (no rm_ref round trip through VMEM).
    cm = jnp.maximum(x_ref[:, :, pl.ds(0, Wh, 2), :],
                     x_ref[:, :, pl.ds(1, Wh, 2), :])              # (Bt, H, Wh, Cin)
    cmr = cm.reshape(Bt, Hh, 2, Wh, Cin)                            # outer-dim split
    pooled = jnp.maximum(cmr[:, :, 0, :, :], cmr[:, :, 1, :, :])    # (Bt, Hh, Wh, Cin)

    # ---------------- padded conv1 input ----------------
    # Zero only the P-wide border (interior is fully overwritten every step).
    xp_ref[:, 0:P, :, :] = jnp.zeros((Bt, P, Wp, Cin), f32)
    xp_ref[:, Hp - P:Hp, :, :] = jnp.zeros((Bt, P, Wp, Cin), f32)
    xp_ref[:, :, 0:P, :] = jnp.zeros((Bt, Hp, P, Cin), f32)
    xp_ref[:, :, Wp - P:Wp, :] = jnp.zeros((Bt, Hp, P, Cin), f32)
    xp_ref[:, P:P + Hh, P:P + Wh, :] = pooled

    # ---------------- conv1 (direct conv: K*K accumulated matmuls) ----------
    # bf16 operands, f32 accumulation; folded BN1 already in w1/b1.
    acc = jnp.zeros((Bt * H1 * W1, Co), f32)
    for ky in range(K):
        for kx in range(K):
            lhs = xp_ref[:, ky:ky + H1, kx:kx + W1, :]
            lhs = lhs.reshape(Bt * H1 * W1, Cin).astype(jnp.bfloat16)
            rhs = w1_ref[(ky * K + kx) * Cin:(ky * K + kx + 1) * Cin, :]
            acc = acc + jnp.dot(lhs, rhs, preferred_element_type=f32)
    y1 = jnp.maximum(acc + b1_ref[...], 0.0)                        # (Bt*H1*W1, Co)

    # ---------------- padded conv2 input ----------------
    y1p_ref[:, 0:P, :, :] = jnp.zeros((Bt, P, Wp2, Co), f32)
    y1p_ref[:, Hp2 - P:Hp2, :, :] = jnp.zeros((Bt, P, Wp2, Co), f32)
    y1p_ref[:, :, 0:P, :] = jnp.zeros((Bt, Hp2, P, Co), f32)
    y1p_ref[:, :, Wp2 - P:Wp2, :] = jnp.zeros((Bt, Hp2, P, Co), f32)
    y1p_ref[:, P:P + H1, P:P + W1, :] = y1.reshape(Bt, H1, W1, Co)

    # ---------------- conv2 (direct conv) + folded BN2 + ReLU ----------------
    acc2 = jnp.zeros((Bt * H2 * W2, Co), f32)
    for ky in range(K):
        for kx in range(K):
            lhs = y1p_ref[:, ky:ky + H2, kx:kx + W2, :]
            lhs = lhs.reshape(Bt * H2 * W2, Co).astype(jnp.bfloat16)
            rhs = w2_ref[(ky * K + kx) * Co:(ky * K + kx + 1) * Co, :]
            acc2 = acc2 + jnp.dot(lhs, rhs, preferred_element_type=f32)
    o_ref[...] = jnp.maximum(acc2 + b2_ref[...], 0.0).reshape(Bt, H2 * W2, Co)


# ---------------------------------------------------------------------------
# One-time parameter preprocessing (hoisted out of the forward).
# ---------------------------------------------------------------------------
def _fold_bn_into_conv(w_oihw, b_conv, gamma, beta, mean, var, eps=1e-5):
    cout, cin, kh, kw = w_oihw.shape
    scale = gamma / jnp.sqrt(var + eps)                              # (Cout,)
    w = w_oihw * scale[:, None, None, None]
    b = (b_conv - mean) * scale + beta
    # (O, I, Ky, Kx) -> (Ky, Kx, I, O) -> (Ky*Kx*I, O): rows ordered (ky, kx, cin)
    w_mat = jnp.transpose(w, (2, 3, 1, 0)).reshape(kh * kw * cin, cout)
    # weights go to the MXU as bf16 (native rate); bias stays f32 (added to f32 acc)
    return w_mat.astype(jnp.bfloat16), b.reshape(1, cout).astype(jnp.float32)


def prepare_params(raw_params):
    (w1, bc1, g1, be1, m1, v1), (w2, bc2, g2, be2, m2, v2) = raw_params
    w1m, b1 = _fold_bn_into_conv(w1, bc1, g1, be1, m1, v1)
    w2m, b2 = _fold_bn_into_conv(w2, bc2, g2, be2, m2, v2)
    return w1m, b1, w2m, b2


# ---------------------------------------------------------------------------
# Forward wrapper.
# ---------------------------------------------------------------------------
def down_forward(x_nchw, prep, *, K=3, padding=1, batch_tile=None):
    w1, b1, w2, b2 = prep
    B, Cin, H, W = x_nchw.shape
    Co = w1.shape[1]
    assert H % 2 == 0 and W % 2 == 0
    Hh, Wh = H // 2, W // 2
    H1, W1 = Hh + 2 * padding - (K - 1), Wh + 2 * padding - (K - 1)
    H2, W2 = H1 + 2 * padding - (K - 1), W1 + 2 * padding - (K - 1)
    # Alignment assumptions of the lane-dense kernel (review correctness item).
    assert Cin % 128 == 0 and Co % 128 == 0, "channels must be multiples of 128"
    assert W1 % 8 == 0 and W2 % 8 == 0, "conv widths must be multiples of 8"

    if batch_tile is None:
        # Raise matmul M by batching images, but keep >= 2 parallel grid steps
        # so both v7x TensorCores get work.
        batch_tile = 1 if B <= 2 else 2
    Bt = batch_tile
    assert B % Bt == 0

    # NCHW -> NHWC only because the PyTorch spec is NCHW; keep NHWC end-to-end
    # in a real model and these two transposes disappear.
    x = jnp.transpose(x_nchw, (0, 2, 3, 1))
    kern = functools.partial(_down_kernel, H=H, W=W, Cin=Cin, Co=Co,
                             K=K, P=padding, Bt=Bt)
    out_flat = pl.pallas_call(
        kern,
        out_shape=jax.ShapeDtypeStruct((B, H2 * W2, Co), jnp.float32),
        grid_spec=pltpu.PrefetchScalarGridSpec(
            num_scalar_prefetch=0,
            grid=(B // Bt,),
            in_specs=[
                pl.BlockSpec((Bt, H, W, Cin), lambda b: (b, 0, 0, 0)),
                pl.BlockSpec((K * K * Cin, Co), lambda b: (0, 0)),
                pl.BlockSpec((1, Co), lambda b: (0, 0)),
                pl.BlockSpec((K * K * Co, Co), lambda b: (0, 0)),
                pl.BlockSpec((1, Co), lambda b: (0, 0)),
            ],
            out_specs=pl.BlockSpec((Bt, H2 * W2, Co), lambda b: (b, 0, 0)),
            scratch_shapes=[
                # padded pooled map (conv1 input) and padded conv1 output
                pltpu.VMEM((Bt, Hh + 2 * padding, Wh + 2 * padding, Cin), jnp.float32),
                pltpu.VMEM((Bt, H1 + 2 * padding, W1 + 2 * padding, Co), jnp.float32),
            ]),
        compiler_params=pltpu.CompilerParams(dimension_semantics=("parallel",)),
    )(x, w1, b1, w2, b2)

    # lane-dense (B, H2*W2, Co) -> NCHW (B, Co, H2, W2): boundary layout glue.
    return out_flat.reshape(B, H2, W2, Co).transpose(0, 3, 1, 2)


# ---------------------------------------------------------------------------
# Deterministic torch-style init + pure-JAX reference (eval-mode forward).
# ---------------------------------------------------------------------------
def init_params(key, in_ch, out_ch, K=3):
    ks = jax.random.split(key, 6)

    def conv_init(k, cin, cout):
        kw, kb = jax.random.split(k)
        bound = 1.0 / math.sqrt(cin * K * K)
        w = jax.random.uniform(kw, (cout, cin, K, K), jnp.float32, -bound, bound)
        b = jax.random.uniform(kb, (cout,), jnp.float32, -bound, bound)
        return w, b

    def bn_init(k, c):
        k1, k2, k3, k4 = jax.random.split(k, 4)
        gamma = 1.0 + 0.1 * jax.random.normal(k1, (c,), jnp.float32)
        beta = 0.1 * jax.random.normal(k2, (c,), jnp.float32)
        mean = 0.1 * jax.random.normal(k3, (c,), jnp.float32)
        var = jax.random.uniform(k4, (c,), jnp.float32, 0.5, 1.5)
        return gamma, beta, mean, var

    w1, bc1 = conv_init(ks[0], in_ch, out_ch)
    g1, be1, m1, v1 = bn_init(ks[1], out_ch)
    w2, bc2 = conv_init(ks[2], out_ch, out_ch)
    g2, be2, m2, v2 = bn_init(ks[3], out_ch)
    return ((w1, bc1, g1, be1, m1, v1), (w2, bc2, g2, be2, m2, v2))


def reference_forward(x, raw_params, *, padding=1, eps=1e-5):
    (w1, bc1, g1, be1, m1, v1), (w2, bc2, g2, be2, m2, v2) = raw_params
    B, C, H, W = x.shape
    y = x.reshape(B, C, H // 2, 2, W // 2, 2).max(axis=(3, 5))       # MaxPool2d(2)

    def conv_bn_relu(y, w, bc, g, be, m, v):
        y = jax.lax.conv_general_dilated(
            y, w, (1, 1), [(padding, padding)] * 2,
            dimension_numbers=('NCHW', 'OIHW', 'NCHW'),
            precision=jax.lax.Precision.HIGHEST)
        y = y + bc[None, :, None, None]
        y = (y - m[None, :, None, None]) / jnp.sqrt(v[None, :, None, None] + eps)
        y = y * g[None, :, None, None] + be[None, :, None, None]
        return jnp.maximum(y, 0.0)

    y = conv_bn_relu(y, w1, bc1, g1, be1, m1, v1)
    y = conv_bn_relu(y, w2, bc2, g2, be2, m2, v2)
    return y


if __name__ == "__main__":
    key = jax.random.PRNGKey(0)
    # Small but TPU-lane-aligned sizes (U-Net style Down stage): channels are
    # multiples of 128 so every store in the kernel is lane-dense/aligned.
    B, in_ch, out_ch, H, W = 2, 128, 128, 16, 16
    padding = 1

    kx, kp = jax.random.split(key)
    x = jax.random.normal(kx, (B, in_ch, H, W), jnp.float32)
    raw = init_params(kp, in_ch, out_ch)
    prep = prepare_params(raw)          # BN folding + bf16 weight cast done ONCE

    out = down_forward(x, prep, K=3, padding=padding)
    out = jax.block_until_ready(out)

    ref = reference_forward(x, raw, padding=padding)
    assert out.shape == (B, out_ch, H // 2, W // 2), out.shape
    # bf16 MXU operands with f32 accumulation (contraction depth 1152):
    # measured/expected max abs error is ~1e-2; 3e-2 still catches real bugs.
    err = float(jnp.max(jnp.abs(out - ref)))
    assert err < 3e-2, err

    print("KERNEL_OK")
</pallas_src>

<mosaic_0001>
module attributes {stable_mosaic.version = 11 : i64} {
  func.func @_down_kernel(%arg0: i32, %arg1: memref<1x16x16x128xf32, #tpu.memory_space<vmem>>, %arg2: memref<1152x128xbf16, #tpu.memory_space<vmem>>, %arg3: memref<1x128xf32, #tpu.memory_space<vmem>>, %arg4: memref<1152x128xbf16, #tpu.memory_space<vmem>>, %arg5: memref<1x128xf32, #tpu.memory_space<vmem>>, %arg6: memref<1x64x128xf32, #tpu.memory_space<vmem>>, %arg7: memref<1x10x10x128xf32, #tpu.memory_space<vmem>>, %arg8: memref<1x10x10x128xf32, #tpu.memory_space<vmem>>) attributes {dimension_semantics = [#tpu.dimension_semantics<parallel>], iteration_bounds = array<i64: 2>, scalar_prefetch = 0 : i64, scratch_operands = 2 : i64, tpu.core_type = #tpu.core_type<tc>, window_params = [{transform_indices = @transform_0, window_bounds = array<i64: 1, 16, 16, 128>}, {pipeline_mode = #tpu.pipeline_mode<synchronous>, transform_indices = @transform_1, window_bounds = array<i64: 1152, 128>}, {pipeline_mode = #tpu.pipeline_mode<synchronous>, transform_indices = @transform_2, window_bounds = array<i64: 1, 128>}, {pipeline_mode = #tpu.pipeline_mode<synchronous>, transform_indices = @transform_3, window_bounds = array<i64: 1152, 128>}, {pipeline_mode = #tpu.pipeline_mode<synchronous>, transform_indices = @transform_4, window_bounds = array<i64: 1, 128>}, {transform_indices = @transform_5, window_bounds = array<i64: 1, 64, 128>}]} {
    %c0 = arith.constant 0 : index
    %c0_0 = arith.constant 0 : index
    %c0_1 = arith.constant 0 : index
    %c0_2 = arith.constant 0 : index
    %0 = tpu.strided_load %arg1[%c0, %c0_0, %c0_1, %c0_2] {strides = array<i32: 1, 1, 2, 1>} : memref<1x16x16x128xf32, #tpu.memory_space<vmem>>, vector<1x16x8x128xf32>
    %c0_3 = arith.constant 0 : index
    %c0_4 = arith.constant 0 : index
    %c1 = arith.constant 1 : index
    %c0_5 = arith.constant 0 : index
    %1 = tpu.strided_load %arg1[%c0_3, %c0_4, %c1, %c0_5] {strides = array<i32: 1, 1, 2, 1>} : memref<1x16x16x128xf32, #tpu.memory_space<vmem>>, vector<1x16x8x128xf32>
    %2 = arith.maximumf %0, %1 : vector<1x16x8x128xf32>
    %3 = vector.shape_cast %2 : vector<1x16x8x128xf32> to vector<1x8x2x8x128xf32>
    %4 = vector.extract_strided_slice %3 {offsets = [0, 0, 0, 0, 0], sizes = [1, 8, 1, 8, 128], strides = [1, 1, 1, 1, 1]} : vector<1x8x2x8x128xf32> to vector<1x8x1x8x128xf32>
    %5 = vector.shape_cast %4 : vector<1x8x1x8x128xf32> to vector<1x8x8x128xf32>
    %6 = vector.extract_strided_slice %3 {offsets = [0, 0, 1, 0, 0], sizes = [1, 8, 1, 8, 128], strides = [1, 1, 1, 1, 1]} : vector<1x8x2x8x128xf32> to vector<1x8x1x8x128xf32>
    %7 = vector.shape_cast %6 : vector<1x8x1x8x128xf32> to vector<1x8x8x128xf32>
    %8 = arith.maximumf %5, %7 : vector<1x8x8x128xf32>
    %cst = arith.constant 0.000000e+00 : f32
    %9 = vector.broadcast %cst : f32 to vector<1x1x10x128xf32>
    %c0_6 = arith.constant 0 : index
    %c0_7 = arith.constant 0 : index
    %c0_8 = arith.constant 0 : index
    %c0_9 = arith.constant 0 : index
    %10 = vector.load %arg7[%c0_6, %c0_7, %c0_8, %c0_9] : memref<1x10x10x128xf32, #tpu.memory_space<vmem>>, vector<1x1x10x128xf32>
    tpu.vector_store %arg7[%c0_6, %c0_7, %c0_8, %c0_9], %9 {strides = array<i32>} : memref<1x10x10x128xf32, #tpu.memory_space<vmem>>, vector<1x1x10x128xf32>,
    %cst_10 = arith.constant 0.000000e+00 : f32
    %11 = vector.broadcast %cst_10 : f32 to vector<1x1x10x128xf32>
    %c0_11 = arith.constant 0 : index
    %c9 = arith.constant 9 : index
    %c0_12 = arith.constant 0 : index
    %c0_13 = arith.constant 0 : index
    %12 = vector.load %arg7[%c0_11, %c9, %c0_12, %c0_13] : memref<1x10x10x128xf32, #tpu.memory_space<vmem>>, vector<1x1x10x128xf32>
    tpu.vector_store %arg7[%c0_11, %c9, %c0_12, %c0_13], %11 {strides = array<i32>} : memref<1x10x10x128xf32, #tpu.memory_space<vmem>>, vector<1x1x10x128xf32>,
    %cst_14 = arith.constant 0.000000e+00 : f32
    %13 = vector.broadcast %cst_14 : f32 to vector<1x10x1x128xf32>
    %c0_15 = arith.constant 0 : index
    %c0_16 = arith.constant 0 : index
    %c0_17 = arith.constant 0 : index
    %c0_18 = arith.constant 0 : index
    %14 = vector.load %arg7[%c0_15, %c0_16, %c0_17, %c0_18] : memref<1x10x10x128xf32, #tpu.memory_space<vmem>>, vector<1x10x1x128xf32>
    tpu.vector_store %arg7[%c0_15, %c0_16, %c0_17, %c0_18], %13 {strides = array<i32>} : memref<1x10x10x128xf32, #tpu.memory_space<vmem>>, vector<1x10x1x128xf32>,
    %cst_19 = arith.constant 0.000000e+00 : f32
    %15 = vector.broadcast %cst_19 : f32 to vector<1x10x1x128xf32>
    %c0_20 = arith.constant 0 : index
    %c0_21 = arith.constant 0 : index
    %c9_22 = arith.constant 9 : index
    %c0_23 = arith.constant 0 : index
    %16 = vector.load %arg7[%c0_20, %c0_21, %c9_22, %c0_23] : memref<1x10x10x128xf32, #tpu.memory_space<vmem>>, vector<1x10x1x128xf32>
    tpu.vector_store %arg7[%c0_20, %c0_21, %c9_22, %c0_23], %15 {strides = array<i32>} : memref<1x10x10x128xf32, #tpu.memory_space<vmem>>, vector<1x10x1x128xf32>,
    %c0_24 = arith.constant 0 : index
    %c1_25 = arith.constant 1 : index
    %c1_26 = arith.constant 1 : index
    %c0_27 = arith.constant 0 : index
    %17 = vector.load %arg7[%c0_24, %c1_25, %c1_26, %c0_27] : memref<1x10x10x128xf32, #tpu.memory_space<vmem>>, vector<1x8x8x128xf32>
    tpu.vector_store %arg7[%c0_24, %c1_25, %c1_26, %c0_27], %8 {strides = array<i32>} : memref<1x10x10x128xf32, #tpu.memory_space<vmem>>, vector<1x8x8x128xf32>,
    %cst_28 = arith.constant 0.000000e+00 : f32
    %18 = vector.broadcast %cst_28 : f32 to vector<64x128xf32>
    %c0_29 = arith.constant 0 : index
    %c0_30 = arith.constant 0 : index
    %c0_31 = arith.constant 0 : index
    %c0_32 = arith.constant 0 : index
    %19 = vector.load %arg7[%c0_29, %c0_30, %c0_31, %c0_32] : memref<1x10x10x128xf32, #tpu.memory_space<vmem>>, vector<1x8x8x128xf32>
    %20 = vector.shape_cast %19 : vector<1x8x8x128xf32> to vector<64x128xf32>
    %21 = arith.truncf %20 : vector<64x128xf32> to vector<64x128xbf16>
    %c0_33 = arith.constant 0 : index
    %c0_34 = arith.constant 0 : index
    %22 = vector.load %arg2[%c0_33, %c0_34] : memref<1152x128xbf16, #tpu.memory_space<vmem>>, vector<128x128xbf16>
    %cst_35 = arith.constant dense<0.000000e+00> : vector<64x128xf32>
    %23 = tpu.matmul %21, %22, %cst_35 {dimension_numbers = #tpu.dot_dimension_numbers<[1], [0], [0], [1], [0, 0, 1, 1], [], []>} : vector<64x128xbf16>, vector<128x128xbf16>, vector<64x128xf32> -> vector<64x128xf32>
    %24 = arith.addf %18, %23 : vector<64x128xf32>
    %c0_36 = arith.constant 0 : index
    %c0_37 = arith.constant 0 : index
    %c1_38 = arith.constant 1 : index
    %c0_39 = arith.constant 0 : index
    %25 = vector.load %arg7[%c0_36, %c0_37, %c1_38, %c0_39] : memref<1x10x10x128xf32, #tpu.memory_space<vmem>>, vector<1x8x8x128xf32>
    %26 = vector.shape_cast %25 : vector<1x8x8x128xf32> to vector<64x128xf32>
    %27 = arith.truncf %26 : vector<64x128xf32> to vector<64x128xbf16>
    %c128 = arith.constant 128 : index
    %c0_40 = arith.constant 0 : index
    %28 = vector.load %arg2[%c128, %c0_40] : memref<1152x128xbf16, #tpu.memory_space<vmem>>, vector<128x128xbf16>
    %cst_41 = arith.constant dense<0.000000e+00> : vector<64x128xf32>
    %29 = tpu.matmul %27, %28, %cst_41 {dimension_numbers = #tpu.dot_dimension_numbers<[1], [0], [0], [1], [0, 0, 1, 1], [], []>} : vector<64x128xbf16>, vector<128x128xbf16>, vector<64x128xf32> -> vector<64x128xf32>
    %30 = arith.addf %24, %29 : vector<64x128xf32>
    %c0_42 = arith.constant 0 : index
    %c0_43 = arith.constant 0 : index
    %c2 = arith.constant 2 : index
    %c0_44 = arith.constant 0 : index
    %31 = vector.load %arg7[%c0_42, %c0_43, %c2, %c0_44] : memref<1x10x10x128xf32, #tpu.memory_space<vmem>>, vector<1x8x8x128xf32>
    %32 = vector.shape_cast %31 : vector<1x8x8x128xf32> to vector<64x128xf32>
    %33 = arith.truncf %32 : vector<64x128xf32> to vector<64x128xbf16>
    %c256 = arith.constant 256 : index
    %c0_45 = arith.constant 0 : index
    %34 = vector.load %arg2[%c256, %c0_45] : memref<1152x128xbf16, #tpu.memory_space<vmem>>, vector<128x128xbf16>
    %cst_46 = arith.constant dense<0.000000e+00> : vector<64x128xf32>
    %35 = tpu.matmul %33, %34, %cst_46 {dimension_numbers = #tpu.dot_dimension_numbers<[1], [0], [0], [1], [0, 0, 1, 1], [], []>} : vector<64x128xbf16>, vector<128x128xbf16>, vector<64x128xf32> -> vector<64x128xf32>
    %36 = arith.addf %30, %35 : vector<64x128xf32>
    %c0_47 = arith.constant 0 : index
    %c1_48 = arith.constant 1 : index
    %c0_49 = arith.constant 0 : index
    %c0_50 = arith.constant 0 : index
    %37 = vector.load %arg7[%c0_47, %c1_48, %c0_49, %c0_50] : memref<1x10x10x128xf32, #tpu.memory_space<vmem>>, vector<1x8x8x128xf32>
    %38 = vector.shape_cast %37 : vector<1x8x8x128xf32> to vector<64x128xf32>
    %39 = arith.truncf %38 : vector<64x128xf32> to vector<64x128xbf16>
    %c384 = arith.constant 384 : index
    %c0_51 = arith.constant 0 : index
    %40 = vector.load %arg2[%c384, %c0_51] : memref<1152x128xbf16, #tpu.memory_space<vmem>>, vector<128x128xbf16>
    %cst_52 = arith.constant dense<0.000000e+00> : vector<64x128xf32>
    %41 = tpu.matmul %39, %40, %cst_52 {dimension_numbers = #tpu.dot_dimension_numbers<[1], [0], [0], [1], [0, 0, 1, 1], [], []>} : vector<64x128xbf16>, vector<128x128xbf16>, vector<64x128xf32> -> vector<64x128xf32>
    %42 = arith.addf %36, %41 : vector<64x128xf32>
    %c0_53 = arith.constant 0 : index
    %c1_54 = arith.constant 1 : index
    %c1_55 = arith.constant 1 : index
    %c0_56 = arith.constant 0 : index
    %43 = vector.load %arg7[%c0_53, %c1_54, %c1_55, %c0_56] : memref<1x10x10x128xf32, #tpu.memory_space<vmem>>, vector<1x8x8x128xf32>
    %44 = vector.shape_cast %43 : vector<1x8x8x128xf32> to vector<64x128xf32>
    %45 = arith.truncf %44 : vector<64x128xf32> to vector<64x128xbf16>
    %c512 = arith.constant 512 : index
    %c0_57 = arith.constant 0 : index
    %46 = vector.load %arg2[%c512, %c0_57] : memref<1152x128xbf16, #tpu.memory_space<vmem>>, vector<128x128xbf16>
    %cst_58 = arith.constant dense<0.000000e+00> : vector<64x128xf32>
    %47 = tpu.matmul %45, %46, %cst_58 {dimension_numbers = #tpu.dot_dimension_numbers<[1], [0], [0], [1], [0, 0, 1, 1], [], []>} : vector<64x128xbf16>, vector<128x128xbf16>, vector<64x128xf32> -> vector<64x128xf32>
    %48 = arith.addf %42, %47 : vector<64x128xf32>
    %c0_59 = arith.constant 0 : index
    %c1_60 = arith.constant 1 : index
    %c2_61 = arith.constant 2 : index
    %c0_62 = arith.constant 0 : index
    %49 = vector.load %arg7[%c0_59, %c1_60, %c2_61, %c0_62] : memref<1x10x10x128xf32, #tpu.memory_space<vmem>>, vector<1x8x8x128xf32>
    %50 = vector.shape_cast %49 : vector<1x8x8x128xf32> to vector<64x128xf32>
    %51 = arith.truncf %50 : vector<64x128xf32> to vector<64x128xbf16>
    %c640 = arith.constant 640 : index
    %c0_63 = arith.constant 0 : index
    %52 = vector.load %arg2[%c640, %c0_63] : memref<1152x128xbf16, #tpu.memory_space<vmem>>, vector<128x128xbf16>
    %cst_64 = arith.constant dense<0.000000e+00> : vector<64x128xf32>
    %53 = tpu.matmul %51, %52, %cst_64 {dimension_numbers = #tpu.dot_dimension_numbers<[1], [0], [0], [1], [0, 0, 1, 1], [], []>} : vector<64x128xbf16>, vector<128x128xbf16>, vector<64x128xf32> -> vector<64x128xf32>
    %54 = arith.addf %48, %53 : vector<64x128xf32>
    %c0_65 = arith.constant 0 : index
    %c2_66 = arith.constant 2 : index
    %c0_67 = arith.constant 0 : index
    %c0_68 = arith.constant 0 : index
    %55 = vector.load %arg7[%c0_65, %c2_66, %c0_67, %c0_68] : memref<1x10x10x128xf32, #tpu.memory_space<vmem>>, vector<1x8x8x128xf32>
    %56 = vector.shape_cast %55 : vector<1x8x8x128xf32> to vector<64x128xf32>
    %57 = arith.truncf %56 : vector<64x128xf32> to vector<64x128xbf16>
    %c768 = arith.constant 768 : index
    %c0_69 = arith.constant 0 : index
    %58 = vector.load %arg2[%c768, %c0_69] : memref<1152x128xbf16, #tpu.memory_space<vmem>>, vector<128x128xbf16>
    %cst_70 = arith.constant dense<0.000000e+00> : vector<64x128xf32>
    %59 = tpu.matmul %57, %58, %cst_70 {dimension_numbers = #tpu.dot_dimension_numbers<[1], [0], [0], [1], [0, 0, 1, 1], [], []>} : vector<64x128xbf16>, vector<128x128xbf16>, vector<64x128xf32> -> vector<64x128xf32>
    %60 = arith.addf %54, %59 : vector<64x128xf32>
    %c0_71 = arith.constant 0 : index
    %c2_72 = arith.constant 2 : index
    %c1_73 = arith.constant 1 : index
    %c0_74 = arith.constant 0 : index
    %61 = vector.load %arg7[%c0_71, %c2_72, %c1_73, %c0_74] : memref<1x10x10x128xf32, #tpu.memory_space<vmem>>, vector<1x8x8x128xf32>
    %62 = vector.shape_cast %61 : vector<1x8x8x128xf32> to vector<64x128xf32>
    %63 = arith.truncf %62 : vector<64x128xf32> to vector<64x128xbf16>
    %c896 = arith.constant 896 : index
    %c0_75 = arith.constant 0 : index
    %64 = vector.load %arg2[%c896, %c0_75] : memref<1152x128xbf16, #tpu.memory_space<vmem>>, vector<128x128xbf16>
    %cst_76 = arith.constant dense<0.000000e+00> : vector<64x128xf32>
    %65 = tpu.matmul %63, %64, %cst_76 {dimension_numbers = #tpu.dot_dimension_numbers<[1], [0], [0], [1], [0, 0, 1, 1], [], []>} : vector<64x128xbf16>, vector<128x128xbf16>, vector<64x128xf32> -> vector<64x128xf32>
    %66 = arith.addf %60, %65 : vector<64x128xf32>
    %c0_77 = arith.constant 0 : index
    %c2_78 = arith.constant 2 : index
    %c2_79 = arith.constant 2 : index
    %c0_80 = arith.constant 0 : index
    %67 = vector.load %arg7[%c0_77, %c2_78, %c2_79, %c0_80] : memref<1x10x10x128xf32, #tpu.memory_space<vmem>>, vector<1x8x8x128xf32>
    %68 = vector.shape_cast %67 : vector<1x8x8x128xf32> to vector<64x128xf32>
    %69 = arith.truncf %68 : vector<64x128xf32> to vector<64x128xbf16>
    %c1024 = arith.constant 1024 : index
    %c0_81 = arith.constant 0 : index
    %70 = vector.load %arg2[%c1024, %c0_81] : memref<1152x128xbf16, #tpu.memory_space<vmem>>, vector<128x128xbf16>
    %cst_82 = arith.constant dense<0.000000e+00> : vector<64x128xf32>
    %71 = tpu.matmul %69, %70, %cst_82 {dimension_numbers = #tpu.dot_dimension_numbers<[1], [0], [0], [1], [0, 0, 1, 1], [], []>} : vector<64x128xbf16>, vector<128x128xbf16>, vector<64x128xf32> -> vector<64x128xf32>
    %72 = arith.addf %66, %71 : vector<64x128xf32>
    %c0_83 = arith.constant 0 : index
    %c0_84 = arith.constant 0 : index
    %73 = vector.load %arg3[%c0_83, %c0_84] : memref<1x128xf32, #tpu.memory_space<vmem>>, vector<1x128xf32>
    %74 = vector.broadcast %73 : vector<1x128xf32> to vector<64x128xf32>
    %75 = arith.addf %72, %74 : vector<64x128xf32>
    %cst_85 = arith.constant 0.000000e+00 : f32
    %76 = vector.broadcast %cst_85 : f32 to vector<64x128xf32>
    %77 = arith.maximumf %75, %76 : vector<64x128xf32>
    %cst_86 = arith.constant 0.000000e+00 : f32
    %78 = vector.broadcast %cst_86 : f32 to vector<1x1x10x128xf32>
    %c0_87 = arith.constant 0 : index
    %c0_88 = arith.constant 0 : index
    %c0_89 = arith.constant 0 : index
    %c0_90 = arith.constant 0 : index
    %79 = vector.load %arg8[%c0_87, %c0_88, %c0_89, %c0_90] : memref<1x10x10x128xf32, #tpu.memory_space<vmem>>, vector<1x1x10x128xf32>
    tpu.vector_store %arg8[%c0_87, %c0_88, %c0_89, %c0_90], %78 {strides = array<i32>} : memref<1x10x10x128xf32, #tpu.memory_space<vmem>>, vector<1x1x10x128xf32>,
    %cst_91 = arith.constant 0.000000e+00 : f32
    %80 = vector.broadcast %cst_91 : f32 to vector<1x1x10x128xf32>
    %c0_92 = arith.constant 0 : index
    %c9_93 = arith.constant 9 : index
    %c0_94 = arith.constant 0 : index
    %c0_95 = arith.constant 0 : index
    %81 = vector.load %arg8[%c0_92, %c9_93, %c0_94, %c0_95] : memref<1x10x10x128xf32, #tpu.memory_space<vmem>>, vector<1x1x10x128xf32>
    tpu.vector_store %arg8[%c0_92, %c9_93, %c0_94, %c0_95], %80 {strides = array<i32>} : memref<1x10x10x128xf32, #tpu.memory_space<vmem>>, vector<1x1x10x128xf32>,
    %cst_96 = arith.constant 0.000000e+00 : f32
    %82 = vector.broadcast %cst_96 : f32 to vector<1x10x1x128xf32>
    %c0_97 = arith.constant 0 : index
    %c0_98 = arith.constant 0 : index
    %c0_99 = arith.constant 0 : index
    %c0_100 = arith.constant 0 : index
    %83 = vector.load %arg8[%c0_97, %c0_98, %c0_99, %c0_100] : memref<1x10x10x128xf32, #tpu.memory_space<vmem>>, vector<1x10x1x128xf32>
    tpu.vector_store %arg8[%c0_97, %c0_98, %c0_99, %c0_100], %82 {strides = array<i32>} : memref<1x10x10x128xf32, #tpu.memory_space<vmem>>, vector<1x10x1x128xf32>,
    %cst_101 = arith.constant 0.000000e+00 : f32
    %84 = vector.broadcast %cst_101 : f32 to vector<1x10x1x128xf32>
    %c0_102 = arith.constant 0 : index
    %c0_103 = arith.constant 0 : index
    %c9_104 = arith.constant 9 : index
    %c0_105 = arith.constant 0 : index
    %85 = vector.load %arg8[%c0_102, %c0_103, %c9_104, %c0_105] : memref<1x10x10x128xf32, #tpu.memory_space<vmem>>, vector<1x10x1x128xf32>
    tpu.vector_store %arg8[%c0_102, %c0_103, %c9_104, %c0_105], %84 {strides = array<i32>} : memref<1x10x10x128xf32, #tpu.memory_space<vmem>>, vector<1x10x1x128xf32>,
    %86 = vector.shape_cast %77 : vector<64x128xf32> to vector<1x8x8x128xf32>
    %c0_106 = arith.constant 0 : index
    %c1_107 = arith.constant 1 : index
    %c1_108 = arith.constant 1 : index
    %c0_109 = arith.constant 0 : index
    %87 = vector.load %arg8[%c0_106, %c1_107, %c1_108, %c0_109] : memref<1x10x10x128xf32, #tpu.memory_space<vmem>>, vector<1x8x8x128xf32>
    tpu.vector_store %arg8[%c0_106, %c1_107, %c1_108, %c0_109], %86 {strides = array<i32>} : memref<1x10x10x128xf32, #tpu.memory_space<vmem>>, vector<1x8x8x128xf32>,
    %cst_110 = arith.constant 0.000000e+00 : f32
    %88 = vector.broadcast %cst_110 : f32 to vector<64x128xf32>
    %c0_111 = arith.constant 0 : index
    %c0_112 = arith.constant 0 : index
    %c0_113 = arith.constant 0 : index
    %c0_114 = arith.constant 0 : index
    %89 = vector.load %arg8[%c0_111, %c0_112, %c0_113, %c0_114] : memref<1x10x10x128xf32, #tpu.memory_space<vmem>>, vector<1x8x8x128xf32>
    %90 = vector.shape_cast %89 : vector<1x8x8x128xf32> to vector<64x128xf32>
    %91 = arith.truncf %90 : vector<64x128xf32> to vector<64x128xbf16>
    %c0_115 = arith.constant 0 : index
    %c0_116 = arith.constant 0 : index
    %92 = vector.load %arg4[%c0_115, %c0_116] : memref<1152x128xbf16, #tpu.memory_space<vmem>>, vector<128x128xbf16>
    %cst_117 = arith.constant dense<0.000000e+00> : vector<64x128xf32>
    %93 = tpu.matmul %91, %92, %cst_117 {dimension_numbers = #tpu.dot_dimension_numbers<[1], [0], [0], [1], [0, 0, 1, 1], [], []>} : vector<64x128xbf16>, vector<128x128xbf16>, vector<64x128xf32> -> vector<64x128xf32>
    %94 = arith.addf %88, %93 : vector<64x128xf32>
    %c0_118 = arith.constant 0 : index
    %c0_119 = arith.constant 0 : index
    %c1_120 = arith.constant 1 : index
    %c0_121 = arith.constant 0 : index
    %95 = vector.load %arg8[%c0_118, %c0_119, %c1_120, %c0_121] : memref<1x10x10x128xf32, #tpu.memory_space<vmem>>, vector<1x8x8x128xf32>
    %96 = vector.shape_cast %95 : vector<1x8x8x128xf32> to vector<64x128xf32>
    %97 = arith.truncf %96 : vector<64x128xf32> to vector<64x128xbf16>
    %c128_122 = arith.constant 128 : index
    %c0_123 = arith.constant 0 : index
    %98 = vector.load %arg4[%c128_122, %c0_123] : memref<1152x128xbf16, #tpu.memory_space<vmem>>, vector<128x128xbf16>
    %cst_124 = arith.constant dense<0.000000e+00> : vector<64x128xf32>
    %99 = tpu.matmul %97, %98, %cst_124 {dimension_numbers = #tpu.dot_dimension_numbers<[1], [0], [0], [1], [0, 0, 1, 1], [], []>} : vector<64x128xbf16>, vector<128x128xbf16>, vector<64x128xf32> -> vector<64x128xf32>
    %100 = arith.addf %94, %99 : vector<64x128xf32>
    %c0_125 = arith.constant 0 : index
    %c0_126 = arith.constant 0 : index
    %c2_127 = arith.constant 2 : index
    %c0_128 = arith.constant 0 : index
    %101 = vector.load %arg8[%c0_125, %c0_126, %c2_127, %c0_128] : memref<1x10x10x128xf32, #tpu.memory_space<vmem>>, vector<1x8x8x128xf32>
    %102 = vector.shape_cast %101 : vector<1x8x8x128xf32> to vector<64x128xf32>
    %103 = arith.truncf %102 : vector<64x128xf32> to vector<64x128xbf16>
    %c256_129 = arith.constant 256 : index
    %c0_130 = arith.constant 0 : index
    %104 = vector.load %arg4[%c256_129, %c0_130] : memref<1152x128xbf16, #tpu.memory_space<vmem>>, vector<128x128xbf16>
    %cst_131 = arith.constant dense<0.000000e+00> : vector<64x128xf32>
    %105 = tpu.matmul %103, %104, %cst_131 {dimension_numbers = #tpu.dot_dimension_numbers<[1], [0], [0], [1], [0, 0, 1, 1], [], []>} : vector<64x128xbf16>, vector<128x128xbf16>, vector<64x128xf32> -> vector<64x128xf32>
    %106 = arith.addf %100, %105 : vector<64x128xf32>
    %c0_132 = arith.constant 0 : index
    %c1_133 = arith.constant 1 : index
    %c0_134 = arith.constant 0 : index
    %c0_135 = arith.constant 0 : index
    %107 = vector.load %arg8[%c0_132, %c1_133, %c0_134, %c0_135] : memref<1x10x10x128xf32, #tpu.memory_space<vmem>>, vector<1x8x8x128xf32>
    %108 = vector.shape_cast %107 : vector<1x8x8x128xf32> to vector<64x128xf32>
    %109 = arith.truncf %108 : vector<64x128xf32> to vector<64x128xbf16>
    %c384_136 = arith.constant 384 : index
    %c0_137 = arith.constant 0 : index
    %110 = vector.load %arg4[%c384_136, %c0_137] : memref<1152x128xbf16, #tpu.memory_space<vmem>>, vector<128x128xbf16>
    %cst_138 = arith.constant dense<0.000000e+00> : vector<64x128xf32>
    %111 = tpu.matmul %109, %110, %cst_138 {dimension_numbers = #tpu.dot_dimension_numbers<[1], [0], [0], [1], [0, 0, 1, 1], [], []>} : vector<64x128xbf16>, vector<128x128xbf16>, vector<64x128xf32> -> vector<64x128xf32>
    %112 = arith.addf %106, %111 : vector<64x128xf32>
    %c0_139 = arith.constant 0 : index
    %c1_140 = arith.constant 1 : index
    %c1_141 = arith.constant 1 : index
    %c0_142 = arith.constant 0 : index
    %113 = vector.load %arg8[%c0_139, %c1_140, %c1_141, %c0_142] : memref<1x10x10x128xf32, #tpu.memory_space<vmem>>, vector<1x8x8x128xf32>
    %114 = vector.shape_cast %113 : vector<1x8x8x128xf32> to vector<64x128xf32>
    %115 = arith.truncf %114 : vector<64x128xf32> to vector<64x128xbf16>
    %c512_143 = arith.constant 512 : index
    %c0_144 = arith.constant 0 : index
    %116 = vector.load %arg4[%c512_143, %c0_144] : memref<1152x128xbf16, #tpu.memory_space<vmem>>, vector<128x128xbf16>
    %cst_145 = arith.constant dense<0.000000e+00> : vector<64x128xf32>
    %117 = tpu.matmul %115, %116, %cst_145 {dimension_numbers = #tpu.dot_dimension_numbers<[1], [0], [0], [1], [0, 0, 1, 1], [], []>} : vector<64x128xbf16>, vector<128x128xbf16>, vector<64x128xf32> -> vector<64x128xf32>
    %118 = arith.addf %112, %117 : vector<64x128xf32>
    %c0_146 = arith.constant 0 : index
    %c1_147 = arith.constant 1 : index
    %c2_148 = arith.constant 2 : index
    %c0_149 = arith.constant 0 : index
    %119 = vector.load %arg8[%c0_146, %c1_147, %c2_148, %c0_149] : memref<1x10x10x128xf32, #tpu.memory_space<vmem>>, vector<1x8x8x128xf32>
    %120 = vector.shape_cast %119 : vector<1x8x8x128xf32> to vector<64x128xf32>
    %121 = arith.truncf %120 : vector<64x128xf32> to vector<64x128xbf16>
    %c640_150 = arith.constant 640 : index
    %c0_151 = arith.constant 0 : index
    %122 = vector.load %arg4[%c640_150, %c0_151] : memref<1152x128xbf16, #tpu.memory_space<vmem>>, vector<128x128xbf16>
    %cst_152 = arith.constant dense<0.000000e+00> : vector<64x128xf32>
    %123 = tpu.matmul %121, %122, %cst_152 {dimension_numbers = #tpu.dot_dimension_numbers<[1], [0], [0], [1], [0, 0, 1, 1], [], []>} : vector<64x128xbf16>, vector<128x128xbf16>, vector<64x128xf32> -> vector<64x128xf32>
    %124 = arith.addf %118, %123 : vector<64x128xf32>
    %c0_153 = arith.constant 0 : index
    %c2_154 = arith.constant 2 : index
    %c0_155 = arith.constant 0 : index
    %c0_156 = arith.constant 0 : index
    %125 = vector.load %arg8[%c0_153, %c2_154, %c0_155, %c0_156] : memref<1x10x10x128xf32, #tpu.memory_space<vmem>>, vector<1x8x8x128xf32>
    %126 = vector.shape_cast %125 : vector<1x8x8x128xf32> to vector<64x128xf32>
    %127 = arith.truncf %126 : vector<64x128xf32> to vector<64x128xbf16>
    %c768_157 = arith.constant 768 : index
    %c0_158 = arith.constant 0 : index
    %128 = vector.load %arg4[%c768_157, %c0_158] : memref<1152x128xbf16, #tpu.memory_space<vmem>>, vector<128x128xbf16>
    %cst_159 = arith.constant dense<0.000000e+00> : vector<64x128xf32>
    %129 = tpu.matmul %127, %128, %cst_159 {dimension_numbers = #tpu.dot_dimension_numbers<[1], [0], [0], [1], [0, 0, 1, 1], [], []>} : vector<64x128xbf16>, vector<128x128xbf16>, vector<64x128xf32> -> vector<64x128xf32>
    %130 = arith.addf %124, %129 : vector<64x128xf32>
    %c0_160 = arith.constant 0 : index
    %c2_161 = arith.constant 2 : index
    %c1_162 = arith.constant 1 : index
    %c0_163 = arith.constant 0 : index
    %131 = vector.load %arg8[%c0_160, %c2_161, %c1_162, %c0_163] : memref<1x10x10x128xf32, #tpu.memory_space<vmem>>, vector<1x8x8x128xf32>
    %132 = vector.shape_cast %131 : vector<1x8x8x128xf32> to vector<64x128xf32>
    %133 = arith.truncf %132 : vector<64x128xf32> to vector<64x128xbf16>
    %c896_164 = arith.constant 896 : index
    %c0_165 = arith.constant 0 : index
    %134 = vector.load %arg4[%c896_164, %c0_165] : memref<1152x128xbf16, #tpu.memory_space<vmem>>, vector<128x128xbf16>
    %cst_166 = arith.constant dense<0.000000e+00> : vector<64x128xf32>
    %135 = tpu.matmul %133, %134, %cst_166 {dimension_numbers = #tpu.dot_dimension_numbers<[1], [0], [0], [1], [0, 0, 1, 1], [], []>} : vector<64x128xbf16>, vector<128x128xbf16>, vector<64x128xf32> -> vector<64x128xf32>
    %136 = arith.addf %130, %135 : vector<64x128xf32>
    %c0_167 = arith.constant 0 : index
    %c2_168 = arith.constant 2 : index
    %c2_169 = arith.constant 2 : index
    %c0_170 = arith.constant 0 : index
    %137 = vector.load %arg8[%c0_167, %c2_168, %c2_169, %c0_170] : memref<1x10x10x128xf32, #tpu.memory_space<vmem>>, vector<1x8x8x128xf32>
    %138 = vector.shape_cast %137 : vector<1x8x8x128xf32> to vector<64x128xf32>
    %139 = arith.truncf %138 : vector<64x128xf32> to vector<64x128xbf16>
    %c1024_171 = arith.constant 1024 : index
    %c0_172 = arith.constant 0 : index
    %140 = vector.load %arg4[%c1024_171, %c0_172] : memref<1152x128xbf16, #tpu.memory_space<vmem>>, vector<128x128xbf16>
    %cst_173 = arith.constant dense<0.000000e+00> : vector<64x128xf32>
    %141 = tpu.matmul %139, %140, %cst_173 {dimension_numbers = #tpu.dot_dimension_numbers<[1], [0], [0], [1], [0, 0, 1, 1], [], []>} : vector<64x128xbf16>, vector<128x128xbf16>, vector<64x128xf32> -> vector<64x128xf32>
    %142 = arith.addf %136, %141 : vector<64x128xf32>
    %c0_174 = arith.constant 0 : index
    %c0_175 = arith.constant 0 : index
    %143 = vector.load %arg5[%c0_174, %c0_175] : memref<1x128xf32, #tpu.memory_space<vmem>>, vector<1x128xf32>
    %144 = vector.broadcast %143 : vector<1x128xf32> to vector<64x128xf32>
    %145 = arith.addf %142, %144 : vector<64x128xf32>
    %cst_176 = arith.constant 0.000000e+00 : f32
    %146 = vector.broadcast %cst_176 : f32 to vector<64x128xf32>
    %147 = arith.maximumf %145, %146 : vector<64x128xf32>
    %148 = vector.shape_cast %147 : vector<64x128xf32> to vector<1x64x128xf32>
    %c0_177 = arith.constant 0 : index
    %c0_178 = arith.constant 0 : index
    %c0_179 = arith.constant 0 : index
    %149 = vector.load %arg6[%c0_177, %c0_178, %c0_179] : memref<1x64x128xf32, #tpu.memory_space<vmem>>, vector<1x64x128xf32>
    tpu.vector_store %arg6[%c0_177, %c0_178, %c0_179], %148 {strides = array<i32>} : memref<1x64x128xf32, #tpu.memory_space<vmem>>, vector<1x64x128xf32>,
    return
  }
  func.func @transform_0(%arg0: i32) -> (i32, i32, i32, i32) {
    %c0_i32 = arith.constant 0 : i32
    %c0_i32_0 = arith.constant 0 : i32
    %c0_i32_1 = arith.constant 0 : i32
    %c0_i32_2 = arith.constant 0 : i32
    return %arg0, %c0_i32, %c0_i32_0, %c0_i32_1 : i32, i32, i32, i32
  }
  func.func @transform_1(%arg0: i32) -> (i32, i32) {
    %c0_i32 = arith.constant 0 : i32
    %c0_i32_0 = arith.constant 0 : i32
    %c0_i32_1 = arith.constant 0 : i32
    return %c0_i32, %c0_i32_0 : i32, i32
  }
  func.func @transform_2(%arg0: i32) -> (i32, i32) {
    %c0_i32 = arith.constant 0 : i32
    %c0_i32_0 = arith.constant 0 : i32
    %c0_i32_1 = arith.constant 0 : i32
    return %c0_i32, %c0_i32_0 : i32, i32
  }
  func.func @transform_3(%arg0: i32) -> (i32, i32) {
    %c0_i32 = arith.constant 0 : i32
    %c0_i32_0 = arith.constant 0 : i32
    %c0_i32_1 = arith.constant 0 : i32
    return %c0_i32, %c0_i32_0 : i32, i32
  }
  func.func @transform_4(%arg0: i32) -> (i32, i32) {
    %c0_i32 = arith.constant 0 : i32
    %c0_i32_0 = arith.constant 0 : i32
    %c0_i32_1 = arith.constant 0 : i32
    return %c0_i32, %c0_i32_0 : i32, i32
  }
  func.func @transform_5(%arg0: i32) -> (i32, i32, i32) {
    %c0_i32 = arith.constant 0 : i32
    %c0_i32_0 = arith.constant 0 : i32
    %c0_i32_1 = arith.constant 0 : i32
    return %arg0, %c0_i32, %c0_i32_0 : i32, i32, i32
  }
}

</mosaic_0001>

<llo_original>
// kernel: tpu_custom_call.1
$region0: #{tpu_custom_call.1}
  #allocation0 [shape = 'u32[]', space=smem, size = 0x4, offset = 0x4, fixed_abs, tag = 'smem constant byte address 0x4 - core index']
  #allocation1 [shape = 'u32[144,128]{1,0:T(1,128)}', space=vmem, size = 0x12000, scoped, tag = 'internal scratch']
  #allocation2 [shape = 'f32[1,10,10,128]{3,2,1,0:T(8,128)}', space=vmem, size = 0x14000, scoped, tag = 'scratch operand']
  #allocation3 [shape = 'f32[1,10,10,128]{3,2,1,0:T(8,128)}', space=vmem, size = 0x14000, scoped, tag = 'scratch operand']
  %s0 = inlined_call_operand.hbm [shape: f32[2,16,16,128], index: 0, kind: input, shape index: {}]
  %s1 = inlined_call_operand.hbm [shape: bf16[1152,128], index: 1, kind: input, shape index: {}]
  %s2 = inlined_call_operand.vmem [shape: f32[1,128], index: 2, kind: input, shape index: {}]
  %s3 = inlined_call_operand.hbm [shape: bf16[1152,128], index: 3, kind: input, shape index: {}]
  %s4 = inlined_call_operand.vmem [shape: f32[1,128], index: 4, kind: input, shape index: {}]
  %s5 = inlined_call_operand.hbm [shape: f32[2,64,128], index: 5, kind: output, shape index: {}]
  %s6 = sld [smem:[#allocation0]]
  $region65: #{tpu_custom_call.1} parent=0
    _
  %s8 = ssub.s32 1, %s6
  %s9 = scalar_select 0, %s8, %s6
  $region1: #{tpu_custom_call.1} parent=0
    #allocation4 [shape = 'u8[262144]{0}', space=vmem, size = 0x40000, scoped, tag = 'input window, operand 0']
    #allocation5 [shape = 's32[2]{0}', space=sflag, size = 0x8, scoped, tag = 'scoped memory for tpu_custom_call.1']
    #allocation6 [shape = 's32[2]{0}', space=sflag, size = 0x8, scoped, tag = 'scoped memory for tpu_custom_call.1']
    #allocation7 [shape = 'u8[294912]{0}', space=vmem, size = 0x48000, scoped, tag = 'input window, operand 1, single buffered']
    #allocation8 [shape = 's32[1]{0}', space=sflag, size = 0x4, scoped, tag = 'scoped memory for tpu_custom_call.1']
    #allocation9 [shape = 'u8[294912]{0}', space=vmem, size = 0x48000, scoped, tag = 'input window, operand 3, single buffered']
    #allocation10 [shape = 'u8[65536]{0}', space=vmem, size = 0x10000, scoped, tag = 'output window, operand 0']
    %10 = vsyncpa [#allocation5], 0
    %s11 = scalar_lea.sflag [#allocation5], 1
    %12 = vsyncpa %s11, 0
    %13 = vsyncpa [#allocation8], 0
    %14 = vsyncpa [#allocation6], 0
    %s15 = scalar_lea.sflag [#allocation6], 1
    %16 = vsyncpa %s15, 0
    loop: start=0, step=1, limit=4
    $region2: #{tpu_custom_call.1} parent=1 // loop_pre_header
      _
    $region3: #{tpu_custom_call.1} parent=1 // loop_header
      %s18 = sphi 0, %s22
      %p19 = scmp.ge.s32.totalorder %s18, 4
      %s28 = sphi 0, %s30
      %s31 = sphi 0, %s28
      %s32 = sphi 0, %s31
      %s48 = sphi 0, %s32
      %s52 = sphi 0, %s52
      %s54 = sphi 0, %s52
      %s55 = sphi 0, %s54
      %s69 = sphi 0, %s55
      %s73 = sphi 0, %s73
      %s75 = sphi 0, %s73
      %s76 = sphi 0, %s75
      %s90 = sphi 0, %s76
      %s94 = sphi 0, %s94
      %s96 = sphi 0, %s94
      %s97 = sphi 0, %s96
      %s111 = sphi 0, %s97
      %s115 = sphi 0, %s115
      %s117 = sphi 0, %s115
      %s118 = sphi 0, %s117
      %s132 = sphi 0, %s118
      %s138 = sphi 0, %s140
      %s141 = sphi 0, %s138
      %s142 = sphi 0, %s141
      %s158 = sphi 0, %s142
    $region4: #{tpu_custom_call.1} parent=1 // loop_header_branch
      %21 = sbr.rel (%p19) target = $region8
    $region5: #{tpu_custom_call.1} parent=1 // loop_body
      %s23 = ssub.s32 %s18, 1
      %s24 = ssub.s32 %s18, 2
      %s25 = sadd.s32 %s18, 1
      %s26 = ssub.s32 %s18, %s25
      %p27 = scmp.eq.s32.totalorder %s26, 0
      %s29 = sadd.s32 %s28, 1
      %s30 = scalar_select %p27, %s28, %s29
      %p33 = pneg %p27
      %p34 = scmp.eq.s32.totalorder %s18, 1
      %p35 = por %p33, %p34
      %p36 = scmp.ne.s32.totalorder %s28, %s31
      %p37 = scmp.eq.s32.totalorder %s18, 0
      %p38 = por %p36, %p37
      %p39 = scmp.ne.s32.totalorder %s28, %s31
      %p40 = scmp.eq.s32.totalorder %s23, 1
      %p41 = por %p39, %p40
      %p42 = scmp.ne.s32.totalorder %s31, %s32
      %p43 = scmp.eq.s32.totalorder %s23, 0
      %p44 = por %p42, %p43
      %p45 = scmp.ne.s32.totalorder %s31, %s32
      %p46 = scmp.eq.s32.totalorder %s24, 1
      %p47 = por %p45, %p46
      %p49 = scmp.ne.s32.totalorder %s32, %s48
      %p50 = scmp.eq.s32.totalorder %s24, 0
      %p51 = por %p49, %p50
      %s53 = sadd.s32 %s52, 1
      %p56 = scmp.eq.s32.totalorder %s18, 1
      %p57 = scmp.ne.s32.totalorder %s52, %s54
      %p58 = scmp.eq.s32.totalorder %s18, 0
      %p59 = por %p57, %p58
      %p60 = scmp.ne.s32.totalorder %s52, %s54
      %p61 = scmp.eq.s32.totalorder %s23, 1
      %p62 = por %p60, %p61
      %p63 = scmp.ne.s32.totalorder %s54, %s55
      %p64 = scmp.eq.s32.totalorder %s23, 0
      %p65 = por %p63, %p64
      %p66 = scmp.ne.s32.totalorder %s54, %s55
      %p67 = scmp.eq.s32.totalorder %s24, 1
      %p68 = por %p66, %p67
      %p70 = scmp.ne.s32.totalorder %s55, %s69
      %p71 = scmp.eq.s32.totalorder %s24, 0
      %p72 = por %p70, %p71
      %s74 = sadd.s32 %s73, 1
      %p77 = scmp.eq.s32.totalorder %s18, 1
      %p78 = scmp.ne.s32.totalorder %s73, %s75
      %p79 = scmp.eq.s32.totalorder %s18, 0
      %p80 = por %p78, %p79
      %p81 = scmp.ne.s32.totalorder %s73, %s75
      %p82 = scmp.eq.s32.totalorder %s23, 1
      %p83 = por %p81, %p82
      %p84 = scmp.ne.s32.totalorder %s75, %s76
      %p85 = scmp.eq.s32.totalorder %s23, 0
      %p86 = por %p84, %p85
      %p87 = scmp.ne.s32.totalorder %s75, %s76
      %p88 = scmp.eq.s32.totalorder %s24, 1
      %p89 = por %p87, %p88
      %p91 = scmp.ne.s32.totalorder %s76, %s90
      %p92 = scmp.eq.s32.totalorder %s24, 0
      %p93 = por %p91, %p92
      %s95 = sadd.s32 %s94, 1
      %p98 = scmp.eq.s32.totalorder %s18, 1
      %p99 = scmp.ne.s32.totalorder %s94, %s96
      %p100 = scmp.eq.s32.totalorder %s18, 0
      %p101 = por %p99, %p100
      %p102 = scmp.ne.s32.totalorder %s94, %s96
      %p103 = scmp.eq.s32.totalorder %s23, 1
      %p104 = por %p102, %p103
      %p105 = scmp.ne.s32.totalorder %s96, %s97
      %p106 = scmp.eq.s32.totalorder %s23, 0
      %p107 = por %p105, %p106
      %p108 = scmp.ne.s32.totalorder %s96, %s97
      %p109 = scmp.eq.s32.totalorder %s24, 1
      %p110 = por %p108, %p109
      %p112 = scmp.ne.s32.totalorder %s97, %s111
      %p113 = scmp.eq.s32.totalorder %s24, 0
      %p114 = por %p112, %p113
      %s116 = sadd.s32 %s115, 1
      %p119 = scmp.eq.s32.totalorder %s18, 1
      %p120 = scmp.ne.s32.totalorder %s115, %s117
      %p121 = scmp.eq.s32.totalorder %s18, 0
      %p122 = por %p120, %p121
      %p123 = scmp.ne.s32.totalorder %s115, %s117
      %p124 = scmp.eq.s32.totalorder %s23, 1
      %p125 = por %p123, %p124
      %p126 = scmp.ne.s32.totalorder %s117, %s118
      %p127 = scmp.eq.s32.totalorder %s23, 0
      %p128 = por %p126, %p127
      %p129 = scmp.ne.s32.totalorder %s117, %s118
      %p130 = scmp.eq.s32.totalorder %s24, 1
      %p131 = por %p129, %p130
      %p133 = scmp.ne.s32.totalorder %s118, %s132
      %p134 = scmp.eq.s32.totalorder %s24, 0
      %p135 = por %p133, %p134
      %s136 = ssub.s32 %s18, %s25
      %p137 = scmp.eq.s32.totalorder %s136, 0
      %s139 = sadd.s32 %s138, 1
      %s140 = scalar_select %p137, %s138, %s139
      %p143 = pneg %p137
      %p144 = scmp.eq.s32.totalorder %s18, 1
      %p145 = por %p143, %p144
      %p146 = scmp.ne.s32.totalorder %s138, %s141
      %p147 = scmp.eq.s32.totalorder %s18, 0
      %p148 = por %p146, %p147
      %p149 = scmp.ne.s32.totalorder %s138, %s141
      %p150 = scmp.eq.s32.totalorder %s23, 1
      %p151 = por %p149, %p150
      %p152 = scmp.ne.s32.totalorder %s141, %s142
      %p153 = scmp.eq.s32.totalorder %s23, 0
      %p154 = por %p152, %p153
      %p155 = scmp.ne.s32.totalorder %s141, %s142
      %p156 = scmp.eq.s32.totalorder %s24, 1
      %p157 = por %p155, %p156
      %p159 = scmp.ne.s32.totalorder %s142, %s158
      %p160 = scmp.eq.s32.totalorder %s24, 0
      %p161 = por %p159, %p160
      %p162 = scmp.le.s32.totalorder 1, %s18
      %p163 = scmp.lt.s32.totalorder %s18, 3
      %p164 = pnand %p162, %p163
      %p165 = pneg %p164
      // Predicated region
      $region9: #{tpu_custom_call.1} parent=5 // pred_check
        _
      $region10: #{tpu_custom_call.1} parent=5 // pred_check_branch
        %167 = sbr.rel (%p164) target = $region12
      $region11: #{tpu_custom_call.1} parent=5 // pred_region
        %s168 = ssub.s32 %s18, 1
        // Predicated region
        $region13: #{tpu_custom_call.1} parent=11 // pred_check
          %p169 = pneg %p65
        $region14: #{tpu_custom_call.1} parent=11 // pred_check_branch
          %171 = sbr.rel (%p169) target = $region16
        $region15: #{tpu_custom_call.1} parent=11 // pred_region
          %s173 = ssub.s32 9216, 9216
          %174 = vsyncadd [#allocation8], %s173
          %s175 = sshll.u32 [#allocation7], 4
          %s176 = int_to_ptr.vmem [resolvable:$true] %s175
          %181 = dma.hbm_to_vmem [thread:$0]  %s1, 9216, %s176, [#allocation8], 64, 64, 4
        $region16: #{tpu_custom_call.1} parent=11 // pred_fallthru
          _
        // Predicated region
        $region17: #{tpu_custom_call.1} parent=11 // pred_check
          %p182 = pneg %p86
        $region18: #{tpu_custom_call.1} parent=11 // pred_check_branch
          %184 = sbr.rel (%p182) target = $region20
        $region19: #{tpu_custom_call.1} parent=11 // pred_region
          _
        $region20: #{tpu_custom_call.1} parent=11 // pred_fallthru
          _
        // Predicated region
        $region21: #{tpu_custom_call.1} parent=11 // pred_check
          %p185 = pneg %p107
        $region22: #{tpu_custom_call.1} parent=11 // pred_check_branch
          %187 = sbr.rel (%p185) target = $region24
        $region23: #{tpu_custom_call.1} parent=11 // pred_region
          %s189 = ssub.s32 9216, 9216
          %190 = vsyncadd [#allocation8], %s189
          %s191 = sshll.u32 [#allocation9], 4
          %s192 = int_to_ptr.vmem [resolvable:$true] %s191
          %197 = dma.hbm_to_vmem [thread:$0]  %s3, 9216, %s192, [#allocation8], 64, 64, 4
        $region24: #{tpu_custom_call.1} parent=11 // pred_fallthru
          _
        // Predicated region
        $region25: #{tpu_custom_call.1} parent=11 // pred_check
          %p198 = pneg %p128
        $region26: #{tpu_custom_call.1} parent=11 // pred_check_branch
          %200 = sbr.rel (%p198) target = $region28
        $region27: #{tpu_custom_call.1} parent=11 // pred_region
          _
        $region28: #{tpu_custom_call.1} parent=11 // pred_fallthru
          _
      $region12: #{tpu_custom_call.1} parent=5 // pred_fallthru
        _
      %p201 = scmp.lt.s32.totalorder %s18, 2
      // Predicated region
      $region29: #{tpu_custom_call.1} parent=5 // pred_check
        %p202 = pneg %p201
      $region30: #{tpu_custom_call.1} parent=5 // pred_check_branch
        %204 = sbr.rel (%p202) target = $region32
      $region31: #{tpu_custom_call.1} parent=5 // pred_region
        // Predicated region
        $region33: #{tpu_custom_call.1} parent=31 // pred_check
          %p205 = pneg %p38
        $region34: #{tpu_custom_call.1} parent=31 // pred_check_branch
          %207 = sbr.rel (%p205) target = $region36
        $region35: #{tpu_custom_call.1} parent=31 // pred_region
          %s208 = sand.u32 %s28, 1
          %s209 = scalar_lea.sflag [#allocation5], %s208
          %s210 = sand.u32 %s28, 1
          %s211 = smul.addr %s210, 256
          %s212 = scalar_lea.vmem [#allocation4], %s211
          %s214 = ssub.s32 4096, 4096
          %215 = vsyncadd %s209, %s214
          %s216 = smul.addr %s18, 32
          %s217 = smul.addr %s216, 128
          %s218 = scalar_lea.hbm %s0, %s217
          %s219 = sshll.u32 %s212, 4
          %s220 = int_to_ptr.vmem [resolvable:$true] %s219
          %225 = dma.hbm_to_vmem [thread:$0]  %s218, 4096, %s220, %s209, 128, 128, 8
        $region36: #{tpu_custom_call.1} parent=31 // pred_fallthru
          _
      $region32: #{tpu_custom_call.1} parent=5 // pred_fallthru
        _
      %p226 = scmp.le.s32.totalorder 1, %s18
      %p227 = scmp.lt.s32.totalorder %s18, 3
      %p228 = pnand %p226, %p227
      %p229 = pneg %p228
      // Predicated region
      $region37: #{tpu_custom_call.1} parent=5 // pred_check
        _
      $region38: #{tpu_custom_call.1} parent=5 // pred_check_branch
        %231 = sbr.rel (%p228) target = $region40
      $region39: #{tpu_custom_call.1} parent=5 // pred_region
        %s232 = ssub.s32 %s18, 1
        %s233 = sand.u32 %s31, 1
        %s234 = scalar_lea.sflag [#allocation5], %s233
        %s235 = sand.u32 %s31, 1
        %s236 = smul.addr %s235, 256
        %s237 = scalar_lea.vmem [#allocation4], %s236
        // Predicated region
        $region41: #{tpu_custom_call.1} parent=39 // pred_check
          %p238 = pneg %p44
        $region42: #{tpu_custom_call.1} parent=39 // pred_check_branch
          %240 = sbr.rel (%p238) target = $region44
        $region43: #{tpu_custom_call.1} parent=39 // pred_region
          %241 = dma.done %s234, 4096
        $region44: #{tpu_custom_call.1} parent=39 // pred_fallthru
          _
        // Predicated region
        $region45: #{tpu_custom_call.1} parent=39 // pred_check
          %p242 = pneg %p65
        $region46: #{tpu_custom_call.1} parent=39 // pred_check_branch
          %244 = sbr.rel (%p242) target = $region48
        $region47: #{tpu_custom_call.1} parent=39 // pred_region
          %245 = dma.done [#allocation8], 9216
        $region48: #{tpu_custom_call.1} parent=39 // pred_fallthru
          _
        // Predicated region
        $region49: #{tpu_custom_call.1} parent=39 // pred_check
          %p246 = pneg %p107
        $region50: #{tpu_custom_call.1} parent=39 // pred_check_branch
          %248 = sbr.rel (%p246) target = $region52
        $region51: #{tpu_custom_call.1} parent=39 // pred_region
          %249 = dma.done [#allocation8], 9216
        $region52: #{tpu_custom_call.1} parent=39 // pred_fallthru
          _
        %s250 = sand.u32 %s31, 1
        %s251 = scalar_lea.sflag [#allocation5], %s250
        %s252 = sand.u32 %s31, 1
        %s253 = smul.addr %s252, 256
        %s254 = scalar_lea.vmem [#allocation4], %s253
        %p255 = pneg %p44
        %p256 = pneg %p41
        %p257 = pneg %p65
        %p258 = pneg %p62
        %p259 = pneg %p86
        %p260 = pneg %p83
        %p261 = pneg %p107
        %p262 = pneg %p104
        %p263 = pneg %p128
        %p264 = pneg %p125
        %p265 = pneg %p154
        %p266 = pneg %p151
        %s267 = sand.u32 %s141, 1
        %s268 = scalar_lea.sflag [#allocation6], %s267
        %s269 = sand.u32 %s141, 1
        %s270 = smul.addr %s269, 64
        %s271 = scalar_lea.vmem [#allocation10], %s270
        %v273 = vld [vmem:[%s237] ss:$2 sm:$0xff]
        %s274 = scalar_lea.vmem %s237, 16 [#allocation4]
        %v275 = vld [vmem:[%s274] ss:$2 sm:$0xff]
        %s276 = scalar_lea.vmem %s237, 32 [#allocation4]
        %v277 = vld [vmem:[%s276] ss:$2 sm:$0xff]
        %s278 = scalar_lea.vmem %s237, 48 [#allocation4]
        %v279 = vld [vmem:[%s278] ss:$2 sm:$0xff]
        %s280 = scalar_lea.vmem %s237, 64 [#allocation4]
        %v281 = vld [vmem:[%s280] ss:$2 sm:$0xff]
        %s282 = scalar_lea.vmem %s237, 80 [#allocation4]
        %v283 = vld [vmem:[%s282] ss:$2 sm:$0xff]
        %s284 = scalar_lea.vmem %s237, 96 [#allocation4]
        %v285 = vld [vmem:[%s284] ss:$2 sm:$0xff]
        %s286 = scalar_lea.vmem %s237, 112 [#allocation4]
        %v287 = vld [vmem:[%s286] ss:$2 sm:$0xff]
        %s288 = scalar_lea.vmem %s237, 128 [#allocation4]
        %v289 = vld [vmem:[%s288] ss:$2 sm:$0xff]
        %s290 = scalar_lea.vmem %s237, 144 [#allocation4]
        %v291 = vld [vmem:[%s290] ss:$2 sm:$0xff]
        %s292 = scalar_lea.vmem %s237, 160 [#allocation4]
        %v293 = vld [vmem:[%s292] ss:$2 sm:$0xff]
        %s294 = scalar_lea.vmem %s237, 176 [#allocation4]
        %v295 = vld [vmem:[%s294] ss:$2 sm:$0xff]
        %s296 = scalar_lea.vmem %s237, 192 [#allocation4]
        %v297 = vld [vmem:[%s296] ss:$2 sm:$0xff]
        %s298 = scalar_lea.vmem %s237, 208 [#allocation4]
        %v299 = vld [vmem:[%s298] ss:$2 sm:$0xff]
        %s300 = scalar_lea.vmem %s237, 224 [#allocation4]
        %v301 = vld [vmem:[%s300] ss:$2 sm:$0xff]
        %s302 = scalar_lea.vmem %s237, 240 [#allocation4]
        %v303 = vld [vmem:[%s302] ss:$2 sm:$0xff]
        %s304 = scalar_lea.vmem %s237, 1 [#allocation4]
        %v305 = vld [vmem:[%s304] ss:$2 sm:$0xff]
        %s306 = scalar_lea.vmem %s237, 17 [#allocation4]
        %v307 = vld [vmem:[%s306] ss:$2 sm:$0xff]
        %s308 = scalar_lea.vmem %s237, 33 [#allocation4]
        %v309 = vld [vmem:[%s308] ss:$2 sm:$0xff]
        %s310 = scalar_lea.vmem %s237, 49 [#allocation4]
        %v311 = vld [vmem:[%s310] ss:$2 sm:$0xff]
        %s312 = scalar_lea.vmem %s237, 65 [#allocation4]
        %v313 = vld [vmem:[%s312] ss:$2 sm:$0xff]
        %s314 = scalar_lea.vmem %s237, 81 [#allocation4]
        %v315 = vld [vmem:[%s314] ss:$2 sm:$0xff]
        %s316 = scalar_lea.vmem %s237, 97 [#allocation4]
        %v317 = vld [vmem:[%s316] ss:$2 sm:$0xff]
        %s318 = scalar_lea.vmem %s237, 113 [#allocation4]
        %v319 = vld [vmem:[%s318] ss:$2 sm:$0xff]
        %s320 = scalar_lea.vmem %s237, 129 [#allocation4]
        %v321 = vld [vmem:[%s320] ss:$2 sm:$0xff]
        %s322 = scalar_lea.vmem %s237, 145 [#allocation4]
        %v323 = vld [vmem:[%s322] ss:$2 sm:$0xff]
        %s324 = scalar_lea.vmem %s237, 161 [#allocation4]
        %v325 = vld [vmem:[%s324] ss:$2 sm:$0xff]
        %s326 = scalar_lea.vmem %s237, 177 [#allocation4]
        %v327 = vld [vmem:[%s326] ss:$2 sm:$0xff]
        %s328 = scalar_lea.vmem %s237, 193 [#allocation4]
        %v329 = vld [vmem:[%s328] ss:$2 sm:$0xff]
        %s330 = scalar_lea.vmem %s237, 209 [#allocation4]
        %v331 = vld [vmem:[%s330] ss:$2 sm:$0xff]
        %s332 = scalar_lea.vmem %s237, 225 [#allocation4]
        %v333 = vld [vmem:[%s332] ss:$2 sm:$0xff]
        %s334 = scalar_lea.vmem %s237, 241 [#allocation4]
        %v335 = vld [vmem:[%s334] ss:$2 sm:$0xff]
        %v336 = vmax.f32 %v273, %v305
        %v337 = vmax.f32 %v275, %v307
        %v338 = vmax.f32 %v277, %v309
        %v339 = vmax.f32 %v279, %v311
        %v340 = vmax.f32 %v281, %v313
        %v341 = vmax.f32 %v283, %v315
        %v342 = vmax.f32 %v285, %v317
        %v343 = vmax.f32 %v287, %v319
        %v344 = vmax.f32 %v289, %v321
        %v345 = vmax.f32 %v291, %v323
        %v346 = vmax.f32 %v293, %v325
        %v347 = vmax.f32 %v295, %v327
        %v348 = vmax.f32 %v297, %v329
        %v349 = vmax.f32 %v299, %v331
        %v350 = vmax.f32 %v301, %v333
        %v351 = vmax.f32 %v303, %v335
        %v352 = vmax.f32 %v336, %v337
        %v353 = vmax.f32 %v338, %v339
        %v354 = vmax.f32 %v340, %v341
        %v355 = vmax.f32 %v342, %v343
        %v356 = vmax.f32 %v344, %v345
        %v357 = vmax.f32 %v346, %v347
        %v358 = vmax.f32 %v348, %v349
        %v359 = vmax.f32 %v350, %v351
        %360 = vst [vmem:[#allocation2] sm:$0xff] 0.0
        %361 = vst [vmem:[#allocation2 + $0x8] sm:$0x3] 0.0
        %s362 = scalar_lea.vmem [#allocation2], 144
        %363 = vst [vmem:[%s362] sm:$0xff] 0.0
        %364 = vst [vmem:[%s362 + $0x8] sm:$0x3] 0.0
        %365 = vst [vmem:[#allocation2] sm:$0x1] 0.0
        %366 = vst [vmem:[#allocation2 + $0x10] sm:$0x1] 0.0
        %367 = vst [vmem:[#allocation2 + $0x20] sm:$0x1] 0.0
        %368 = vst [vmem:[#allocation2 + $0x30] sm:$0x1] 0.0
        %369 = vst [vmem:[#allocation2 + $0x40] sm:$0x1] 0.0
        %370 = vst [vmem:[#allocation2 + $0x50] sm:$0x1] 0.0
        %371 = vst [vmem:[#allocation2 + $0x60] sm:$0x1] 0.0
        %372 = vst [vmem:[#allocation2 + $0x70] sm:$0x1] 0.0
        %373 = vst [vmem:[#allocation2 + $0x80] sm:$0x1] 0.0
        %374 = vst [vmem:[#allocation2 + $0x90] sm:$0x1] 0.0
        %375 = vst [vmem:[#allocation2 + $0x9] sm:$0x1] 0.0
        %376 = vst [vmem:[#allocation2 + $0x19] sm:$0x1] 0.0
        %377 = vst [vmem:[#allocation2 + $0x29] sm:$0x1] 0.0
        %378 = vst [vmem:[#allocation2 + $0x39] sm:$0x1] 0.0
        %379 = vst [vmem:[#allocation2 + $0x49] sm:$0x1] 0.0
        %380 = vst [vmem:[#allocation2 + $0x59] sm:$0x1] 0.0
        %381 = vst [vmem:[#allocation2 + $0x69] sm:$0x1] 0.0
        %382 = vst [vmem:[#allocation2 + $0x79] sm:$0x1] 0.0
        %383 = vst [vmem:[#allocation2 + $0x89] sm:$0x1] 0.0
        %384 = vst [vmem:[#allocation2 + $0x99] sm:$0x1] 0.0
        %s385 = scalar_lea.vmem [#allocation2], 16
        %386 = vst [vmem:[%s385 + $0x1] sm:$0xff] %v352
        %387 = vst [vmem:[%s385 + $0x11] sm:$0xff] %v353
        %388 = vst [vmem:[%s385 + $0x21] sm:$0xff] %v354
        %389 = vst [vmem:[%s385 + $0x31] sm:$0xff] %v355
        %390 = vst [vmem:[%s385 + $0x41] sm:$0xff] %v356
        %391 = vst [vmem:[%s385 + $0x51] sm:$0xff] %v357
        %392 = vst [vmem:[%s385 + $0x61] sm:$0xff] %v358
        %393 = vst [vmem:[%s385 + $0x71] sm:$0xff] %v359
        %v394 = vld [vmem:[#allocation2] sm:$0xff]
        %v395 = vld [vmem:[#allocation2 + $0x10] sm:$0xff]
        %v396 = vld [vmem:[#allocation2 + $0x20] sm:$0xff]
        %v397 = vld [vmem:[#allocation2 + $0x30] sm:$0xff]
        %v398 = vld [vmem:[#allocation2 + $0x40] sm:$0xff]
        %v399 = vld [vmem:[#allocation2 + $0x50] sm:$0xff]
        %v400 = vld [vmem:[#allocation2 + $0x60] sm:$0xff]
        %v401 = vld [vmem:[#allocation2 + $0x70] sm:$0xff]
        %v402 = vpack.c.bf16 %v395, %v394
        %v403 = vpack.c.bf16 %v397, %v396
        %v404 = vpack.c.bf16 %v399, %v398
        %v405 = vpack.c.bf16 %v401, %v400
        %v406 = vld [vmem:[#allocation7] sm:$0xf]
        %v407 = vld [vmem:[#allocation7 + $0x4] sm:$0xf]
        %v408 = vld [vmem:[#allocation7 + $0x8] sm:$0xf]
        %v409 = vld [vmem:[#allocation7 + $0xc] sm:$0xf]
        %v410 = vld [vmem:[#allocation7 + $0x10] sm:$0xf]
        %v411 = vld [vmem:[#allocation7 + $0x14] sm:$0xf]
        %v412 = vld [vmem:[#allocation7 + $0x18] sm:$0xf]
        %v413 = vld [vmem:[#allocation7 + $0x1c] sm:$0xf]
        %v414 = vld [vmem:[#allocation7 + $0x20] sm:$0xf]
        %v415 = vld [vmem:[#allocation7 + $0x24] sm:$0xf]
        %v416 = vld [vmem:[#allocation7 + $0x28] sm:$0xf]
        %v417 = vld [vmem:[#allocation7 + $0x2c] sm:$0xf]
        %v418 = vld [vmem:[#allocation7 + $0x30] sm:$0xf]
        %v419 = vld [vmem:[#allocation7 + $0x34] sm:$0xf]
        %v420 = vld [vmem:[#allocation7 + $0x38] sm:$0xf]
        %v421 = vld [vmem:[#allocation7 + $0x3c] sm:$0xf]
        %v422 = vld [vmem:[#allocation2 + $0x1] sm:$0xff]
        %v423 = vld [vmem:[#allocation2 + $0x11] sm:$0xff]
        %v424 = vld [vmem:[#allocation2 + $0x21] sm:$0xff]
        %v425 = vld [vmem:[#allocation2 + $0x31] sm:$0xff]
        %v426 = vld [vmem:[#allocation2 + $0x41] sm:$0xff]
        %v427 = vld [vmem:[#allocation2 + $0x51] sm:$0xff]
        %v428 = vld [vmem:[#allocation2 + $0x61] sm:$0xff]
        %v429 = vld [vmem:[#allocation2 + $0x71] sm:$0xff]
        %v430 = vpack.c.bf16 %v423, %v422
        %v431 = vpack.c.bf16 %v425, %v424
        %v432 = vpack.c.bf16 %v427, %v426
        %v433 = vpack.c.bf16 %v429, %v428
        %v434 = vld [vmem:[#allocation7 + $0x40] sm:$0xf]
        %v435 = vld [vmem:[#allocation7 + $0x44] sm:$0xf]
        %v436 = vld [vmem:[#allocation7 + $0x48] sm:$0xf]
        %v437 = vld [vmem:[#allocation7 + $0x4c] sm:$0xf]
        %v438 = vld [vmem:[#allocation7 + $0x50] sm:$0xf]
        %v439 = vld [vmem:[#allocation7 + $0x54] sm:$0xf]
        %v440 = vld [vmem:[#allocation7 + $0x58] sm:$0xf]
        %v441 = vld [vmem:[#allocation7 + $0x5c] sm:$0xf]
        %v442 = vld [vmem:[#allocation7 + $0x60] sm:$0xf]
        %v443 = vld [vmem:[#allocation7 + $0x64] sm:$0xf]
        %v444 = vld [vmem:[#allocation7 + $0x68] sm:$0xf]
        %v445 = vld [vmem:[#allocation7 + $0x6c] sm:$0xf]
        %v446 = vld [vmem:[#allocation7 + $0x70] sm:$0xf]
        %v447 = vld [vmem:[#allocation7 + $0x74] sm:$0xf]
        %v448 = vld [vmem:[#allocation7 + $0x78] sm:$0xf]
        %v449 = vld [vmem:[#allocation7 + $0x7c] sm:$0xf]
        %v466 = vunpack.c.l.b16 %v434
        %v467 = vunpack.c.l.b16 %v435
        %v468 = vunpack.c.l.b16 %v436
        %v469 = vunpack.c.l.b16 %v437
        %v470 = vunpack.c.l.b16 %v438
        %v471 = vunpack.c.l.b16 %v439
        %v472 = vunpack.c.l.b16 %v440
        %v473 = vunpack.c.l.b16 %v441
        %v474 = vunpack.c.l.b16 %v442
        %v475 = vunpack.c.l.b16 %v443
        %v476 = vunpack.c.l.b16 %v444
        %v477 = vunpack.c.l.b16 %v445
        %v478 = vunpack.c.l.b16 %v446
        %v479 = vunpack.c.l.b16 %v447
        %v480 = vunpack.c.l.b16 %v448
        %v481 = vunpack.c.l.b16 %v449
        %v482 = vpack.c.b16 %v467, %v466
        %v483 = vpack.c.b16 %v469, %v468
        %v484 = vpack.c.b16 %v471, %v470
        %v485 = vpack.c.b16 %v473, %v472
        %v486 = vpack.c.b16 %v475, %v474
        %v487 = vpack.c.b16 %v477, %v476
        %v488 = vpack.c.b16 %v479, %v478
        %v489 = vpack.c.b16 %v481, %v480
        %498 = vmatprep.subr.bf16.mxu0 0
        %499 = vmatpush1.bf16.msra.mxu0 %v482
        %500 = vmatprep.subr.bf16.mxu0 0
        %501 = vmatpush1.bf16.msra.mxu0 %v483
        %502 = vmatprep.subr.bf16.mxu0 0
        %503 = vmatpush1.bf16.msra.mxu0 %v484
        %504 = vmatprep.subr.bf16.mxu0 0
        %505 = vmatpush1.bf16.msra.mxu0 %v485
        %506 = vmatprep.subr.bf16.mxu0 0
        %507 = vmatpush1.bf16.msra.mxu0 %v486
        %508 = vmatprep.subr.bf16.mxu0 0
        %509 = vmatpush1.bf16.msra.mxu0 %v487
        %510 = vmatprep.subr.bf16.mxu0 0
        %511 = vmatpush1.bf16.msra.mxu0 %v488
        %512 = vmatprep.subr.bf16.mxu0 0
        %513 = vmatpush1.bf16.msra.mxu0 %v489
        %514 = vmatprep.subr.bf16.mxu0 0
        %515 = vmatpush1.bf16.msra.mxu0 0
        %516 = vmatprep.subr.bf16.mxu0 0
        %517 = vmatpush1.bf16.msra.mxu0 0
        %518 = vmatprep.subr.bf16.mxu0 0
        %519 = vmatpush1.bf16.msra.mxu0 0
        %520 = vmatprep.subr.bf16.mxu0 0
        %521 = vmatpush1.bf16.msra.mxu0 0
        %522 = vmatprep.subr.bf16.mxu0 0
        %523 = vmatpush1.bf16.msra.mxu0 0
        %524 = vmatprep.subr.bf16.mxu0 0
        %525 = vmatpush1.bf16.msra.mxu0 0
        %526 = vmatprep.subr.bf16.mxu0 0
        %527 = vmatpush1.bf16.msra.mxu0 0
        %528 = vmatprep.subr.bf16.mxu0 0
        %529 = vmatpush1.bf16.msra.mxu0 0
        %530 = vmatprep.mubr.bf16.mxu0 0
        %531 = vmatmul.mubr.bf16.gmra.mrb[0].mxu0 %v430
        %v532 = vpop.f32.mrb[0].mxu0
        %v533 = vadd.f32 0.0, %v532
        %v534 = vpop.f32.mrb[0].mxu0
        %v535 = vpop.f32.mrb[0].mxu0
        %v536 = vadd.f32 0.0, %v535
        %v537 = vpop.f32.mrb[0].mxu0
        %538 = vmatprep.mubr.bf16.mxu0 0
        %539 = vmatmul.mubr.bf16.gmra.mrb[0].mxu0 %v431
        %v540 = vpop.f32.mrb[0].mxu0
        %v541 = vadd.f32 0.0, %v540
        %v542 = vpop.f32.mrb[0].mxu0
        %v543 = vpop.f32.mrb[0].mxu0
        %v544 = vadd.f32 0.0, %v543
        %v545 = vpop.f32.mrb[0].mxu0
        %546 = vmatprep.mubr.bf16.mxu0 0
        %547 = vmatmul.mubr.bf16.gmra.mrb[0].mxu0 %v432
        %v548 = vpop.f32.mrb[0].mxu0
        %v549 = vadd.f32 0.0, %v548
        %v550 = vpop.f32.mrb[0].mxu0
        %v551 = vpop.f32.mrb[0].mxu0
        %v552 = vadd.f32 0.0, %v551
        %v553 = vpop.f32.mrb[0].mxu0
        %554 = vmatprep.mubr.bf16.mxu0 0
        %555 = vmatmul.mubr.bf16.gmra.mrb[0].mxu0 %v433
        %v556 = vpop.f32.mrb[0].mxu0
        %v557 = vadd.f32 0.0, %v556
        %v558 = vpop.f32.mrb[0].mxu0
        %v559 = vpop.f32.mrb[0].mxu0
        %v560 = vadd.f32 0.0, %v559
        %v561 = vpop.f32.mrb[0].mxu0
        %562 = vdwg.mxu0
        %v579 = vunpack.c.l.b16 %v406
        %v580 = vunpack.c.l.b16 %v407
        %v581 = vunpack.c.l.b16 %v408
        %v582 = vunpack.c.l.b16 %v409
        %v583 = vunpack.c.l.b16 %v410
        %v584 = vunpack.c.l.b16 %v411
        %v585 = vunpack.c.l.b16 %v412
        %v586 = vunpack.c.l.b16 %v413
        %v587 = vunpack.c.l.b16 %v414
        %v588 = vunpack.c.l.b16 %v415
        %v589 = vunpack.c.l.b16 %v416
        %v590 = vunpack.c.l.b16 %v417
        %v591 = vunpack.c.l.b16 %v418
        %v592 = vunpack.c.l.b16 %v419
        %v593 = vunpack.c.l.b16 %v420
        %v594 = vunpack.c.l.b16 %v421
        %v595 = vpack.c.b16 %v580, %v579
        %v596 = vpack.c.b16 %v582, %v581
        %v597 = vpack.c.b16 %v584, %v583
        %v598 = vpack.c.b16 %v586, %v585
        %v599 = vpack.c.b16 %v588, %v587
        %v600 = vpack.c.b16 %v590, %v589
        %v601 = vpack.c.b16 %v592, %v591
        %v602 = vpack.c.b16 %v594, %v593
        %611 = vmatprep.subr.bf16.mxu0 0
        %612 = vmatpush1.bf16.msra.mxu0 %v595
        %613 = vmatprep.subr.bf16.mxu0 0
        %614 = vmatpush1.bf16.msra.mxu0 %v596
        %615 = vmatprep.subr.bf16.mxu0 0
        %616 = vmatpush1.bf16.msra.mxu0 %v597
        %617 = vmatprep.subr.bf16.mxu0 0
        %618 = vmatpush1.bf16.msra.mxu0 %v598
        %619 = vmatprep.subr.bf16.mxu0 0
        %620 = vmatpush1.bf16.msra.mxu0 %v599
        %621 = vmatprep.subr.bf16.mxu0 0
        %622 = vmatpush1.bf16.msra.mxu0 %v600
        %623 = vmatprep.subr.bf16.mxu0 0
        %624 = vmatpush1.bf16.msra.mxu0 %v601
        %625 = vmatprep.subr.bf16.mxu0 0
        %626 = vmatpush1.bf16.msra.mxu0 %v602
        %627 = vmatprep.subr.bf16.mxu0 0
        %628 = vmatpush1.bf16.msra.mxu0 0
        %629 = vmatprep.subr.bf16.mxu0 0
        %630 = vmatpush1.bf16.msra.mxu0 0
        %631 = vmatprep.subr.bf16.mxu0 0
        %632 = vmatpush1.bf16.msra.mxu0 0
        %633 = vmatprep.subr.bf16.mxu0 0
        %634 = vmatpush1.bf16.msra.mxu0 0
        %635 = vmatprep.subr.bf16.mxu0 0
        %636 = vmatpush1.bf16.msra.mxu0 0
        %637 = vmatprep.subr.bf16.mxu0 0
        %638 = vmatpush1.bf16.msra.mxu0 0
        %639 = vmatprep.subr.bf16.mxu0 0
        %640 = vmatpush1.bf16.msra.mxu0 0
        %641 = vmatprep.subr.bf16.mxu0 0
        %642 = vmatpush1.bf16.msra.mxu0 0
        %643 = vmatprep.mubr.bf16.mxu0 0
        %644 = vmatmul.mubr.bf16.gmra.mrb[0].mxu0 %v402
        %v645 = vpop.f32.mrb[0].mxu0
        %v646 = vadd.f32 %v533, %v645
        %v647 = vpop.f32.mrb[0].mxu0
        %v648 = vpop.f32.mrb[0].mxu0
        %v649 = vadd.f32 %v536, %v648
        %v650 = vpop.f32.mrb[0].mxu0
        %651 = vmatprep.mubr.bf16.mxu0 0
        %652 = vmatmul.mubr.bf16.gmra.mrb[0].mxu0 %v403
        %v653 = vpop.f32.mrb[0].mxu0
        %v654 = vadd.f32 %v541, %v653
        %v655 = vpop.f32.mrb[0].mxu0
        %v656 = vpop.f32.mrb[0].mxu0
        %v657 = vadd.f32 %v544, %v656
        %v658 = vpop.f32.mrb[0].mxu0
        %659 = vmatprep.mubr.bf16.mxu0 0
        %660 = vmatmul.mubr.bf16.gmra.mrb[0].mxu0 %v404
        %v661 = vpop.f32.mrb[0].mxu0
        %v662 = vadd.f32 %v549, %v661
        %v663 = vpop.f32.mrb[0].mxu0
        %v664 = vpop.f32.mrb[0].mxu0
        %v665 = vadd.f32 %v552, %v664
        %v666 = vpop.f32.mrb[0].mxu0
        %667 = vmatprep.mubr.bf16.mxu0 0
        %668 = vmatmul.mubr.bf16.gmra.mrb[0].mxu0 %v405
        %v669 = vpop.f32.mrb[0].mxu0
        %v670 = vadd.f32 %v557, %v669
        %v671 = vpop.f32.mrb[0].mxu0
        %v672 = vpop.f32.mrb[0].mxu0
        %v673 = vadd.f32 %v560, %v672
        %v674 = vpop.f32.mrb[0].mxu0
        %675 = vdwg.mxu0
        %v676 = vld [vmem:[#allocation2 + $0x2] sm:$0xff]
        %v677 = vld [vmem:[#allocation2 + $0x12] sm:$0xff]
        %v678 = vld [vmem:[#allocation2 + $0x22] sm:$0xff]
        %v679 = vld [vmem:[#allocation2 + $0x32] sm:$0xff]
        %v680 = vld [vmem:[#allocation2 + $0x42] sm:$0xff]
        %v681 = vld [vmem:[#allocation2 + $0x52] sm:$0xff]
        %v682 = vld [vmem:[#allocation2 + $0x62] sm:$0xff]
        %v683 = vld [vmem:[#allocation2 + $0x72] sm:$0xff]
        %v684 = vpack.c.bf16 %v677, %v676
        %v685 = vpack.c.bf16 %v679, %v678
        %v686 = vpack.c.bf16 %v681, %v680
        %v687 = vpack.c.bf16 %v683, %v682
        %v688 = vld [vmem:[#allocation7 + $0x80] sm:$0xf]
        %v689 = vld [vmem:[#allocation7 + $0x84] sm:$0xf]
        %v690 = vld [vmem:[#allocation7 + $0x88] sm:$0xf]
        %v691 = vld [vmem:[#allocation7 + $0x8c] sm:$0xf]
        %v692 = vld [vmem:[#allocation7 + $0x90] sm:$0xf]
        %v693 = vld [vmem:[#allocation7 + $0x94] sm:$0xf]
        %v694 = vld [vmem:[#allocation7 + $0x98] sm:$0xf]
        %v695 = vld [vmem:[#allocation7 + $0x9c] sm:$0xf]
        %v696 = vld [vmem:[#allocation7 + $0xa0] sm:$0xf]
        %v697 = vld [vmem:[#allocation7 + $0xa4] sm:$0xf]
        %v698 = vld [vmem:[#allocation7 + $0xa8] sm:$0xf]
        %v699 = vld [vmem:[#allocation7 + $0xac] sm:$0xf]
        %v700 = vld [vmem:[#allocation7 + $0xb0] sm:$0xf]
        %v701 = vld [vmem:[#allocation7 + $0xb4] sm:$0xf]
        %v702 = vld [vmem:[#allocation7 + $0xb8] sm:$0xf]
        %v703 = vld [vmem:[#allocation7 + $0xbc] sm:$0xf]
        %v720 = vunpack.c.l.b16 %v688
        %v721 = vunpack.c.l.b16 %v689
        %v722 = vunpack.c.l.b16 %v690
        %v723 = vunpack.c.l.b16 %v691
        %v724 = vunpack.c.l.b16 %v692
        %v725 = vunpack.c.l.b16 %v693
        %v726 = vunpack.c.l.b16 %v694
        %v727 = vunpack.c.l.b16 %v695
        %v728 = vunpack.c.l.b16 %v696
        %v729 = vunpack.c.l.b16 %v697
        %v730 = vunpack.c.l.b16 %v698
        %v731 = vunpack.c.l.b16 %v699
        %v732 = vunpack.c.l.b16 %v700
        %v733 = vunpack.c.l.b16 %v701
        %v734 = vunpack.c.l.b16 %v702
        %v735 = vunpack.c.l.b16 %v703
        %v736 = vpack.c.b16 %v721, %v720
        %v737 = vpack.c.b16 %v723, %v722
        %v738 = vpack.c.b16 %v725, %v724
        %v739 = vpack.c.b16 %v727, %v726
        %v740 = vpack.c.b16 %v729, %v728
        %v741 = vpack.c.b16 %v731, %v730
        %v742 = vpack.c.b16 %v733, %v732
        %v743 = vpack.c.b16 %v735, %v734
        %752 = vmatprep.subr.bf16.mxu0 0
        %753 = vmatpush1.bf16.msra.mxu0 %v736
        %754 = vmatprep.subr.bf16.mxu0 0
        %755 = vmatpush1.bf16.msra.mxu0 %v737
        %756 = vmatprep.subr.bf16.mxu0 0
        %757 = vmatpush1.bf16.msra.mxu0 %v738
        %758 = vmatprep.subr.bf16.mxu0 0
        %759 = vmatpush1.bf16.msra.mxu0 %v739
        %760 = vmatprep.subr.bf16.mxu0 0
        %761 = vmatpush1.bf16.msra.mxu0 %v740
        %762 = vmatprep.subr.bf16.mxu0 0
        %763 = vmatpush1.bf16.msra.mxu0 %v741
        %764 = vmatprep.subr.bf16.mxu0 0
        %765 = vmatpush1.bf16.msra.mxu0 %v742
        %766 = vmatprep.subr.bf16.mxu0 0
        %767 = vmatpush1.bf16.msra.mxu0 %v743
        %768 = vmatprep.subr.bf16.mxu0 0
        %769 = vmatpush1.bf16.msra.mxu0 0
        %770 = vmatprep.subr.bf16.mxu0 0
        %771 = vmatpush1.bf16.msra.mxu0 0
        %772 = vmatprep.subr.bf16.mxu0 0
        %773 = vmatpush1.bf16.msra.mxu0 0
        %774 = vmatprep.subr.bf16.mxu0 0
        %775 = vmatpush1.bf16.msra.mxu0 0
        %776 = vmatprep.subr.bf16.mxu0 0
        %777 = vmatpush1.bf16.msra.mxu0 0
        %778 = vmatprep.subr.bf16.mxu0 0
        %779 = vmatpush1.bf16.msra.mxu0 0
        %780 = vmatprep.subr.bf16.mxu0 0
        %781 = vmatpush1.bf16.msra.mxu0 0
        %782 = vmatprep.subr.bf16.mxu0 0
        %783 = vmatpush1.bf16.msra.mxu0 0
        %784 = vmatprep.mubr.bf16.mxu0 0
        %785 = vmatmul.mubr.bf16.gmra.mrb[0].mxu0 %v684
        %v786 = vpop.f32.mrb[0].mxu0
        %v787 = vadd.f32 0.0, %v786
        %v788 = vpop.f32.mrb[0].mxu0
        %v789 = vpop.f32.mrb[0].mxu0
        %v790 = vadd.f32 0.0, %v789
        %v791 = vpop.f32.mrb[0].mxu0
        %792 = vmatprep.mubr.bf16.mxu0 0
        %793 = vmatmul.mubr.bf16.gmra.mrb[0].mxu0 %v685
        %v794 = vpop.f32.mrb[0].mxu0
        %v795 = vadd.f32 0.0, %v794
        %v796 = vpop.f32.mrb[0].mxu0
        %v797 = vpop.f32.mrb[0].mxu0
        %v798 = vadd.f32 0.0, %v797
        %v799 = vpop.f32.mrb[0].mxu0
        %800 = vmatprep.mubr.bf16.mxu0 0
        %801 = vmatmul.mubr.bf16.gmra.mrb[0].mxu0 %v686
        %v802 = vpop.f32.mrb[0].mxu0
        %v803 = vadd.f32 0.0, %v802
        %v804 = vpop.f32.mrb[0].mxu0
        %v805 = vpop.f32.mrb[0].mxu0
        %v806 = vadd.f32 0.0, %v805
        %v807 = vpop.f32.mrb[0].mxu0
        %808 = vmatprep.mubr.bf16.mxu0 0
        %809 = vmatmul.mubr.bf16.gmra.mrb[0].mxu0 %v687
        %v810 = vpop.f32.mrb[0].mxu0
        %v811 = vadd.f32 0.0, %v810
        %v812 = vpop.f32.mrb[0].mxu0
        %v813 = vpop.f32.mrb[0].mxu0
        %v814 = vadd.f32 0.0, %v813
        %v815 = vpop.f32.mrb[0].mxu0
        %816 = vdwg.mxu0
        %v817 = vadd.f32 %v646, %v787
        %v818 = vadd.f32 %v649, %v790
        %v819 = vadd.f32 %v654, %v795
        %v820 = vadd.f32 %v657, %v798
        %v821 = vadd.f32 %v662, %v803
        %v822 = vadd.f32 %v665, %v806
        %v823 = vadd.f32 %v670, %v811
        %v824 = vadd.f32 %v673, %v814
        %v825 = vld [vmem:[%s385] sm:$0xff]
        %v826 = vld [vmem:[%s385 + $0x10] sm:$0xff]
        %v827 = vld [vmem:[%s385 + $0x20] sm:$0xff]
        %v828 = vld [vmem:[%s385 + $0x30] sm:$0xff]
        %v829 = vld [vmem:[%s385 + $0x40] sm:$0xff]
        %v830 = vld [vmem:[%s385 + $0x50] sm:$0xff]
        %v831 = vld [vmem:[%s385 + $0x60] sm:$0xff]
        %v832 = vld [vmem:[%s385 + $0x70] sm:$0xff]
        %v833 = vpack.c.bf16 %v826, %v825
        %v834 = vpack.c.bf16 %v828, %v827
        %v835 = vpack.c.bf16 %v830, %v829
        %v836 = vpack.c.bf16 %v832, %v831
        %v837 = vld [vmem:[#allocation7 + $0xc0] sm:$0xf]
        %v838 = vld [vmem:[#allocation7 + $0xc4] sm:$0xf]
        %v839 = vld [vmem:[#allocation7 + $0xc8] sm:$0xf]
        %v840 = vld [vmem:[#allocation7 + $0xcc] sm:$0xf]
        %v841 = vld [vmem:[#allocation7 + $0xd0] sm:$0xf]
        %v842 = vld [vmem:[#allocation7 + $0xd4] sm:$0xf]
        %v843 = vld [vmem:[#allocation7 + $0xd8] sm:$0xf]
        %v844 = vld [vmem:[#allocation7 + $0xdc] sm:$0xf]
        %v845 = vld [vmem:[#allocation7 + $0xe0] sm:$0xf]
        %v846 = vld [vmem:[#allocation7 + $0xe4] sm:$0xf]
        %v847 = vld [vmem:[#allocation7 + $0xe8] sm:$0xf]
        %v848 = vld [vmem:[#allocation7 + $0xec] sm:$0xf]
        %v849 = vld [vmem:[#allocation7 + $0xf0] sm:$0xf]
        %v850 = vld [vmem:[#allocation7 + $0xf4] sm:$0xf]
        %v851 = vld [vmem:[#allocation7 + $0xf8] sm:$0xf]
        %v852 = vld [vmem:[#allocation7 + $0xfc] sm:$0xf]
        %v869 = vunpack.c.l.b16 %v837
        %v870 = vunpack.c.l.b16 %v838
        %v871 = vunpack.c.l.b16 %v839
        %v872 = vunpack.c.l.b16 %v840
        %v873 = vunpack.c.l.b16 %v841
        %v874 = vunpack.c.l.b16 %v842
        %v875 = vunpack.c.l.b16 %v843
        %v876 = vunpack.c.l.b16 %v844
        %v877 = vunpack.c.l.b16 %v845
        %v878 = vunpack.c.l.b16 %v846
        %v879 = vunpack.c.l.b16 %v847
        %v880 = vunpack.c.l.b16 %v848
        %v881 = vunpack.c.l.b16 %v849
        %v882 = vunpack.c.l.b16 %v850
        %v883 = vunpack.c.l.b16 %v851
        %v884 = vunpack.c.l.b16 %v852
        %v885 = vpack.c.b16 %v870, %v869
        %v886 = vpack.c.b16 %v872, %v871
        %v887 = vpack.c.b16 %v874, %v873
        %v888 = vpack.c.b16 %v876, %v875
        %v889 = vpack.c.b16 %v878, %v877
        %v890 = vpack.c.b16 %v880, %v879
        %v891 = vpack.c.b16 %v882, %v881
        %v892 = vpack.c.b16 %v884, %v883
        %901 = vmatprep.subr.bf16.mxu0 0
        %902 = vmatpush1.bf16.msra.mxu0 %v885
        %903 = vmatprep.subr.bf16.mxu0 0
        %904 = vmatpush1.bf16.msra.mxu0 %v886
        %905 = vmatprep.subr.bf16.mxu0 0
        %906 = vmatpush1.bf16.msra.mxu0 %v887
        %907 = vmatprep.subr.bf16.mxu0 0
        %908 = vmatpush1.bf16.msra.mxu0 %v888
        %909 = vmatprep.subr.bf16.mxu0 0
        %910 = vmatpush1.bf16.msra.mxu0 %v889
        %911 = vmatprep.subr.bf16.mxu0 0
        %912 = vmatpush1.bf16.msra.mxu0 %v890
        %913 = vmatprep.subr.bf16.mxu0 0
        %914 = vmatpush1.bf16.msra.mxu0 %v891
        %915 = vmatprep.subr.bf16.mxu0 0
        %916 = vmatpush1.bf16.msra.mxu0 %v892
        %917 = vmatprep.subr.bf16.mxu0 0
        %918 = vmatpush1.bf16.msra.mxu0 0
        %919 = vmatprep.subr.bf16.mxu0 0
        %920 = vmatpush1.bf16.msra.mxu0 0
        %921 = vmatprep.subr.bf16.mxu0 0
        %922 = vmatpush1.bf16.msra.mxu0 0
        %923 = vmatprep.subr.bf16.mxu0 0
        %924 = vmatpush1.bf16.msra.mxu0 0
        %925 = vmatprep.subr.bf16.mxu0 0
        %926 = vmatpush1.bf16.msra.mxu0 0
        %927 = vmatprep.subr.bf16.mxu0 0
        %928 = vmatpush1.bf16.msra.mxu0 0
        %929 = vmatprep.subr.bf16.mxu0 0
        %930 = vmatpush1.bf16.msra.mxu0 0
        %931 = vmatprep.subr.bf16.mxu0 0
        %932 = vmatpush1.bf16.msra.mxu0 0
        %933 = vmatprep.mubr.bf16.mxu0 0
        %934 = vmatmul.mubr.bf16.gmra.mrb[0].mxu0 %v833
        %v935 = vpop.f32.mrb[0].mxu0
        %v936 = vadd.f32 0.0, %v935
        %v937 = vpop.f32.mrb[0].mxu0
        %v938 = vpop.f32.mrb[0].mxu0
        %v939 = vadd.f32 0.0, %v938
        %v940 = vpop.f32.mrb[0].mxu0
        %941 = vmatprep.mubr.bf16.mxu0 0
        %942 = vmatmul.mubr.bf16.gmra.mrb[0].mxu0 %v834
        %v943 = vpop.f32.mrb[0].mxu0
        %v944 = vadd.f32 0.0, %v943
        %v945 = vpop.f32.mrb[0].mxu0
        %v946 = vpop.f32.mrb[0].mxu0
        %v947 = vadd.f32 0.0, %v946
        %v948 = vpop.f32.mrb[0].mxu0
        %949 = vmatprep.mubr.bf16.mxu0 0
        %950 = vmatmul.mubr.bf16.gmra.mrb[0].mxu0 %v835
        %v951 = vpop.f32.mrb[0].mxu0
        %v952 = vadd.f32 0.0, %v951
        %v953 = vpop.f32.mrb[0].mxu0
        %v954 = vpop.f32.mrb[0].mxu0
        %v955 = vadd.f32 0.0, %v954
        %v956 = vpop.f32.mrb[0].mxu0
        %957 = vmatprep.mubr.bf16.mxu0 0
        %958 = vmatmul.mubr.bf16.gmra.mrb[0].mxu0 %v836
        %v959 = vpop.f32.mrb[0].mxu0
        %v960 = vadd.f32 0.0, %v959
        %v961 = vpop.f32.mrb[0].mxu0
        %v962 = vpop.f32.mrb[0].mxu0
        %v963 = vadd.f32 0.0, %v962
        %v964 = vpop.f32.mrb[0].mxu0
        %965 = vdwg.mxu0
        %v966 = vadd.f32 %v817, %v936
        %v967 = vadd.f32 %v818, %v939
        %v968 = vadd.f32 %v819, %v944
        %v969 = vadd.f32 %v820, %v947
        %v970 = vadd.f32 %v821, %v952
        %v971 = vadd.f32 %v822, %v955
        %v972 = vadd.f32 %v823, %v960
        %v973 = vadd.f32 %v824, %v963
        %v974 = vld [vmem:[%s385 + $0x1] sm:$0xff]
        %v975 = vld [vmem:[%s385 + $0x11] sm:$0xff]
        %v976 = vld [vmem:[%s385 + $0x21] sm:$0xff]
        %v977 = vld [vmem:[%s385 + $0x31] sm:$0xff]
        %v978 = vld [vmem:[%s385 + $0x41] sm:$0xff]
        %v979 = vld [vmem:[%s385 + $0x51] sm:$0xff]
        %v980 = vld [vmem:[%s385 + $0x61] sm:$0xff]
        %v981 = vld [vmem:[%s385 + $0x71] sm:$0xff]
        %v982 = vpack.c.bf16 %v975, %v974
        %v983 = vpack.c.bf16 %v977, %v976
        %v984 = vpack.c.bf16 %v979, %v978
        %v985 = vpack.c.bf16 %v981, %v980
        %v986 = vld [vmem:[#allocation7 + $0x100] sm:$0xf]
        %v987 = vld [vmem:[#allocation7 + $0x104] sm:$0xf]
        %v988 = vld [vmem:[#allocation7 + $0x108] sm:$0xf]
        %v989 = vld [vmem:[#allocation7 + $0x10c] sm:$0xf]
        %v990 = vld [vmem:[#allocation7 + $0x110] sm:$0xf]
        %v991 = vld [vmem:[#allocation7 + $0x114] sm:$0xf]
        %v992 = vld [vmem:[#allocation7 + $0x118] sm:$0xf]
        %v993 = vld [vmem:[#allocation7 + $0x11c] sm:$0xf]
        %v994 = vld [vmem:[#allocation7 + $0x120] sm:$0xf]
        %v995 = vld [vmem:[#allocation7 + $0x124] sm:$0xf]
        %v996 = vld [vmem:[#allocation7 + $0x128] sm:$0xf]
        %v997 = vld [vmem:[#allocation7 + $0x12c] sm:$0xf]
        %v998 = vld [vmem:[#allocation7 + $0x130] sm:$0xf]
        %v999 = vld [vmem:[#allocation7 + $0x134] sm:$0xf]
        %v1000 = vld [vmem:[#allocation7 + $0x138] sm:$0xf]
        %v1001 = vld [vmem:[#allocation7 + $0x13c] sm:$0xf]
        %v1018 = vunpack.c.l.b16 %v986
        %v1019 = vunpack.c.l.b16 %v987
        %v1020 = vunpack.c.l.b16 %v988
        %v1021 = vunpack.c.l.b16 %v989
        %v1022 = vunpack.c.l.b16 %v990
        %v1023 = vunpack.c.l.b16 %v991
        %v1024 = vunpack.c.l.b16 %v992
        %v1025 = vunpack.c.l.b16 %v993
        %v1026 = vunpack.c.l.b16 %v994
        %v1027 = vunpack.c.l.b16 %v995
        %v1028 = vunpack.c.l.b16 %v996
        %v1029 = vunpack.c.l.b16 %v997
        %v1030 = vunpack.c.l.b16 %v998
        %v1031 = vunpack.c.l.b16 %v999
        %v1032 = vunpack.c.l.b16 %v1000
        %v1033 = vunpack.c.l.b16 %v1001
        %v1034 = vpack.c.b16 %v1019, %v1018
        %v1035 = vpack.c.b16 %v1021, %v1020
        %v1036 = vpack.c.b16 %v1023, %v1022
        %v1037 = vpack.c.b16 %v1025, %v1024
        %v1038 = vpack.c.b16 %v1027, %v1026
        %v1039 = vpack.c.b16 %v1029, %v1028
        %v1040 = vpack.c.b16 %v1031, %v1030
        %v1041 = vpack.c.b16 %v1033, %v1032
        %1050 = vmatprep.subr.bf16.mxu0 0
        %1051 = vmatpush1.bf16.msra.mxu0 %v1034
        %1052 = vmatprep.subr.bf16.mxu0 0
        %1053 = vmatpush1.bf16.msra.mxu0 %v1035
        %1054 = vmatprep.subr.bf16.mxu0 0
        %1055 = vmatpush1.bf16.msra.mxu0 %v1036
        %1056 = vmatprep.subr.bf16.mxu0 0
        %1057 = vmatpush1.bf16.msra.mxu0 %v1037
        %1058 = vmatprep.subr.bf16.mxu0 0
        %1059 = vmatpush1.bf16.msra.mxu0 %v1038
        %1060 = vmatprep.subr.bf16.mxu0 0
        %1061 = vmatpush1.bf16.msra.mxu0 %v1039
        %1062 = vmatprep.subr.bf16.mxu0 0
        %1063 = vmatpush1.bf16.msra.mxu0 %v1040
        %1064 = vmatprep.subr.bf16.mxu0 0
        %1065 = vmatpush1.bf16.msra.mxu0 %v1041
        %1066 = vmatprep.subr.bf16.mxu0 0
        %1067 = vmatpush1.bf16.msra.mxu0 0
        %1068 = vmatprep.subr.bf16.mxu0 0
        %1069 = vmatpush1.bf16.msra.mxu0 0
        %1070 = vmatprep.subr.bf16.mxu0 0
        %1071 = vmatpush1.bf16.msra.mxu0 0
        %1072 = vmatprep.subr.bf16.mxu0 0
        %1073 = vmatpush1.bf16.msra.mxu0 0
        %1074 = vmatprep.subr.bf16.mxu0 0
        %1075 = vmatpush1.bf16.msra.mxu0 0
        %1076 = vmatprep.subr.bf16.mxu0 0
        %1077 = vmatpush1.bf16.msra.mxu0 0
        %1078 = vmatprep.subr.bf16.mxu0 0
        %1079 = vmatpush1.bf16.msra.mxu0 0
        %1080 = vmatprep.subr.bf16.mxu0 0
        %1081 = vmatpush1.bf16.msra.mxu0 0
        %1082 = vmatprep.mubr.bf16.mxu0 0
        %1083 = vmatmul.mubr.bf16.gmra.mrb[0].mxu0 %v982
        %v1084 = vpop.f32.mrb[0].mxu0
        %v1085 = vadd.f32 0.0, %v1084
        %v1086 = vpop.f32.mrb[0].mxu0
        %v1087 = vpop.f32.mrb[0].mxu0
        %v1088 = vadd.f32 0.0, %v1087
        %v1089 = vpop.f32.mrb[0].mxu0
        %1090 = vmatprep.mubr.bf16.mxu0 0
        %1091 = vmatmul.mubr.bf16.gmra.mrb[0].mxu0 %v983
        %v1092 = vpop.f32.mrb[0].mxu0
        %v1093 = vadd.f32 0.0, %v1092
        %v1094 = vpop.f32.mrb[0].mxu0
        %v1095 = vpop.f32.mrb[0].mxu0
        %v1096 = vadd.f32 0.0, %v1095
        %v1097 = vpop.f32.mrb[0].mxu0
        %1098 = vmatprep.mubr.bf16.mxu0 0
        %1099 = vmatmul.mubr.bf16.gmra.mrb[0].mxu0 %v984
        %v1100 = vpop.f32.mrb[0].mxu0
        %v1101 = vadd.f32 0.0, %v1100
        %v1102 = vpop.f32.mrb[0].mxu0
        %v1103 = vpop.f32.mrb[0].mxu0
        %v1104 = vadd.f32 0.0, %v1103
        %v1105 = vpop.f32.mrb[0].mxu0
        %1106 = vmatprep.mubr.bf16.mxu0 0
        %1107 = vmatmul.mubr.bf16.gmra.mrb[0].mxu0 %v985
        %v1108 = vpop.f32.mrb[0].mxu0
        %v1109 = vadd.f32 0.0, %v1108
        %v1110 = vpop.f32.mrb[0].mxu0
        %v1111 = vpop.f32.mrb[0].mxu0
        %v1112 = vadd.f32 0.0, %v1111
        %v1113 = vpop.f32.mrb[0].mxu0
        %1114 = vdwg.mxu0
        %v1115 = vadd.f32 %v966, %v1085
        %v1116 = vadd.f32 %v967, %v1088
        %v1117 = vadd.f32 %v968, %v1093
        %v1118 = vadd.f32 %v969, %v1096
        %v1119 = vadd.f32 %v970, %v1101
        %v1120 = vadd.f32 %v971, %v1104
        %v1121 = vadd.f32 %v972, %v1109
        %v1122 = vadd.f32 %v973, %v1112
        %v1123 = vld [vmem:[%s385 + $0x2] sm:$0xff]
        %v1124 = vld [vmem:[%s385 + $0x12] sm:$0xff]
        %v1125 = vld [vmem:[%s385 + $0x22] sm:$0xff]
        %v1126 = vld [vmem:[%s385 + $0x32] sm:$0xff]
        %v1127 = vld [vmem:[%s385 + $0x42] sm:$0xff]
        %v1128 = vld [vmem:[%s385 + $0x52] sm:$0xff]
        %v1129 = vld [vmem:[%s385 + $0x62] sm:$0xff]
        %v1130 = vld [vmem:[%s385 + $0x72] sm:$0xff]
        %v1131 = vpack.c.bf16 %v1124, %v1123
        %v1132 = vpack.c.bf16 %v1126, %v1125
        %v1133 = vpack.c.bf16 %v1128, %v1127
        %v1134 = vpack.c.bf16 %v1130, %v1129
        %v1135 = vld [vmem:[#allocation7 + $0x140] sm:$0xf]
        %v1136 = vld [vmem:[#allocation7 + $0x144] sm:$0xf]
        %v1137 = vld [vmem:[#allocation7 + $0x148] sm:$0xf]
        %v1138 = vld [vmem:[#allocation7 + $0x14c] sm:$0xf]
        %v1139 = vld [vmem:[#allocation7 + $0x150] sm:$0xf]
        %v1140 = vld [vmem:[#allocation7 + $0x154] sm:$0xf]
        %v1141 = vld [vmem:[#allocation7 + $0x158] sm:$0xf]
        %v1142 = vld [vmem:[#allocation7 + $0x15c] sm:$0xf]
        %v1143 = vld [vmem:[#allocation7 + $0x160] sm:$0xf]
        %v1144 = vld [vmem:[#allocation7 + $0x164] sm:$0xf]
        %v1145 = vld [vmem:[#allocation7 + $0x168] sm:$0xf]
        %v1146 = vld [vmem:[#allocation7 + $0x16c] sm:$0xf]
        %v1147 = vld [vmem:[#allocation7 + $0x170] sm:$0xf]
        %v1148 = vld [vmem:[#allocation7 + $0x174] sm:$0xf]
        %v1149 = vld [vmem:[#allocation7 + $0x178] sm:$0xf]
        %v1150 = vld [vmem:[#allocation7 + $0x17c] sm:$0xf]
        %v1167 = vunpack.c.l.b16 %v1135
        %v1168 = vunpack.c.l.b16 %v1136
        %v1169 = vunpack.c.l.b16 %v1137
        %v1170 = vunpack.c.l.b16 %v1138
        %v1171 = vunpack.c.l.b16 %v1139
        %v1172 = vunpack.c.l.b16 %v1140
        %v1173 = vunpack.c.l.b16 %v1141
        %v1174 = vunpack.c.l.b16 %v1142
        %v1175 = vunpack.c.l.b16 %v1143
        %v1176 = vunpack.c.l.b16 %v1144
        %v1177 = vunpack.c.l.b16 %v1145
        %v1178 = vunpack.c.l.b16 %v1146
        %v1179 = vunpack.c.l.b16 %v1147
        %v1180 = vunpack.c.l.b16 %v1148
        %v1181 = vunpack.c.l.b16 %v1149
        %v1182 = vunpack.c.l.b16 %v1150
        %v1183 = vpack.c.b16 %v1168, %v1167
        %v1184 = vpack.c.b16 %v1170, %v1169
        %v1185 = vpack.c.b16 %v1172, %v1171
        %v1186 = vpack.c.b16 %v1174, %v1173
        %v1187 = vpack.c.b16 %v1176, %v1175
        %v1188 = vpack.c.b16 %v1178, %v1177
        %v1189 = vpack.c.b16 %v1180, %v1179
        %v1190 = vpack.c.b16 %v1182, %v1181
        %1199 = vmatprep.subr.bf16.mxu0 0
        %1200 = vmatpush1.bf16.msra.mxu0 %v1183
        %1201 = vmatprep.subr.bf16.mxu0 0
        %1202 = vmatpush1.bf16.msra.mxu0 %v1184
        %1203 = vmatprep.subr.bf16.mxu0 0
        %1204 = vmatpush1.bf16.msra.mxu0 %v1185
        %1205 = vmatprep.subr.bf16.mxu0 0
        %1206 = vmatpush1.bf16.msra.mxu0 %v1186
        %1207 = vmatprep.subr.bf16.mxu0 0
        %1208 = vmatpush1.bf16.msra.mxu0 %v1187
        %1209 = vmatprep.subr.bf16.mxu0 0
        %1210 = vmatpush1.bf16.msra.mxu0 %v1188
        %1211 = vmatprep.subr.bf16.mxu0 0
        %1212 = vmatpush1.bf16.msra.mxu0 %v1189
        %1213 = vmatprep.subr.bf16.mxu0 0
        %1214 = vmatpush1.bf16.msra.mxu0 %v1190
        %1215 = vmatprep.subr.bf16.mxu0 0
        %1216 = vmatpush1.bf16.msra.mxu0 0
        %1217 = vmatprep.subr.bf16.mxu0 0
        %1218 = vmatpush1.bf16.msra.mxu0 0
        %1219 = vmatprep.subr.bf16.mxu0 0
        %1220 = vmatpush1.bf16.msra.mxu0 0
        %1221 = vmatprep.subr.bf16.mxu0 0
        %1222 = vmatpush1.bf16.msra.mxu0 0
        %1223 = vmatprep.subr.bf16.mxu0 0
        %1224 = vmatpush1.bf16.msra.mxu0 0
        %1225 = vmatprep.subr.bf16.mxu0 0
        %1226 = vmatpush1.bf16.msra.mxu0 0
        %1227 = vmatprep.subr.bf16.mxu0 0
        %1228 = vmatpush1.bf16.msra.mxu0 0
        %1229 = vmatprep.subr.bf16.mxu0 0
        %1230 = vmatpush1.bf16.msra.mxu0 0
        %1231 = vmatprep.mubr.bf16.mxu0 0
        %1232 = vmatmul.mubr.bf16.gmra.mrb[0].mxu0 %v1131
        %v1233 = vpop.f32.mrb[0].mxu0
        %v1234 = vadd.f32 0.0, %v1233
        %v1235 = vpop.f32.mrb[0].mxu0
        %v1236 = vpop.f32.mrb[0].mxu0
        %v1237 = vadd.f32 0.0, %v1236
        %v1238 = vpop.f32.mrb[0].mxu0
        %1239 = vmatprep.mubr.bf16.mxu0 0
        %1240 = vmatmul.mubr.bf16.gmra.mrb[0].mxu0 %v1132
        %v1241 = vpop.f32.mrb[0].mxu0
        %v1242 = vadd.f32 0.0, %v1241
        %v1243 = vpop.f32.mrb[0].mxu0
        %v1244 = vpop.f32.mrb[0].mxu0
        %v1245 = vadd.f32 0.0, %v1244
        %v1246 = vpop.f32.mrb[0].mxu0
        %1247 = vmatprep.mubr.bf16.mxu0 0
        %1248 = vmatmul.mubr.bf16.gmra.mrb[0].mxu0 %v1133
        %v1249 = vpop.f32.mrb[0].mxu0
        %v1250 = vadd.f32 0.0, %v1249
        %v1251 = vpop.f32.mrb[0].mxu0
        %v1252 = vpop.f32.mrb[0].mxu0
        %v1253 = vadd.f32 0.0, %v1252
        %v1254 = vpop.f32.mrb[0].mxu0
        %1255 = vmatprep.mubr.bf16.mxu0 0
        %1256 = vmatmul.mubr.bf16.gmra.mrb[0].mxu0 %v1134
        %v1257 = vpop.f32.mrb[0].mxu0
        %v1258 = vadd.f32 0.0, %v1257
        %v1259 = vpop.f32.mrb[0].mxu0
        %v1260 = vpop.f32.mrb[0].mxu0
        %v1261 = vadd.f32 0.0, %v1260
        %v1262 = vpop.f32.mrb[0].mxu0
        %1263 = vdwg.mxu0
        %v1264 = vadd.f32 %v1115, %v1234
        %v1265 = vadd.f32 %v1116, %v1237
        %v1266 = vadd.f32 %v1117, %v1242
        %v1267 = vadd.f32 %v1118, %v1245
        %v1268 = vadd.f32 %v1119, %v1250
        %v1269 = vadd.f32 %v1120, %v1253
        %v1270 = vadd.f32 %v1121, %v1258
        %v1271 = vadd.f32 %v1122, %v1261
        %s1272 = scalar_lea.vmem [#allocation2], 32
        %v1273 = vld [vmem:[%s1272] sm:$0xff]
        %v1274 = vld [vmem:[%s1272 + $0x10] sm:$0xff]
        %v1275 = vld [vmem:[%s1272 + $0x20] sm:$0xff]
        %v1276 = vld [vmem:[%s1272 + $0x30] sm:$0xff]
        %v1277 = vld [vmem:[%s1272 + $0x40] sm:$0xff]
        %v1278 = vld [vmem:[%s1272 + $0x50] sm:$0xff]
        %v1279 = vld [vmem:[%s1272 + $0x60] sm:$0xff]
        %v1280 = vld [vmem:[%s1272 + $0x70] sm:$0xff]
        %v1281 = vpack.c.bf16 %v1274, %v1273
        %v1282 = vpack.c.bf16 %v1276, %v1275
        %v1283 = vpack.c.bf16 %v1278, %v1277
        %v1284 = vpack.c.bf16 %v1280, %v1279
        %v1285 = vld [vmem:[#allocation7 + $0x180] sm:$0xf]
        %v1286 = vld [vmem:[#allocation7 + $0x184] sm:$0xf]
        %v1287 = vld [vmem:[#allocation7 + $0x188] sm:$0xf]
        %v1288 = vld [vmem:[#allocation7 + $0x18c] sm:$0xf]
        %v1289 = vld [vmem:[#allocation7 + $0x190] sm:$0xf]
        %v1290 = vld [vmem:[#allocation7 + $0x194] sm:$0xf]
        %v1291 = vld [vmem:[#allocation7 + $0x198] sm:$0xf]
        %v1292 = vld [vmem:[#allocation7 + $0x19c] sm:$0xf]
        %v1293 = vld [vmem:[#allocation7 + $0x1a0] sm:$0xf]
        %v1294 = vld [vmem:[#allocation7 + $0x1a4] sm:$0xf]
        %v1295 = vld [vmem:[#allocation7 + $0x1a8] sm:$0xf]
        %v1296 = vld [vmem:[#allocation7 + $0x1ac] sm:$0xf]
        %v1297 = vld [vmem:[#allocation7 + $0x1b0] sm:$0xf]
        %v1298 = vld [vmem:[#allocation7 + $0x1b4] sm:$0xf]
        %v1299 = vld [vmem:[#allocation7 + $0x1b8] sm:$0xf]
        %v1300 = vld [vmem:[#allocation7 + $0x1bc] sm:$0xf]
        %v1317 = vunpack.c.l.b16 %v1285
        %v1318 = vunpack.c.l.b16 %v1286
        %v1319 = vunpack.c.l.b16 %v1287
        %v1320 = vunpack.c.l.b16 %v1288
        %v1321 = vunpack.c.l.b16 %v1289
        %v1322 = vunpack.c.l.b16 %v1290
        %v1323 = vunpack.c.l.b16 %v1291
        %v1324 = vunpack.c.l.b16 %v1292
        %v1325 = vunpack.c.l.b16 %v1293
        %v1326 = vunpack.c.l.b16 %v1294
        %v1327 = vunpack.c.l.b16 %v1295
        %v1328 = vunpack.c.l.b16 %v1296
        %v1329 = vunpack.c.l.b16 %v1297
        %v1330 = vunpack.c.l.b16 %v1298
        %v1331 = vunpack.c.l.b16 %v1299
        %v1332 = vunpack.c.l.b16 %v1300
        %v1333 = vpack.c.b16 %v1318, %v1317
        %v1334 = vpack.c.b16 %v1320, %v1319
        %v1335 = vpack.c.b16 %v1322, %v1321
        %v1336 = vpack.c.b16 %v1324, %v1323
        %v1337 = vpack.c.b16 %v1326, %v1325
        %v1338 = vpack.c.b16 %v1328, %v1327
        %v1339 = vpack.c.b16 %v1330, %v1329
        %v1340 = vpack.c.b16 %v1332, %v1331
        %1349 = vmatprep.subr.bf16.mxu0 0
        %1350 = vmatpush1.bf16.msra.mxu0 %v1333
        %1351 = vmatprep.subr.bf16.mxu0 0
        %1352 = vmatpush1.bf16.msra.mxu0 %v1334
        %1353 = vmatprep.subr.bf16.mxu0 0
        %1354 = vmatpush1.bf16.msra.mxu0 %v1335
        %1355 = vmatprep.subr.bf16.mxu0 0
        %1356 = vmatpush1.bf16.msra.mxu0 %v1336
        %1357 = vmatprep.subr.bf16.mxu0 0
        %1358 = vmatpush1.bf16.msra.mxu0 %v1337
        %1359 = vmatprep.subr.bf16.mxu0 0
        %1360 = vmatpush1.bf16.msra.mxu0 %v1338
        %1361 = vmatprep.subr.bf16.mxu0 0
        %1362 = vmatpush1.bf16.msra.mxu0 %v1339
        %1363 = vmatprep.subr.bf16.mxu0 0
        %1364 = vmatpush1.bf16.msra.mxu0 %v1340
        %1365 = vmatprep.subr.bf16.mxu0 0
        %1366 = vmatpush1.bf16.msra.mxu0 0
        %1367 = vmatprep.subr.bf16.mxu0 0
        %1368 = vmatpush1.bf16.msra.mxu0 0
        %1369 = vmatprep.subr.bf16.mxu0 0
        %1370 = vmatpush1.bf16.msra.mxu0 0
        %1371 = vmatprep.subr.bf16.mxu0 0
        %1372 = vmatpush1.bf16.msra.mxu0 0
        %1373 = vmatprep.subr.bf16.mxu0 0
        %1374 = vmatpush1.bf16.msra.mxu0 0
        %1375 = vmatprep.subr.bf16.mxu0 0
        %1376 = vmatpush1.bf16.msra.mxu0 0
        %1377 = vmatprep.subr.bf16.mxu0 0
        %1378 = vmatpush1.bf16.msra.mxu0 0
        %1379 = vmatprep.subr.bf16.mxu0 0
        %1380 = vmatpush1.bf16.msra.mxu0 0
        %1381 = vmatprep.mubr.bf16.mxu0 0
        %1382 = vmatmul.mubr.bf16.gmra.mrb[0].mxu0 %v1281
        %v1383 = vpop.f32.mrb[0].mxu0
        %v1384 = vadd.f32 0.0, %v1383
        %v1385 = vpop.f32.mrb[0].mxu0
        %v1386 = vpop.f32.mrb[0].mxu0
        %v1387 = vadd.f32 0.0, %v1386
        %v1388 = vpop.f32.mrb[0].mxu0
        %1389 = vmatprep.mubr.bf16.mxu0 0
        %1390 = vmatmul.mubr.bf16.gmra.mrb[0].mxu0 %v1282
        %v1391 = vpop.f32.mrb[0].mxu0
        %v1392 = vadd.f32 0.0, %v1391
        %v1393 = vpop.f32.mrb[0].mxu0
        %v1394 = vpop.f32.mrb[0].mxu0
        %v1395 = vadd.f32 0.0, %v1394
        %v1396 = vpop.f32.mrb[0].mxu0
        %1397 = vmatprep.mubr.bf16.mxu0 0
        %1398 = vmatmul.mubr.bf16.gmra.mrb[0].mxu0 %v1283
        %v1399 = vpop.f32.mrb[0].mxu0
        %v1400 = vadd.f32 0.0, %v1399
        %v1401 = vpop.f32.mrb[0].mxu0
        %v1402 = vpop.f32.mrb[0].mxu0
        %v1403 = vadd.f32 0.0, %v1402
        %v1404 = vpop.f32.mrb[0].mxu0
        %1405 = vmatprep.mubr.bf16.mxu0 0
        %1406 = vmatmul.mubr.bf16.gmra.mrb[0].mxu0 %v1284
        %v1407 = vpop.f32.mrb[0].mxu0
        %v1408 = vadd.f32 0.0, %v1407
        %v1409 = vpop.f32.mrb[0].mxu0
        %v1410 = vpop.f32.mrb[0].mxu0
        %v1411 = vadd.f32 0.0, %v1410
        %v1412 = vpop.f32.mrb[0].mxu0
        %1413 = vdwg.mxu0
        %v1414 = vadd.f32 %v1264, %v1384
        %v1415 = vadd.f32 %v1265, %v1387
        %v1416 = vadd.f32 %v1266, %v1392
        %v1417 = vadd.f32 %v1267, %v1395
        %v1418 = vadd.f32 %v1268, %v1400
        %v1419 = vadd.f32 %v1269, %v1403
        %v1420 = vadd.f32 %v1270, %v1408
        %v1421 = vadd.f32 %v1271, %v1411
        %v1422 = vld [vmem:[%s1272 + $0x1] sm:$0xff]
        %v1423 = vld [vmem:[%s1272 + $0x11] sm:$0xff]
        %v1424 = vld [vmem:[%s1272 + $0x21] sm:$0xff]
        %v1425 = vld [vmem:[%s1272 + $0x31] sm:$0xff]
        %v1426 = vld [vmem:[%s1272 + $0x41] sm:$0xff]
        %v1427 = vld [vmem:[%s1272 + $0x51] sm:$0xff]
        %v1428 = vld [vmem:[%s1272 + $0x61] sm:$0xff]
        %v1429 = vld [vmem:[%s1272 + $0x71] sm:$0xff]
        %v1430 = vpack.c.bf16 %v1423, %v1422
        %v1431 = vpack.c.bf16 %v1425, %v1424
        %v1432 = vpack.c.bf16 %v1427, %v1426
        %v1433 = vpack.c.bf16 %v1429, %v1428
        %v1434 = vld [vmem:[#allocation7 + $0x1c0] sm:$0xf]
        %v1435 = vld [vmem:[#allocation7 + $0x1c4] sm:$0xf]
        %v1436 = vld [vmem:[#allocation7 + $0x1c8] sm:$0xf]
        %v1437 = vld [vmem:[#allocation7 + $0x1cc] sm:$0xf]
        %v1438 = vld [vmem:[#allocation7 + $0x1d0] sm:$0xf]
        %v1439 = vld [vmem:[#allocation7 + $0x1d4] sm:$0xf]
        %v1440 = vld [vmem:[#allocation7 + $0x1d8] sm:$0xf]
        %v1441 = vld [vmem:[#allocation7 + $0x1dc] sm:$0xf]
        %v1442 = vld [vmem:[#allocation7 + $0x1e0] sm:$0xf]
        %v1443 = vld [vmem:[#allocation7 + $0x1e4] sm:$0xf]
        %v1444 = vld [vmem:[#allocation7 + $0x1e8] sm:$0xf]
        %v1445 = vld [vmem:[#allocation7 + $0x1ec] sm:$0xf]
        %v1446 = vld [vmem:[#allocation7 + $0x1f0] sm:$0xf]
        %v1447 = vld [vmem:[#allocation7 + $0x1f4] sm:$0xf]
        %v1448 = vld [vmem:[#allocation7 + $0x1f8] sm:$0xf]
        %v1449 = vld [vmem:[#allocation7 + $0x1fc] sm:$0xf]
        %v1466 = vunpack.c.l.b16 %v1434
        %v1467 = vunpack.c.l.b16 %v1435
        %v1468 = vunpack.c.l.b16 %v1436
        %v1469 = vunpack.c.l.b16 %v1437
        %v1470 = vunpack.c.l.b16 %v1438
        %v1471 = vunpack.c.l.b16 %v1439
        %v1472 = vunpack.c.l.b16 %v1440
        %v1473 = vunpack.c.l.b16 %v1441
        %v1474 = vunpack.c.l.b16 %v1442
        %v1475 = vunpack.c.l.b16 %v1443
        %v1476 = vunpack.c.l.b16 %v1444
        %v1477 = vunpack.c.l.b16 %v1445
        %v1478 = vunpack.c.l.b16 %v1446
        %v1479 = vunpack.c.l.b16 %v1447
        %v1480 = vunpack.c.l.b16 %v1448
        %v1481 = vunpack.c.l.b16 %v1449
        %v1482 = vpack.c.b16 %v1467, %v1466
        %v1483 = vpack.c.b16 %v1469, %v1468
        %v1484 = vpack.c.b16 %v1471, %v1470
        %v1485 = vpack.c.b16 %v1473, %v1472
        %v1486 = vpack.c.b16 %v1475, %v1474
        %v1487 = vpack.c.b16 %v1477, %v1476
        %v1488 = vpack.c.b16 %v1479, %v1478
        %v1489 = vpack.c.b16 %v1481, %v1480
        %1498 = vmatprep.subr.bf16.mxu0 0
        %1499 = vmatpush1.bf16.msra.mxu0 %v1482
        %1500 = vmatprep.subr.bf16.mxu0 0
        %1501 = vmatpush1.bf16.msra.mxu0 %v1483
        %1502 = vmatprep.subr.bf16.mxu0 0
        %1503 = vmatpush1.bf16.msra.mxu0 %v1484
        %1504 = vmatprep.subr.bf16.mxu0 0
        %1505 = vmatpush1.bf16.msra.mxu0 %v1485
        %1506 = vmatprep.subr.bf16.mxu0 0
        %1507 = vmatpush1.bf16.msra.mxu0 %v1486
        %1508 = vmatprep.subr.bf16.mxu0 0
        %1509 = vmatpush1.bf16.msra.mxu0 %v1487
        %1510 = vmatprep.subr.bf16.mxu0 0
        %1511 = vmatpush1.bf16.msra.mxu0 %v1488
        %1512 = vmatprep.subr.bf16.mxu0 0
        %1513 = vmatpush1.bf16.msra.mxu0 %v1489
        %1514 = vmatprep.subr.bf16.mxu0 0
        %1515 = vmatpush1.bf16.msra.mxu0 0
        %1516 = vmatprep.subr.bf16.mxu0 0
        %1517 = vmatpush1.bf16.msra.mxu0 0
        %1518 = vmatprep.subr.bf16.mxu0 0
        %1519 = vmatpush1.bf16.msra.mxu0 0
        %1520 = vmatprep.subr.bf16.mxu0 0
        %1521 = vmatpush1.bf16.msra.mxu0 0
        %1522 = vmatprep.subr.bf16.mxu0 0
        %1523 = vmatpush1.bf16.msra.mxu0 0
        %1524 = vmatprep.subr.bf16.mxu0 0
        %1525 = vmatpush1.bf16.msra.mxu0 0
        %1526 = vmatprep.subr.bf16.mxu0 0
        %1527 = vmatpush1.bf16.msra.mxu0 0
        %1528 = vmatprep.subr.bf16.mxu0 0
        %1529 = vmatpush1.bf16.msra.mxu0 0
        %1530 = vmatprep.mubr.bf16.mxu0 0
        %1531 = vmatmul.mubr.bf16.gmra.mrb[0].mxu0 %v1430
        %v1532 = vpop.f32.mrb[0].mxu0
        %v1533 = vadd.f32 0.0, %v1532
        %v1534 = vpop.f32.mrb[0].mxu0
        %v1535 = vpop.f32.mrb[0].mxu0
        %v1536 = vadd.f32 0.0, %v1535
        %v1537 = vpop.f32.mrb[0].mxu0
        %1538 = vmatprep.mubr.bf16.mxu0 0
        %1539 = vmatmul.mubr.bf16.gmra.mrb[0].mxu0 %v1431
        %v1540 = vpop.f32.mrb[0].mxu0
        %v1541 = vadd.f32 0.0, %v1540
        %v1542 = vpop.f32.mrb[0].mxu0
        %v1543 = vpop.f32.mrb[0].mxu0
        %v1544 = vadd.f32 0.0, %v1543
        %v1545 = vpop.f32.mrb[0].mxu0
        %1546 = vmatprep.mubr.bf16.mxu0 0
        %1547 = vmatmul.mubr.bf16.gmra.mrb[0].mxu0 %v1432
        %v1548 = vpop.f32.mrb[0].mxu0
        %v1549 = vadd.f32 0.0, %v1548
        %v1550 = vpop.f32.mrb[0].mxu0
        %v1551 = vpop.f32.mrb[0].mxu0
        %v1552 = vadd.f32 0.0, %v1551
        %v1553 = vpop.f32.mrb[0].mxu0
        %1554 = vmatprep.mubr.bf16.mxu0 0
        %1555 = vmatmul.mubr.bf16.gmra.mrb[0].mxu0 %v1433
        %v1556 = vpop.f32.mrb[0].mxu0
        %v1557 = vadd.f32 0.0, %v1556
        %v1558 = vpop.f32.mrb[0].mxu0
        %v1559 = vpop.f32.mrb[0].mxu0
        %v1560 = vadd.f32 0.0, %v1559
        %v1561 = vpop.f32.mrb[0].mxu0
        %1562 = vdwg.mxu0
        %v1563 = vadd.f32 %v1414, %v1533
        %v1564 = vadd.f32 %v1415, %v1536
        %v1565 = vadd.f32 %v1416, %v1541
        %v1566 = vadd.f32 %v1417, %v1544
        %v1567 = vadd.f32 %v1418, %v1549
        %v1568 = vadd.f32 %v1419, %v1552
        %v1569 = vadd.f32 %v1420, %v1557
        %v1570 = vadd.f32 %v1421, %v1560
        %v1571 = vld [vmem:[%s1272 + $0x2] sm:$0xff]
        %v1572 = vld [vmem:[%s1272 + $0x12] sm:$0xff]
        %v1573 = vld [vmem:[%s1272 + $0x22] sm:$0xff]
        %v1574 = vld [vmem:[%s1272 + $0x32] sm:$0xff]
        %v1575 = vld [vmem:[%s1272 + $0x42] sm:$0xff]
        %v1576 = vld [vmem:[%s1272 + $0x52] sm:$0xff]
        %v1577 = vld [vmem:[%s1272 + $0x62] sm:$0xff]
        %v1578 = vld [vmem:[%s1272 + $0x72] sm:$0xff]
        %v1579 = vpack.c.bf16 %v1572, %v1571
        %v1580 = vpack.c.bf16 %v1574, %v1573
        %v1581 = vpack.c.bf16 %v1576, %v1575
        %v1582 = vpack.c.bf16 %v1578, %v1577
        %v1583 = vld [vmem:[#allocation7 + $0x200] sm:$0xf]
        %v1584 = vld [vmem:[#allocation7 + $0x204] sm:$0xf]
        %v1585 = vld [vmem:[#allocation7 + $0x208] sm:$0xf]
        %v1586 = vld [vmem:[#allocation7 + $0x20c] sm:$0xf]
        %v1587 = vld [vmem:[#allocation7 + $0x210] sm:$0xf]
        %v1588 = vld [vmem:[#allocation7 + $0x214] sm:$0xf]
        %v1589 = vld [vmem:[#allocation7 + $0x218] sm:$0xf]
        %v1590 = vld [vmem:[#allocation7 + $0x21c] sm:$0xf]
        %v1591 = vld [vmem:[#allocation7 + $0x220] sm:$0xf]
        %v1592 = vld [vmem:[#allocation7 + $0x224] sm:$0xf]
        %v1593 = vld [vmem:[#allocation7 + $0x228] sm:$0xf]
        %v1594 = vld [vmem:[#allocation7 + $0x22c] sm:$0xf]
        %v1595 = vld [vmem:[#allocation7 + $0x230] sm:$0xf]
        %v1596 = vld [vmem:[#allocation7 + $0x234] sm:$0xf]
        %v1597 = vld [vmem:[#allocation7 + $0x238] sm:$0xf]
        %v1598 = vld [vmem:[#allocation7 + $0x23c] sm:$0xf]
        %v1615 = vunpack.c.l.b16 %v1583
        %v1616 = vunpack.c.l.b16 %v1584
        %v1617 = vunpack.c.l.b16 %v1585
        %v1618 = vunpack.c.l.b16 %v1586
        %v1619 = vunpack.c.l.b16 %v1587
        %v1620 = vunpack.c.l.b16 %v1588
        %v1621 = vunpack.c.l.b16 %v1589
        %v1622 = vunpack.c.l.b16 %v1590
        %v1623 = vunpack.c.l.b16 %v1591
        %v1624 = vunpack.c.l.b16 %v1592
        %v1625 = vunpack.c.l.b16 %v1593
        %v1626 = vunpack.c.l.b16 %v1594
        %v1627 = vunpack.c.l.b16 %v1595
        %v1628 = vunpack.c.l.b16 %v1596
        %v1629 = vunpack.c.l.b16 %v1597
        %v1630 = vunpack.c.l.b16 %v1598
        %v1631 = vpack.c.b16 %v1616, %v1615
        %v1632 = vpack.c.b16 %v1618, %v1617
        %v1633 = vpack.c.b16 %v1620, %v1619
        %v1634 = vpack.c.b16 %v1622, %v1621
        %v1635 = vpack.c.b16 %v1624, %v1623
        %v1636 = vpack.c.b16 %v1626, %v1625
        %v1637 = vpack.c.b16 %v1628, %v1627
        %v1638 = vpack.c.b16 %v1630, %v1629
        %1647 = vmatprep.subr.bf16.mxu0 0
        %1648 = vmatpush1.bf16.msra.mxu0 %v1631
        %1649 = vmatprep.subr.bf16.mxu0 0
        %1650 = vmatpush1.bf16.msra.mxu0 %v1632
        %1651 = vmatprep.subr.bf16.mxu0 0
        %1652 = vmatpush1.bf16.msra.mxu0 %v1633
        %1653 = vmatprep.subr.bf16.mxu0 0
        %1654 = vmatpush1.bf16.msra.mxu0 %v1634
        %1655 = vmatprep.subr.bf16.mxu0 0
        %1656 = vmatpush1.bf16.msra.mxu0 %v1635
        %1657 = vmatprep.subr.bf16.mxu0 0
        %1658 = vmatpush1.bf16.msra.mxu0 %v1636
        %1659 = vmatprep.subr.bf16.mxu0 0
        %1660 = vmatpush1.bf16.msra.mxu0 %v1637
        %1661 = vmatprep.subr.bf16.mxu0 0
        %1662 = vmatpush1.bf16.msra.mxu0 %v1638
        %1663 = vmatprep.subr.bf16.mxu0 0
        %1664 = vmatpush1.bf16.msra.mxu0 0
        %1665 = vmatprep.subr.bf16.mxu0 0
        %1666 = vmatpush1.bf16.msra.mxu0 0
        %1667 = vmatprep.subr.bf16.mxu0 0
        %1668 = vmatpush1.bf16.msra.mxu0 0
        %1669 = vmatprep.subr.bf16.mxu0 0
        %1670 = vmatpush1.bf16.msra.mxu0 0
        %1671 = vmatprep.subr.bf16.mxu0 0
        %1672 = vmatpush1.bf16.msra.mxu0 0
        %1673 = vmatprep.subr.bf16.mxu0 0
        %1674 = vmatpush1.bf16.msra.mxu0 0
        %1675 = vmatprep.subr.bf16.mxu0 0
        %1676 = vmatpush1.bf16.msra.mxu0 0
        %1677 = vmatprep.subr.bf16.mxu0 0
        %1678 = vmatpush1.bf16.msra.mxu0 0
        %1679 = vmatprep.mubr.bf16.mxu0 0
        %1680 = vmatmul.mubr.bf16.gmra.mrb[0].mxu0 %v1579
        %v1681 = vpop.f32.mrb[0].mxu0
        %v1682 = vadd.f32 0.0, %v1681
        %v1683 = vpop.f32.mrb[0].mxu0
        %v1684 = vpop.f32.mrb[0].mxu0
        %v1685 = vadd.f32 0.0, %v1684
        %v1686 = vpop.f32.mrb[0].mxu0
        %1687 = vmatprep.mubr.bf16.mxu0 0
        %1688 = vmatmul.mubr.bf16.gmra.mrb[0].mxu0 %v1580
        %v1689 = vpop.f32.mrb[0].mxu0
        %v1690 = vadd.f32 0.0, %v1689
        %v1691 = vpop.f32.mrb[0].mxu0
        %v1692 = vpop.f32.mrb[0].mxu0
        %v1693 = vadd.f32 0.0, %v1692
        %v1694 = vpop.f32.mrb[0].mxu0
        %1695 = vmatprep.mubr.bf16.mxu0 0
        %1696 = vmatmul.mubr.bf16.gmra.mrb[0].mxu0 %v1581
        %v1697 = vpop.f32.mrb[0].mxu0
        %v1698 = vadd.f32 0.0, %v1697
        %v1699 = vpop.f32.mrb[0].mxu0
        %v1700 = vpop.f32.mrb[0].mxu0
        %v1701 = vadd.f32 0.0, %v1700
        %v1702 = vpop.f32.mrb[0].mxu0
        %1703 = vmatprep.mubr.bf16.mxu0 0
        %1704 = vmatmul.mubr.bf16.gmra.mrb[0].mxu0 %v1582
        %v1705 = vpop.f32.mrb[0].mxu0
        %v1706 = vadd.f32 0.0, %v1705
        %v1707 = vpop.f32.mrb[0].mxu0
        %v1708 = vpop.f32.mrb[0].mxu0
        %v1709 = vadd.f32 0.0, %v1708
        %v1710 = vpop.f32.mrb[0].mxu0
        %1711 = vdwg.mxu0
        %v1712 = vadd.f32 %v1563, %v1682
        %v1713 = vadd.f32 %v1564, %v1685
        %v1714 = vadd.f32 %v1565, %v1690
        %v1715 = vadd.f32 %v1566, %v1693
        %v1716 = vadd.f32 %v1567, %v1698
        %v1717 = vadd.f32 %v1568, %v1701
        %v1718 = vadd.f32 %v1569, %v1706
        %v1719 = vadd.f32 %v1570, %v1709
        %v1720 = vld [vmem:[%s2] sm:$0x1]
        %v1722 = vlaneseq
        %v1723 = vshrl.u32 %v1722, 7
        %v1724 = vsub.s32 0, %v1723
        %v1725 = vrot.slane %v1720, %v1724
        %v1727 = vadd.f32 %v1712, %v1725
        %v1728 = vadd.f32 %v1713, %v1725
        %v1729 = vadd.f32 %v1714, %v1725
        %v1730 = vadd.f32 %v1715, %v1725
        %v1731 = vadd.f32 %v1716, %v1725
        %v1732 = vadd.f32 %v1717, %v1725
        %v1733 = vadd.f32 %v1718, %v1725
        %v1734 = vadd.f32 %v1719, %v1725
        %v1735 = vmax.f32 %v1727, 0.0
        %v1736 = vmax.f32 %v1728, 0.0
        %v1737 = vmax.f32 %v1729, 0.0
        %v1738 = vmax.f32 %v1730, 0.0
        %v1739 = vmax.f32 %v1731, 0.0
        %v1740 = vmax.f32 %v1732, 0.0
        %v1741 = vmax.f32 %v1733, 0.0
        %v1742 = vmax.f32 %v1734, 0.0
        %1743 = vst [vmem:[#allocation3] sm:$0xff] 0.0
        %1744 = vst [vmem:[#allocation3 + $0x8] sm:$0x3] 0.0
        %s1745 = scalar_lea.vmem [#allocation3], 144
        %1746 = vst [vmem:[%s1745] sm:$0xff] 0.0
        %1747 = vst [vmem:[%s1745 + $0x8] sm:$0x3] 0.0
        %1748 = vst [vmem:[#allocation3] sm:$0x1] 0.0
        %1749 = vst [vmem:[#allocation3 + $0x10] sm:$0x1] 0.0
        %1750 = vst [vmem:[#allocation3 + $0x20] sm:$0x1] 0.0
        %1751 = vst [vmem:[#allocation3 + $0x30] sm:$0x1] 0.0
        %1752 = vst [vmem:[#allocation3 + $0x40] sm:$0x1] 0.0
        %1753 = vst [vmem:[#allocation3 + $0x50] sm:$0x1] 0.0
        %1754 = vst [vmem:[#allocation3 + $0x60] sm:$0x1] 0.0
        %1755 = vst [vmem:[#allocation3 + $0x70] sm:$0x1] 0.0
        %1756 = vst [vmem:[#allocation3 + $0x80] sm:$0x1] 0.0
        %1757 = vst [vmem:[#allocation3 + $0x90] sm:$0x1] 0.0
        %1758 = vst [vmem:[#allocation3 + $0x9] sm:$0x1] 0.0
        %1759 = vst [vmem:[#allocation3 + $0x19] sm:$0x1] 0.0
        %1760 = vst [vmem:[#allocation3 + $0x29] sm:$0x1] 0.0
        %1761 = vst [vmem:[#allocation3 + $0x39] sm:$0x1] 0.0
        %1762 = vst [vmem:[#allocation3 + $0x49] sm:$0x1] 0.0
        %1763 = vst [vmem:[#allocation3 + $0x59] sm:$0x1] 0.0
        %1764 = vst [vmem:[#allocation3 + $0x69] sm:$0x1] 0.0
        %1765 = vst [vmem:[#allocation3 + $0x79] sm:$0x1] 0.0
        %1766 = vst [vmem:[#allocation3 + $0x89] sm:$0x1] 0.0
        %1767 = vst [vmem:[#allocation3 + $0x99] sm:$0x1] 0.0
        %s1768 = scalar_lea.vmem [#allocation3], 16
        %1769 = vst [vmem:[%s1768 + $0x1] sm:$0xff] %v1735
        %1770 = vst [vmem:[%s1768 + $0x11] sm:$0xff] %v1736
        %1771 = vst [vmem:[%s1768 + $0x21] sm:$0xff] %v1737
        %1772 = vst [vmem:[%s1768 + $0x31] sm:$0xff] %v1738
        %1773 = vst [vmem:[%s1768 + $0x41] sm:$0xff] %v1739
        %1774 = vst [vmem:[%s1768 + $0x51] sm:$0xff] %v1740
        %1775 = vst [vmem:[%s1768 + $0x61] sm:$0xff] %v1741
        %1776 = vst [vmem:[%s1768 + $0x71] sm:$0xff] %v1742
        %v1777 = vld [vmem:[#allocation3] sm:$0xff]
        %v1778 = vld [vmem:[#allocation3 + $0x10] sm:$0xff]
        %v1779 = vld [vmem:[#allocation3 + $0x20] sm:$0xff]
        %v1780 = vld [vmem:[#allocation3 + $0x30] sm:$0xff]
        %v1781 = vld [vmem:[#allocation3 + $0x40] sm:$0xff]
        %v1782 = vld [vmem:[#allocation3 + $0x50] sm:$0xff]
        %v1783 = vld [vmem:[#allocation3 + $0x60] sm:$0xff]
        %v1784 = vld [vmem:[#allocation3 + $0x70] sm:$0xff]
        %v1785 = vpack.c.bf16 %v1778, %v1777
        %v1786 = vpack.c.bf16 %v1780, %v1779
        %v1787 = vpack.c.bf16 %v1782, %v1781
        %v1788 = vpack.c.bf16 %v1784, %v1783
        %v1789 = vld [vmem:[#allocation9] sm:$0xf]
        %v1790 = vld [vmem:[#allocation9 + $0x4] sm:$0xf]
        %v1791 = vld [vmem:[#allocation9 + $0x8] sm:$0xf]
        %v1792 = vld [vmem:[#allocation9 + $0xc] sm:$0xf]
        %v1793 = vld [vmem:[#allocation9 + $0x10] sm:$0xf]
        %v1794 = vld [vmem:[#allocation9 + $0x14] sm:$0xf]
        %v1795 = vld [vmem:[#allocation9 + $0x18] sm:$0xf]
        %v1796 = vld [vmem:[#allocation9 + $0x1c] sm:$0xf]
        %v1797 = vld [vmem:[#allocation9 + $0x20] sm:$0xf]
        %v1798 = vld [vmem:[#allocation9 + $0x24] sm:$0xf]
        %v1799 = vld [vmem:[#allocation9 + $0x28] sm:$0xf]
        %v1800 = vld [vmem:[#allocation9 + $0x2c] sm:$0xf]
        %v1801 = vld [vmem:[#allocation9 + $0x30] sm:$0xf]
        %v1802 = vld [vmem:[#allocation9 + $0x34] sm:$0xf]
        %v1803 = vld [vmem:[#allocation9 + $0x38] sm:$0xf]
        %v1804 = vld [vmem:[#allocation9 + $0x3c] sm:$0xf]
        %v1805 = vld [vmem:[#allocation3 + $0x1] sm:$0xff]
        %v1806 = vld [vmem:[#allocation3 + $0x11] sm:$0xff]
        %v1807 = vld [vmem:[#allocation3 + $0x21] sm:$0xff]
        %v1808 = vld [vmem:[#allocation3 + $0x31] sm:$0xff]
        %v1809 = vld [vmem:[#allocation3 + $0x41] sm:$0xff]
        %v1810 = vld [vmem:[#allocation3 + $0x51] sm:$0xff]
        %v1811 = vld [vmem:[#allocation3 + $0x61] sm:$0xff]
        %v1812 = vld [vmem:[#allocation3 + $0x71] sm:$0xff]
        %v1813 = vpack.c.bf16 %v1806, %v1805
        %v1814 = vpack.c.bf16 %v1808, %v1807
        %v1815 = vpack.c.bf16 %v1810, %v1809
        %v1816 = vpack.c.bf16 %v1812, %v1811
        %v1817 = vld [vmem:[#allocation9 + $0x40] sm:$0xf]
        %v1818 = vld [vmem:[#allocation9 + $0x44] sm:$0xf]
        %v1819 = vld [vmem:[#allocation9 + $0x48] sm:$0xf]
        %v1820 = vld [vmem:[#allocation9 + $0x4c] sm:$0xf]
        %v1821 = vld [vmem:[#allocation9 + $0x50] sm:$0xf]
        %v1822 = vld [vmem:[#allocation9 + $0x54] sm:$0xf]
        %v1823 = vld [vmem:[#allocation9 + $0x58] sm:$0xf]
        %v1824 = vld [vmem:[#allocation9 + $0x5c] sm:$0xf]
        %v1825 = vld [vmem:[#allocation9 + $0x60] sm:$0xf]
        %v1826 = vld [vmem:[#allocation9 + $0x64] sm:$0xf]
        %v1827 = vld [vmem:[#allocation9 + $0x68] sm:$0xf]
        %v1828 = vld [vmem:[#allocation9 + $0x6c] sm:$0xf]
        %v1829 = vld [vmem:[#allocation9 + $0x70] sm:$0xf]
        %v1830 = vld [vmem:[#allocation9 + $0x74] sm:$0xf]
        %v1831 = vld [vmem:[#allocation9 + $0x78] sm:$0xf]
        %v1832 = vld [vmem:[#allocation9 + $0x7c] sm:$0xf]
        %v1849 = vunpack.c.l.b16 %v1817
        %v1850 = vunpack.c.l.b16 %v1818
        %v1851 = vunpack.c.l.b16 %v1819
        %v1852 = vunpack.c.l.b16 %v1820
        %v1853 = vunpack.c.l.b16 %v1821
        %v1854 = vunpack.c.l.b16 %v1822
        %v1855 = vunpack.c.l.b16 %v1823
        %v1856 = vunpack.c.l.b16 %v1824
        %v1857 = vunpack.c.l.b16 %v1825
        %v1858 = vunpack.c.l.b16 %v1826
        %v1859 = vunpack.c.l.b16 %v1827
        %v1860 = vunpack.c.l.b16 %v1828
        %v1861 = vunpack.c.l.b16 %v1829
        %v1862 = vunpack.c.l.b16 %v1830
        %v1863 = vunpack.c.l.b16 %v1831
        %v1864 = vunpack.c.l.b16 %v1832
        %v1865 = vpack.c.b16 %v1850, %v1849
        %v1866 = vpack.c.b16 %v1852, %v1851
        %v1867 = vpack.c.b16 %v1854, %v1853
        %v1868 = vpack.c.b16 %v1856, %v1855
        %v1869 = vpack.c.b16 %v1858, %v1857
        %v1870 = vpack.c.b16 %v1860, %v1859
        %v1871 = vpack.c.b16 %v1862, %v1861
        %v1872 = vpack.c.b16 %v1864, %v1863
        %1881 = vmatprep.subr.bf16.mxu0 0
        %1882 = vmatpush1.bf16.msra.mxu0 %v1865
        %1883 = vmatprep.subr.bf16.mxu0 0
        %1884 = vmatpush1.bf16.msra.mxu0 %v1866
        %1885 = vmatprep.subr.bf16.mxu0 0
        %1886 = vmatpush1.bf16.msra.mxu0 %v1867
        %1887 = vmatprep.subr.bf16.mxu0 0
        %1888 = vmatpush1.bf16.msra.mxu0 %v1868
        %1889 = vmatprep.subr.bf16.mxu0 0
        %1890 = vmatpush1.bf16.msra.mxu0 %v1869
        %1891 = vmatprep.subr.bf16.mxu0 0
        %1892 = vmatpush1.bf16.msra.mxu0 %v1870
        %1893 = vmatprep.subr.bf16.mxu0 0
        %1894 = vmatpush1.bf16.msra.mxu0 %v1871
        %1895 = vmatprep.subr.bf16.mxu0 0
        %1896 = vmatpush1.bf16.msra.mxu0 %v1872
        %1897 = vmatprep.subr.bf16.mxu0 0
        %1898 = vmatpush1.bf16.msra.mxu0 0
        %1899 = vmatprep.subr.bf16.mxu0 0
        %1900 = vmatpush1.bf16.msra.mxu0 0
        %1901 = vmatprep.subr.bf16.mxu0 0
        %1902 = vmatpush1.bf16.msra.mxu0 0
        %1903 = vmatprep.subr.bf16.mxu0 0
        %1904 = vmatpush1.bf16.msra.mxu0 0
        %1905 = vmatprep.subr.bf16.mxu0 0
        %1906 = vmatpush1.bf16.msra.mxu0 0
        %1907 = vmatprep.subr.bf16.mxu0 0
        %1908 = vmatpush1.bf16.msra.mxu0 0
        %1909 = vmatprep.subr.bf16.mxu0 0
        %1910 = vmatpush1.bf16.msra.mxu0 0
        %1911 = vmatprep.subr.bf16.mxu0 0
        %1912 = vmatpush1.bf16.msra.mxu0 0
        %1913 = vmatprep.mubr.bf16.mxu0 0
        %1914 = vmatmul.mubr.bf16.gmra.mrb[0].mxu0 %v1813
        %v1915 = vpop.f32.mrb[0].mxu0
        %v1916 = vadd.f32 0.0, %v1915
        %v1917 = vpop.f32.mrb[0].mxu0
        %v1918 = vpop.f32.mrb[0].mxu0
        %v1919 = vadd.f32 0.0, %v1918
        %v1920 = vpop.f32.mrb[0].mxu0
        %1921 = vmatprep.mubr.bf16.mxu0 0
        %1922 = vmatmul.mubr.bf16.gmra.mrb[0].mxu0 %v1814
        %v1923 = vpop.f32.mrb[0].mxu0
        %v1924 = vadd.f32 0.0, %v1923
        %v1925 = vpop.f32.mrb[0].mxu0
        %v1926 = vpop.f32.mrb[0].mxu0
        %v1927 = vadd.f32 0.0, %v1926
        %v1928 = vpop.f32.mrb[0].mxu0
        %1929 = vmatprep.mubr.bf16.mxu0 0
        %1930 = vmatmul.mubr.bf16.gmra.mrb[0].mxu0 %v1815
        %v1931 = vpop.f32.mrb[0].mxu0
        %v1932 = vadd.f32 0.0, %v1931
        %v1933 = vpop.f32.mrb[0].mxu0
        %v1934 = vpop.f32.mrb[0].mxu0
        %v1935 = vadd.f32 0.0, %v1934
        %v1936 = vpop.f32.mrb[0].mxu0
        %1937 = vmatprep.mubr.bf16.mxu0 0
        %1938 = vmatmul.mubr.bf16.gmra.mrb[0].mxu0 %v1816
        %v1939 = vpop.f32.mrb[0].mxu0
        %v1940 = vadd.f32 0.0, %v1939
        %v1941 = vpop.f32.mrb[0].mxu0
        %v1942 = vpop.f32.mrb[0].mxu0
        %v1943 = vadd.f32 0.0, %v1942
        %v1944 = vpop.f32.mrb[0].mxu0
        %1945 = vdwg.mxu0
        %v1962 = vunpack.c.l.b16 %v1789
        %v1963 = vunpack.c.l.b16 %v1790
        %v1964 = vunpack.c.l.b16 %v1791
        %v1965 = vunpack.c.l.b16 %v1792
        %v1966 = vunpack.c.l.b16 %v1793
        %v1967 = vunpack.c.l.b16 %v1794
        %v1968 = vunpack.c.l.b16 %v1795
        %v1969 = vunpack.c.l.b16 %v1796
        %v1970 = vunpack.c.l.b16 %v1797
        %v1971 = vunpack.c.l.b16 %v1798
        %v1972 = vunpack.c.l.b16 %v1799
        %v1973 = vunpack.c.l.b16 %v1800
        %v1974 = vunpack.c.l.b16 %v1801
        %v1975 = vunpack.c.l.b16 %v1802
        %v1976 = vunpack.c.l.b16 %v1803
        %v1977 = vunpack.c.l.b16 %v1804
        %v1978 = vpack.c.b16 %v1963, %v1962
        %v1979 = vpack.c.b16 %v1965, %v1964
        %v1980 = vpack.c.b16 %v1967, %v1966
        %v1981 = vpack.c.b16 %v1969, %v1968
        %v1982 = vpack.c.b16 %v1971, %v1970
        %v1983 = vpack.c.b16 %v1973, %v1972
        %v1984 = vpack.c.b16 %v1975, %v1974
        %v1985 = vpack.c.b16 %v1977, %v1976
        %1994 = vmatprep.subr.bf16.mxu0 0
        %1995 = vmatpush1.bf16.msra.mxu0 %v1978
        %1996 = vmatprep.subr.bf16.mxu0 0
        %1997 = vmatpush1.bf16.msra.mxu0 %v1979
        %1998 = vmatprep.subr.bf16.mxu0 0
        %1999 = vmatpush1.bf16.msra.mxu0 %v1980
        %2000 = vmatprep.subr.bf16.mxu0 0
        %2001 = vmatpush1.bf16.msra.mxu0 %v1981
        %2002 = vmatprep.subr.bf16.mxu0 0
        %2003 = vmatpush1.bf16.msra.mxu0 %v1982
        %2004 = vmatprep.subr.bf16.mxu0 0
        %2005 = vmatpush1.bf16.msra.mxu0 %v1983
        %2006 = vmatprep.subr.bf16.mxu0 0
        %2007 = vmatpush1.bf16.msra.mxu0 %v1984
        %2008 = vmatprep.subr.bf16.mxu0 0
        %2009 = vmatpush1.bf16.msra.mxu0 %v1985
        %2010 = vmatprep.subr.bf16.mxu0 0
        %2011 = vmatpush1.bf16.msra.mxu0 0
        %2012 = vmatprep.subr.bf16.mxu0 0
        %2013 = vmatpush1.bf16.msra.mxu0 0
        %2014 = vmatprep.subr.bf16.mxu0 0
        %2015 = vmatpush1.bf16.msra.mxu0 0
        %2016 = vmatprep.subr.bf16.mxu0 0
        %2017 = vmatpush1.bf16.msra.mxu0 0
        %2018 = vmatprep.subr.bf16.mxu0 0
        %2019 = vmatpush1.bf16.msra.mxu0 0
        %2020 = vmatprep.subr.bf16.mxu0 0
        %2021 = vmatpush1.bf16.msra.mxu0 0
        %2022 = vmatprep.subr.bf16.mxu0 0
        %2023 = vmatpush1.bf16.msra.mxu0 0
        %2024 = vmatprep.subr.bf16.mxu0 0
        %2025 = vmatpush1.bf16.msra.mxu0 0
        %2026 = vmatprep.mubr.bf16.mxu0 0
        %2027 = vmatmul.mubr.bf16.gmra.mrb[0].mxu0 %v1785
        %v2028 = vpop.f32.mrb[0].mxu0
        %v2029 = vadd.f32 %v1916, %v2028
        %v2030 = vpop.f32.mrb[0].mxu0
        %v2031 = vpop.f32.mrb[0].mxu0
        %v2032 = vadd.f32 %v1919, %v2031
        %v2033 = vpop.f32.mrb[0].mxu0
        %2034 = vmatprep.mubr.bf16.mxu0 0
        %2035 = vmatmul.mubr.bf16.gmra.mrb[0].mxu0 %v1786
        %v2036 = vpop.f32.mrb[0].mxu0
        %v2037 = vadd.f32 %v1924, %v2036
        %v2038 = vpop.f32.mrb[0].mxu0
        %v2039 = vpop.f32.mrb[0].mxu0
        %v2040 = vadd.f32 %v1927, %v2039
        %v2041 = vpop.f32.mrb[0].mxu0
        %2042 = vmatprep.mubr.bf16.mxu0 0
        %2043 = vmatmul.mubr.bf16.gmra.mrb[0].mxu0 %v1787
        %v2044 = vpop.f32.mrb[0].mxu0
        %v2045 = vadd.f32 %v1932, %v2044
        %v2046 = vpop.f32.mrb[0].mxu0
        %v2047 = vpop.f32.mrb[0].mxu0
        %v2048 = vadd.f32 %v1935, %v2047
        %v2049 = vpop.f32.mrb[0].mxu0
        %2050 = vmatprep.mubr.bf16.mxu0 0
        %2051 = vmatmul.mubr.bf16.gmra.mrb[0].mxu0 %v1788
        %v2052 = vpop.f32.mrb[0].mxu0
        %v2053 = vadd.f32 %v1940, %v2052
        %v2054 = vpop.f32.mrb[0].mxu0
        %v2055 = vpop.f32.mrb[0].mxu0
        %v2056 = vadd.f32 %v1943, %v2055
        %v2057 = vpop.f32.mrb[0].mxu0
        %2058 = vdwg.mxu0
        %v2059 = vld [vmem:[#allocation3 + $0x2] sm:$0xff]
        %v2060 = vld [vmem:[#allocation3 + $0x12] sm:$0xff]
        %v2061 = vld [vmem:[#allocation3 + $0x22] sm:$0xff]
        %v2062 = vld [vmem:[#allocation3 + $0x32] sm:$0xff]
        %v2063 = vld [vmem:[#allocation3 + $0x42] sm:$0xff]
        %v2064 = vld [vmem:[#allocation3 + $0x52] sm:$0xff]
        %v2065 = vld [vmem:[#allocation3 + $0x62] sm:$0xff]
        %v2066 = vld [vmem:[#allocation3 + $0x72] sm:$0xff]
        %v2067 = vpack.c.bf16 %v2060, %v2059
        %v2068 = vpack.c.bf16 %v2062, %v2061
        %v2069 = vpack.c.bf16 %v2064, %v2063
        %v2070 = vpack.c.bf16 %v2066, %v2065
        %v2071 = vld [vmem:[#allocation9 + $0x80] sm:$0xf]
        %v2072 = vld [vmem:[#allocation9 + $0x84] sm:$0xf]
        %v2073 = vld [vmem:[#allocation9 + $0x88] sm:$0xf]
        %v2074 = vld [vmem:[#allocation9 + $0x8c] sm:$0xf]
        %v2075 = vld [vmem:[#allocation9 + $0x90] sm:$0xf]
        %v2076 = vld [vmem:[#allocation9 + $0x94] sm:$0xf]
        %v2077 = vld [vmem:[#allocation9 + $0x98] sm:$0xf]
        %v2078 = vld [vmem:[#allocation9 + $0x9c] sm:$0xf]
        %v2079 = vld [vmem:[#allocation9 + $0xa0] sm:$0xf]
        %v2080 = vld [vmem:[#allocation9 + $0xa4] sm:$0xf]
        %v2081 = vld [vmem:[#allocation9 + $0xa8] sm:$0xf]
        %v2082 = vld [vmem:[#allocation9 + $0xac] sm:$0xf]
        %v2083 = vld [vmem:[#allocation9 + $0xb0] sm:$0xf]
        %v2084 = vld [vmem:[#allocation9 + $0xb4] sm:$0xf]
        %v2085 = vld [vmem:[#allocation9 + $0xb8] sm:$0xf]
        %v2086 = vld [vmem:[#allocation9 + $0xbc] sm:$0xf]
        %v2103 = vunpack.c.l.b16 %v2071
        %v2104 = vunpack.c.l.b16 %v2072
        %v2105 = vunpack.c.l.b16 %v2073
        %v2106 = vunpack.c.l.b16 %v2074
        %v2107 = vunpack.c.l.b16 %v2075
        %v2108 = vunpack.c.l.b16 %v2076
        %v2109 = vunpack.c.l.b16 %v2077
        %v2110 = vunpack.c.l.b16 %v2078
        %v2111 = vunpack.c.l.b16 %v2079
        %v2112 = vunpack.c.l.b16 %v2080
        %v2113 = vunpack.c.l.b16 %v2081
        %v2114 = vunpack.c.l.b16 %v2082
        %v2115 = vunpack.c.l.b16 %v2083
        %v2116 = vunpack.c.l.b16 %v2084
        %v2117 = vunpack.c.l.b16 %v2085
        %v2118 = vunpack.c.l.b16 %v2086
        %v2119 = vpack.c.b16 %v2104, %v2103
        %v2120 = vpack.c.b16 %v2106, %v2105
        %v2121 = vpack.c.b16 %v2108, %v2107
        %v2122 = vpack.c.b16 %v2110, %v2109
        %v2123 = vpack.c.b16 %v2112, %v2111
        %v2124 = vpack.c.b16 %v2114, %v2113
        %v2125 = vpack.c.b16 %v2116, %v2115
        %v2126 = vpack.c.b16 %v2118, %v2117
        %2135 = vmatprep.subr.bf16.mxu0 0
        %2136 = vmatpush1.bf16.msra.mxu0 %v2119
        %2137 = vmatprep.subr.bf16.mxu0 0
        %2138 = vmatpush1.bf16.msra.mxu0 %v2120
        %2139 = vmatprep.subr.bf16.mxu0 0
        %2140 = vmatpush1.bf16.msra.mxu0 %v2121
        %2141 = vmatprep.subr.bf16.mxu0 0
        %2142 = vmatpush1.bf16.msra.mxu0 %v2122
        %2143 = vmatprep.subr.bf16.mxu0 0
        %2144 = vmatpush1.bf16.msra.mxu0 %v2123
        %2145 = vmatprep.subr.bf16.mxu0 0
        %2146 = vmatpush1.bf16.msra.mxu0 %v2124
        %2147 = vmatprep.subr.bf16.mxu0 0
        %2148 = vmatpush1.bf16.msra.mxu0 %v2125
        %2149 = vmatprep.subr.bf16.mxu0 0
        %2150 = vmatpush1.bf16.msra.mxu0 %v2126
        %2151 = vmatprep.subr.bf16.mxu0 0
        %2152 = vmatpush1.bf16.msra.mxu0 0
        %2153 = vmatprep.subr.bf16.mxu0 0
        %2154 = vmatpush1.bf16.msra.mxu0 0
        %2155 = vmatprep.subr.bf16.mxu0 0
        %2156 = vmatpush1.bf16.msra.mxu0 0
        %2157 = vmatprep.subr.bf16.mxu0 0
        %2158 = vmatpush1.bf16.msra.mxu0 0
        %2159 = vmatprep.subr.bf16.mxu0 0
        %2160 = vmatpush1.bf16.msra.mxu0 0
        %2161 = vmatprep.subr.bf16.mxu0 0
        %2162 = vmatpush1.bf16.msra.mxu0 0
        %2163 = vmatprep.subr.bf16.mxu0 0
        %2164 = vmatpush1.bf16.msra.mxu0 0
        %2165 = vmatprep.subr.bf16.mxu0 0
        %2166 = vmatpush1.bf16.msra.mxu0 0
        %2167 = vmatprep.mubr.bf16.mxu0 0
        %2168 = vmatmul.mubr.bf16.gmra.mrb[0].mxu0 %v2067
        %v2169 = vpop.f32.mrb[0].mxu0
        %v2170 = vadd.f32 0.0, %v2169
        %v2171 = vpop.f32.mrb[0].mxu0
        %v2172 = vpop.f32.mrb[0].mxu0
        %v2173 = vadd.f32 0.0, %v2172
        %v2174 = vpop.f32.mrb[0].mxu0
        %2175 = vmatprep.mubr.bf16.mxu0 0
        %2176 = vmatmul.mubr.bf16.gmra.mrb[0].mxu0 %v2068
        %v2177 = vpop.f32.mrb[0].mxu0
        %v2178 = vadd.f32 0.0, %v2177
        %v2179 = vpop.f32.mrb[0].mxu0
        %v2180 = vpop.f32.mrb[0].mxu0
        %v2181 = vadd.f32 0.0, %v2180
        %v2182 = vpop.f32.mrb[0].mxu0
        %2183 = vmatprep.mubr.bf16.mxu0 0
        %2184 = vmatmul.mubr.bf16.gmra.mrb[0].mxu0 %v2069
        %v2185 = vpop.f32.mrb[0].mxu0
        %v2186 = vadd.f32 0.0, %v2185
        %v2187 = vpop.f32.mrb[0].mxu0
        %v2188 = vpop.f32.mrb[0].mxu0
        %v2189 = vadd.f32 0.0, %v2188
        %v2190 = vpop.f32.mrb[0].mxu0
        %2191 = vmatprep.mubr.bf16.mxu0 0
        %2192 = vmatmul.mubr.bf16.gmra.mrb[0].mxu0 %v2070
        %v2193 = vpop.f32.mrb[0].mxu0
        %v2194 = vadd.f32 0.0, %v2193
        %v2195 = vpop.f32.mrb[0].mxu0
        %v2196 = vpop.f32.mrb[0].mxu0
        %v2197 = vadd.f32 0.0, %v2196
        %v2198 = vpop.f32.mrb[0].mxu0
        %2199 = vdwg.mxu0
        %v2200 = vadd.f32 %v2029, %v2170
        %v2201 = vadd.f32 %v2032, %v2173
        %v2202 = vadd.f32 %v2037, %v2178
        %v2203 = vadd.f32 %v2040, %v2181
        %v2204 = vadd.f32 %v2045, %v2186
        %v2205 = vadd.f32 %v2048, %v2189
        %v2206 = vadd.f32 %v2053, %v2194
        %v2207 = vadd.f32 %v2056, %v2197
        %v2208 = vld [vmem:[%s1768] sm:$0xff]
        %v2209 = vld [vmem:[%s1768 + $0x10] sm:$0xff]
        %v2210 = vld [vmem:[%s1768 + $0x20] sm:$0xff]
        %v2211 = vld [vmem:[%s1768 + $0x30] sm:$0xff]
        %v2212 = vld [vmem:[%s1768 + $0x40] sm:$0xff]
        %v2213 = vld [vmem:[%s1768 + $0x50] sm:$0xff]
        %v2214 = vld [vmem:[%s1768 + $0x60] sm:$0xff]
        %v2215 = vld [vmem:[%s1768 + $0x70] sm:$0xff]
        %v2216 = vpack.c.bf16 %v2209, %v2208
        %v2217 = vpack.c.bf16 %v2211, %v2210
        %v2218 = vpack.c.bf16 %v2213, %v2212
        %v2219 = vpack.c.bf16 %v2215, %v2214
        %v2220 = vld [vmem:[#allocation9 + $0xc0] sm:$0xf]
        %v2221 = vld [vmem:[#allocation9 + $0xc4] sm:$0xf]
        %v2222 = vld [vmem:[#allocation9 + $0xc8] sm:$0xf]
        %v2223 = vld [vmem:[#allocation9 + $0xcc] sm:$0xf]
        %v2224 = vld [vmem:[#allocation9 + $0xd0] sm:$0xf]
        %v2225 = vld [vmem:[#allocation9 + $0xd4] sm:$0xf]
        %v2226 = vld [vmem:[#allocation9 + $0xd8] sm:$0xf]
        %v2227 = vld [vmem:[#allocation9 + $0xdc] sm:$0xf]
        %v2228 = vld [vmem:[#allocation9 + $0xe0] sm:$0xf]
        %v2229 = vld [vmem:[#allocation9 + $0xe4] sm:$0xf]
        %v2230 = vld [vmem:[#allocation9 + $0xe8] sm:$0xf]
        %v2231 = vld [vmem:[#allocation9 + $0xec] sm:$0xf]
        %v2232 = vld [vmem:[#allocation9 + $0xf0] sm:$0xf]
        %v2233 = vld [vmem:[#allocation9 + $0xf4] sm:$0xf]
        %v2234 = vld [vmem:[#allocation9 + $0xf8] sm:$0xf]
        %v2235 = vld [vmem:[#allocation9 + $0xfc] sm:$0xf]
        %v2252 = vunpack.c.l.b16 %v2220
        %v2253 = vunpack.c.l.b16 %v2221
        %v2254 = vunpack.c.l.b16 %v2222
        %v2255 = vunpack.c.l.b16 %v2223
        %v2256 = vunpack.c.l.b16 %v2224
        %v2257 = vunpack.c.l.b16 %v2225
        %v2258 = vunpack.c.l.b16 %v2226
        %v2259 = vunpack.c.l.b16 %v2227
        %v2260 = vunpack.c.l.b16 %v2228
        %v2261 = vunpack.c.l.b16 %v2229
        %v2262 = vunpack.c.l.b16 %v2230
        %v2263 = vunpack.c.l.b16 %v2231
        %v2264 = vunpack.c.l.b16 %v2232
        %v2265 = vunpack.c.l.b16 %v2233
        %v2266 = vunpack.c.l.b16 %v2234
        %v2267 = vunpack.c.l.b16 %v2235
        %v2268 = vpack.c.b16 %v2253, %v2252
        %v2269 = vpack.c.b16 %v2255, %v2254
        %v2270 = vpack.c.b16 %v2257, %v2256
        %v2271 = vpack.c.b16 %v2259, %v2258
        %v2272 = vpack.c.b16 %v2261, %v2260
        %v2273 = vpack.c.b16 %v2263, %v2262
        %v2274 = vpack.c.b16 %v2265, %v2264
        %v2275 = vpack.c.b16 %v2267, %v2266
        %2284 = vmatprep.subr.bf16.mxu0 0
        %2285 = vmatpush1.bf16.msra.mxu0 %v2268
        %2286 = vmatprep.subr.bf16.mxu0 0
        %2287 = vmatpush1.bf16.msra.mxu0 %v2269
        %2288 = vmatprep.subr.bf16.mxu0 0
        %2289 = vmatpush1.bf16.msra.mxu0 %v2270
        %2290 = vmatprep.subr.bf16.mxu0 0
        %2291 = vmatpush1.bf16.msra.mxu0 %v2271
        %2292 = vmatprep.subr.bf16.mxu0 0
        %2293 = vmatpush1.bf16.msra.mxu0 %v2272
        %2294 = vmatprep.subr.bf16.mxu0 0
        %2295 = vmatpush1.bf16.msra.mxu0 %v2273
        %2296 = vmatprep.subr.bf16.mxu0 0
        %2297 = vmatpush1.bf16.msra.mxu0 %v2274
        %2298 = vmatprep.subr.bf16.mxu0 0
        %2299 = vmatpush1.bf16.msra.mxu0 %v2275
        %2300 = vmatprep.subr.bf16.mxu0 0
        %2301 = vmatpush1.bf16.msra.mxu0 0
        %2302 = vmatprep.subr.bf16.mxu0 0
        %2303 = vmatpush1.bf16.msra.mxu0 0
        %2304 = vmatprep.subr.bf16.mxu0 0
        %2305 = vmatpush1.bf16.msra.mxu0 0
        %2306 = vmatprep.subr.bf16.mxu0 0
        %2307 = vmatpush1.bf16.msra.mxu0 0
        %2308 = vmatprep.subr.bf16.mxu0 0
        %2309 = vmatpush1.bf16.msra.mxu0 0
        %2310 = vmatprep.subr.bf16.mxu0 0
        %2311 = vmatpush1.bf16.msra.mxu0 0
        %2312 = vmatprep.subr.bf16.mxu0 0
        %2313 = vmatpush1.bf16.msra.mxu0 0
        %2314 = vmatprep.subr.bf16.mxu0 0
        %2315 = vmatpush1.bf16.msra.mxu0 0
        %2316 = vmatprep.mubr.bf16.mxu0 0
        %2317 = vmatmul.mubr.bf16.gmra.mrb[0].mxu0 %v2216
        %v2318 = vpop.f32.mrb[0].mxu0
        %v2319 = vadd.f32 0.0, %v2318
        %v2320 = vpop.f32.mrb[0].mxu0
        %v2321 = vpop.f32.mrb[0].mxu0
        %v2322 = vadd.f32 0.0, %v2321
        %v2323 = vpop.f32.mrb[0].mxu0
        %2324 = vmatprep.mubr.bf16.mxu0 0
        %2325 = vmatmul.mubr.bf16.gmra.mrb[0].mxu0 %v2217
        %v2326 = vpop.f32.mrb[0].mxu0
        %v2327 = vadd.f32 0.0, %v2326
        %v2328 = vpop.f32.mrb[0].mxu0
        %v2329 = vpop.f32.mrb[0].mxu0
        %v2330 = vadd.f32 0.0, %v2329
        %v2331 = vpop.f32.mrb[0].mxu0
        %2332 = vmatprep.mubr.bf16.mxu0 0
        %2333 = vmatmul.mubr.bf16.gmra.mrb[0].mxu0 %v2218
        %v2334 = vpop.f32.mrb[0].mxu0
        %v2335 = vadd.f32 0.0, %v2334
        %v2336 = vpop.f32.mrb[0].mxu0
        %v2337 = vpop.f32.mrb[0].mxu0
        %v2338 = vadd.f32 0.0, %v2337
        %v2339 = vpop.f32.mrb[0].mxu0
        %2340 = vmatprep.mubr.bf16.mxu0 0
        %2341 = vmatmul.mubr.bf16.gmra.mrb[0].mxu0 %v2219
        %v2342 = vpop.f32.mrb[0].mxu0
        %v2343 = vadd.f32 0.0, %v2342
        %v2344 = vpop.f32.mrb[0].mxu0
        %v2345 = vpop.f32.mrb[0].mxu0
        %v2346 = vadd.f32 0.0, %v2345
        %v2347 = vpop.f32.mrb[0].mxu0
        %2348 = vdwg.mxu0
        %v2349 = vadd.f32 %v2200, %v2319
        %v2350 = vadd.f32 %v2201, %v2322
        %v2351 = vadd.f32 %v2202, %v2327
        %v2352 = vadd.f32 %v2203, %v2330
        %v2353 = vadd.f32 %v2204, %v2335
        %v2354 = vadd.f32 %v2205, %v2338
        %v2355 = vadd.f32 %v2206, %v2343
        %v2356 = vadd.f32 %v2207, %v2346
        %v2357 = vld [vmem:[%s1768 + $0x1] sm:$0xff]
        %v2358 = vld [vmem:[%s1768 + $0x11] sm:$0xff]
        %v2359 = vld [vmem:[%s1768 + $0x21] sm:$0xff]
        %v2360 = vld [vmem:[%s1768 + $0x31] sm:$0xff]
        %v2361 = vld [vmem:[%s1768 + $0x41] sm:$0xff]
        %v2362 = vld [vmem:[%s1768 + $0x51] sm:$0xff]
        %v2363 = vld [vmem:[%s1768 + $0x61] sm:$0xff]
        %v2364 = vld [vmem:[%s1768 + $0x71] sm:$0xff]
        %v2365 = vpack.c.bf16 %v2358, %v2357
        %v2366 = vpack.c.bf16 %v2360, %v2359
        %v2367 = vpack.c.bf16 %v2362, %v2361
        %v2368 = vpack.c.bf16 %v2364, %v2363
        %v2369 = vld [vmem:[#allocation9 + $0x100] sm:$0xf]
        %v2370 = vld [vmem:[#allocation9 + $0x104] sm:$0xf]
        %v2371 = vld [vmem:[#allocation9 + $0x108] sm:$0xf]
        %v2372 = vld [vmem:[#allocation9 + $0x10c] sm:$0xf]
        %v2373 = vld [vmem:[#allocation9 + $0x110] sm:$0xf]
        %v2374 = vld [vmem:[#allocation9 + $0x114] sm:$0xf]
        %v2375 = vld [vmem:[#allocation9 + $0x118] sm:$0xf]
        %v2376 = vld [vmem:[#allocation9 + $0x11c] sm:$0xf]
        %v2377 = vld [vmem:[#allocation9 + $0x120] sm:$0xf]
        %v2378 = vld [vmem:[#allocation9 + $0x124] sm:$0xf]
        %v2379 = vld [vmem:[#allocation9 + $0x128] sm:$0xf]
        %v2380 = vld [vmem:[#allocation9 + $0x12c] sm:$0xf]
        %v2381 = vld [vmem:[#allocation9 + $0x130] sm:$0xf]
        %v2382 = vld [vmem:[#allocation9 + $0x134] sm:$0xf]
        %v2383 = vld [vmem:[#allocation9 + $0x138] sm:$0xf]
        %v2384 = vld [vmem:[#allocation9 + $0x13c] sm:$0xf]
        %v2401 = vunpack.c.l.b16 %v2369
        %v2402 = vunpack.c.l.b16 %v2370
        %v2403 = vunpack.c.l.b16 %v2371
        %v2404 = vunpack.c.l.b16 %v2372
        %v2405 = vunpack.c.l.b16 %v2373
        %v2406 = vunpack.c.l.b16 %v2374
        %v2407 = vunpack.c.l.b16 %v2375
        %v2408 = vunpack.c.l.b16 %v2376
        %v2409 = vunpack.c.l.b16 %v2377
        %v2410 = vunpack.c.l.b16 %v2378
        %v2411 = vunpack.c.l.b16 %v2379
        %v2412 = vunpack.c.l.b16 %v2380
        %v2413 = vunpack.c.l.b16 %v2381
        %v2414 = vunpack.c.l.b16 %v2382
        %v2415 = vunpack.c.l.b16 %v2383
        %v2416 = vunpack.c.l.b16 %v2384
        %v2417 = vpack.c.b16 %v2402, %v2401
        %v2418 = vpack.c.b16 %v2404, %v2403
        %v2419 = vpack.c.b16 %v2406, %v2405
        %v2420 = vpack.c.b16 %v2408, %v2407
        %v2421 = vpack.c.b16 %v2410, %v2409
        %v2422 = vpack.c.b16 %v2412, %v2411
        %v2423 = vpack.c.b16 %v2414, %v2413
        %v2424 = vpack.c.b16 %v2416, %v2415
        %2433 = vmatprep.subr.bf16.mxu0 0
        %2434 = vmatpush1.bf16.msra.mxu0 %v2417
        %2435 = vmatprep.subr.bf16.mxu0 0
        %2436 = vmatpush1.bf16.msra.mxu0 %v2418
        %2437 = vmatprep.subr.bf16.mxu0 0
        %2438 = vmatpush1.bf16.msra.mxu0 %v2419
        %2439 = vmatprep.subr.bf16.mxu0 0
        %2440 = vmatpush1.bf16.msra.mxu0 %v2420
        %2441 = vmatprep.subr.bf16.mxu0 0
        %2442 = vmatpush1.bf16.msra.mxu0 %v2421
        %2443 = vmatprep.subr.bf16.mxu0 0
        %2444 = vmatpush1.bf16.msra.mxu0 %v2422
        %2445 = vmatprep.subr.bf16.mxu0 0
        %2446 = vmatpush1.bf16.msra.mxu0 %v2423
        %2447 = vmatprep.subr.bf16.mxu0 0
        %2448 = vmatpush1.bf16.msra.mxu0 %v2424
        %2449 = vmatprep.subr.bf16.mxu0 0
        %2450 = vmatpush1.bf16.msra.mxu0 0
        %2451 = vmatprep.subr.bf16.mxu0 0
        %2452 = vmatpush1.bf16.msra.mxu0 0
        %2453 = vmatprep.subr.bf16.mxu0 0
        %2454 = vmatpush1.bf16.msra.mxu0 0
        %2455 = vmatprep.subr.bf16.mxu0 0
        %2456 = vmatpush1.bf16.msra.mxu0 0
        %2457 = vmatprep.subr.bf16.mxu0 0
        %2458 = vmatpush1.bf16.msra.mxu0 0
        %2459 = vmatprep.subr.bf16.mxu0 0
        %2460 = vmatpush1.bf16.msra.mxu0 0
        %2461 = vmatprep.subr.bf16.mxu0 0
        %2462 = vmatpush1.bf16.msra.mxu0 0
        %2463 = vmatprep.subr.bf16.mxu0 0
        %2464 = vmatpush1.bf16.msra.mxu0 0
        %2465 = vmatprep.mubr.bf16.mxu0 0
        %2466 = vmatmul.mubr.bf16.gmra.mrb[0].mxu0 %v2365
        %v2467 = vpop.f32.mrb[0].mxu0
        %v2468 = vadd.f32 0.0, %v2467
        %v2469 = vpop.f32.mrb[0].mxu0
        %v2470 = vpop.f32.mrb[0].mxu0
        %v2471 = vadd.f32 0.0, %v2470
        %v2472 = vpop.f32.mrb[0].mxu0
        %2473 = vmatprep.mubr.bf16.mxu0 0
        %2474 = vmatmul.mubr.bf16.gmra.mrb[0].mxu0 %v2366
        %v2475 = vpop.f32.mrb[0].mxu0
        %v2476 = vadd.f32 0.0, %v2475
        %v2477 = vpop.f32.mrb[0].mxu0
        %v2478 = vpop.f32.mrb[0].mxu0
        %v2479 = vadd.f32 0.0, %v2478
        %v2480 = vpop.f32.mrb[0].mxu0
        %2481 = vmatprep.mubr.bf16.mxu0 0
        %2482 = vmatmul.mubr.bf16.gmra.mrb[0].mxu0 %v2367
        %v2483 = vpop.f32.mrb[0].mxu0
        %v2484 = vadd.f32 0.0, %v2483
        %v2485 = vpop.f32.mrb[0].mxu0
        %v2486 = vpop.f32.mrb[0].mxu0
        %v2487 = vadd.f32 0.0, %v2486
        %v2488 = vpop.f32.mrb[0].mxu0
        %2489 = vmatprep.mubr.bf16.mxu0 0
        %2490 = vmatmul.mubr.bf16.gmra.mrb[0].mxu0 %v2368
        %v2491 = vpop.f32.mrb[0].mxu0
        %v2492 = vadd.f32 0.0, %v2491
        %v2493 = vpop.f32.mrb[0].mxu0
        %v2494 = vpop.f32.mrb[0].mxu0
        %v2495 = vadd.f32 0.0, %v2494
        %v2496 = vpop.f32.mrb[0].mxu0
        %2497 = vdwg.mxu0
        %v2498 = vadd.f32 %v2349, %v2468
        %v2499 = vadd.f32 %v2350, %v2471
        %v2500 = vadd.f32 %v2351, %v2476
        %v2501 = vadd.f32 %v2352, %v2479
        %v2502 = vadd.f32 %v2353, %v2484
        %v2503 = vadd.f32 %v2354, %v2487
        %v2504 = vadd.f32 %v2355, %v2492
        %v2505 = vadd.f32 %v2356, %v2495
        %v2506 = vld [vmem:[%s1768 + $0x2] sm:$0xff]
        %v2507 = vld [vmem:[%s1768 + $0x12] sm:$0xff]
        %v2508 = vld [vmem:[%s1768 + $0x22] sm:$0xff]
        %v2509 = vld [vmem:[%s1768 + $0x32] sm:$0xff]
        %v2510 = vld [vmem:[%s1768 + $0x42] sm:$0xff]
        %v2511 = vld [vmem:[%s1768 + $0x52] sm:$0xff]
        %v2512 = vld [vmem:[%s1768 + $0x62] sm:$0xff]
        %v2513 = vld [vmem:[%s1768 + $0x72] sm:$0xff]
        %v2514 = vpack.c.bf16 %v2507, %v2506
        %v2515 = vpack.c.bf16 %v2509, %v2508
        %v2516 = vpack.c.bf16 %v2511, %v2510
        %v2517 = vpack.c.bf16 %v2513, %v2512
        %v2518 = vld [vmem:[#allocation9 + $0x140] sm:$0xf]
        %v2519 = vld [vmem:[#allocation9 + $0x144] sm:$0xf]
        %v2520 = vld [vmem:[#allocation9 + $0x148] sm:$0xf]
        %v2521 = vld [vmem:[#allocation9 + $0x14c] sm:$0xf]
        %v2522 = vld [vmem:[#allocation9 + $0x150] sm:$0xf]
        %v2523 = vld [vmem:[#allocation9 + $0x154] sm:$0xf]
        %v2524 = vld [vmem:[#allocation9 + $0x158] sm:$0xf]
        %v2525 = vld [vmem:[#allocation9 + $0x15c] sm:$0xf]
        %v2526 = vld [vmem:[#allocation9 + $0x160] sm:$0xf]
        %v2527 = vld [vmem:[#allocation9 + $0x164] sm:$0xf]
        %v2528 = vld [vmem:[#allocation9 + $0x168] sm:$0xf]
        %v2529 = vld [vmem:[#allocation9 + $0x16c] sm:$0xf]
        %v2530 = vld [vmem:[#allocation9 + $0x170] sm:$0xf]
        %v2531 = vld [vmem:[#allocation9 + $0x174] sm:$0xf]
        %v2532 = vld [vmem:[#allocation9 + $0x178] sm:$0xf]
        %v2533 = vld [vmem:[#allocation9 + $0x17c] sm:$0xf]
        %v2550 = vunpack.c.l.b16 %v2518
        %v2551 = vunpack.c.l.b16 %v2519
        %v2552 = vunpack.c.l.b16 %v2520
        %v2553 = vunpack.c.l.b16 %v2521
        %v2554 = vunpack.c.l.b16 %v2522
        %v2555 = vunpack.c.l.b16 %v2523
        %v2556 = vunpack.c.l.b16 %v2524
        %v2557 = vunpack.c.l.b16 %v2525
        %v2558 = vunpack.c.l.b16 %v2526
        %v2559 = vunpack.c.l.b16 %v2527
        %v2560 = vunpack.c.l.b16 %v2528
        %v2561 = vunpack.c.l.b16 %v2529
        %v2562 = vunpack.c.l.b16 %v2530
        %v2563 = vunpack.c.l.b16 %v2531
        %v2564 = vunpack.c.l.b16 %v2532
        %v2565 = vunpack.c.l.b16 %v2533
        %v2566 = vpack.c.b16 %v2551, %v2550
        %v2567 = vpack.c.b16 %v2553, %v2552
        %v2568 = vpack.c.b16 %v2555, %v2554
        %v2569 = vpack.c.b16 %v2557, %v2556
        %v2570 = vpack.c.b16 %v2559, %v2558
        %v2571 = vpack.c.b16 %v2561, %v2560
        %v2572 = vpack.c.b16 %v2563, %v2562
        %v2573 = vpack.c.b16 %v2565, %v2564
        %2582 = vmatprep.subr.bf16.mxu0 0
        %2583 = vmatpush1.bf16.msra.mxu0 %v2566
        %2584 = vmatprep.subr.bf16.mxu0 0
        %2585 = vmatpush1.bf16.msra.mxu0 %v2567
        %2586 = vmatprep.subr.bf16.mxu0 0
        %2587 = vmatpush1.bf16.msra.mxu0 %v2568
        %2588 = vmatprep.subr.bf16.mxu0 0
        %2589 = vmatpush1.bf16.msra.mxu0 %v2569
        %2590 = vmatprep.subr.bf16.mxu0 0
        %2591 = vmatpush1.bf16.msra.mxu0 %v2570
        %2592 = vmatprep.subr.bf16.mxu0 0
        %2593 = vmatpush1.bf16.msra.mxu0 %v2571
        %2594 = vmatprep.subr.bf16.mxu0 0
        %2595 = vmatpush1.bf16.msra.mxu0 %v2572
        %2596 = vmatprep.subr.bf16.mxu0 0
        %2597 = vmatpush1.bf16.msra.mxu0 %v2573
        %2598 = vmatprep.subr.bf16.mxu0 0
        %2599 = vmatpush1.bf16.msra.mxu0 0
        %2600 = vmatprep.subr.bf16.mxu0 0
        %2601 = vmatpush1.bf16.msra.mxu0 0
        %2602 = vmatprep.subr.bf16.mxu0 0
        %2603 = vmatpush1.bf16.msra.mxu0 0
        %2604 = vmatprep.subr.bf16.mxu0 0
        %2605 = vmatpush1.bf16.msra.mxu0 0
        %2606 = vmatprep.subr.bf16.mxu0 0
        %2607 = vmatpush1.bf16.msra.mxu0 0
        %2608 = vmatprep.subr.bf16.mxu0 0
        %2609 = vmatpush1.bf16.msra.mxu0 0
        %2610 = vmatprep.subr.bf16.mxu0 0
        %2611 = vmatpush1.bf16.msra.mxu0 0
        %2612 = vmatprep.subr.bf16.mxu0 0
        %2613 = vmatpush1.bf16.msra.mxu0 0
        %2614 = vmatprep.mubr.bf16.mxu0 0
        %2615 = vmatmul.mubr.bf16.gmra.mrb[0].mxu0 %v2514
        %v2616 = vpop.f32.mrb[0].mxu0
        %v2617 = vadd.f32 0.0, %v2616
        %v2618 = vpop.f32.mrb[0].mxu0
        %v2619 = vpop.f32.mrb[0].mxu0
        %v2620 = vadd.f32 0.0, %v2619
        %v2621 = vpop.f32.mrb[0].mxu0
        %2622 = vmatprep.mubr.bf16.mxu0 0
        %2623 = vmatmul.mubr.bf16.gmra.mrb[0].mxu0 %v2515
        %v2624 = vpop.f32.mrb[0].mxu0
        %v2625 = vadd.f32 0.0, %v2624
        %v2626 = vpop.f32.mrb[0].mxu0
        %v2627 = vpop.f32.mrb[0].mxu0
        %v2628 = vadd.f32 0.0, %v2627
        %v2629 = vpop.f32.mrb[0].mxu0
        %2630 = vmatprep.mubr.bf16.mxu0 0
        %2631 = vmatmul.mubr.bf16.gmra.mrb[0].mxu0 %v2516
        %v2632 = vpop.f32.mrb[0].mxu0
        %v2633 = vadd.f32 0.0, %v2632
        %v2634 = vpop.f32.mrb[0].mxu0
        %v2635 = vpop.f32.mrb[0].mxu0
        %v2636 = vadd.f32 0.0, %v2635
        %v2637 = vpop.f32.mrb[0].mxu0
        %2638 = vmatprep.mubr.bf16.mxu0 0
        %2639 = vmatmul.mubr.bf16.gmra.mrb[0].mxu0 %v2517
        %v2640 = vpop.f32.mrb[0].mxu0
        %v2641 = vadd.f32 0.0, %v2640
        %v2642 = vpop.f32.mrb[0].mxu0
        %v2643 = vpop.f32.mrb[0].mxu0
        %v2644 = vadd.f32 0.0, %v2643
        %v2645 = vpop.f32.mrb[0].mxu0
        %2646 = vdwg.mxu0
        %v2647 = vadd.f32 %v2498, %v2617
        %v2648 = vadd.f32 %v2499, %v2620
        %v2649 = vadd.f32 %v2500, %v2625
        %v2650 = vadd.f32 %v2501, %v2628
        %v2651 = vadd.f32 %v2502, %v2633
        %v2652 = vadd.f32 %v2503, %v2636
        %v2653 = vadd.f32 %v2504, %v2641
        %v2654 = vadd.f32 %v2505, %v2644
        %s2655 = scalar_lea.vmem [#allocation3], 32
        %v2656 = vld [vmem:[%s2655] sm:$0xff]
        %v2657 = vld [vmem:[%s2655 + $0x10] sm:$0xff]
        %v2658 = vld [vmem:[%s2655 + $0x20] sm:$0xff]
        %v2659 = vld [vmem:[%s2655 + $0x30] sm:$0xff]
        %v2660 = vld [vmem:[%s2655 + $0x40] sm:$0xff]
        %v2661 = vld [vmem:[%s2655 + $0x50] sm:$0xff]
        %v2662 = vld [vmem:[%s2655 + $0x60] sm:$0xff]
        %v2663 = vld [vmem:[%s2655 + $0x70] sm:$0xff]
        %v2664 = vpack.c.bf16 %v2657, %v2656
        %v2665 = vpack.c.bf16 %v2659, %v2658
        %v2666 = vpack.c.bf16 %v2661, %v2660
        %v2667 = vpack.c.bf16 %v2663, %v2662
        %v2668 = vld [vmem:[#allocation9 + $0x180] sm:$0xf]
        %v2669 = vld [vmem:[#allocation9 + $0x184] sm:$0xf]
        %v2670 = vld [vmem:[#allocation9 + $0x188] sm:$0xf]
        %v2671 = vld [vmem:[#allocation9 + $0x18c] sm:$0xf]
        %v2672 = vld [vmem:[#allocation9 + $0x190] sm:$0xf]
        %v2673 = vld [vmem:[#allocation9 + $0x194] sm:$0xf]
        %v2674 = vld [vmem:[#allocation9 + $0x198] sm:$0xf]
        %v2675 = vld [vmem:[#allocation9 + $0x19c] sm:$0xf]
        %v2676 = vld [vmem:[#allocation9 + $0x1a0] sm:$0xf]
        %v2677 = vld [vmem:[#allocation9 + $0x1a4] sm:$0xf]
        %v2678 = vld [vmem:[#allocation9 + $0x1a8] sm:$0xf]
        %v2679 = vld [vmem:[#allocation9 + $0x1ac] sm:$0xf]
        %v2680 = vld [vmem:[#allocation9 + $0x1b0] sm:$0xf]
        %v2681 = vld [vmem:[#allocation9 + $0x1b4] sm:$0xf]
        %v2682 = vld [vmem:[#allocation9 + $0x1b8] sm:$0xf]
        %v2683 = vld [vmem:[#allocation9 + $0x1bc] sm:$0xf]
        %v2700 = vunpack.c.l.b16 %v2668
        %v2701 = vunpack.c.l.b16 %v2669
        %v2702 = vunpack.c.l.b16 %v2670
        %v2703 = vunpack.c.l.b16 %v2671
        %v2704 = vunpack.c.l.b16 %v2672
        %v2705 = vunpack.c.l.b16 %v2673
        %v2706 = vunpack.c.l.b16 %v2674
        %v2707 = vunpack.c.l.b16 %v2675
        %v2708 = vunpack.c.l.b16 %v2676
        %v2709 = vunpack.c.l.b16 %v2677
        %v2710 = vunpack.c.l.b16 %v2678
        %v2711 = vunpack.c.l.b16 %v2679
        %v2712 = vunpack.c.l.b16 %v2680
        %v2713 = vunpack.c.l.b16 %v2681
        %v2714 = vunpack.c.l.b16 %v2682
        %v2715 = vunpack.c.l.b16 %v2683
        %v2716 = vpack.c.b16 %v2701, %v2700
        %v2717 = vpack.c.b16 %v2703, %v2702
        %v2718 = vpack.c.b16 %v2705, %v2704
        %v2719 = vpack.c.b16 %v2707, %v2706
        %v2720 = vpack.c.b16 %v2709, %v2708
        %v2721 = vpack.c.b16 %v2711, %v2710
        %v2722 = vpack.c.b16 %v2713, %v2712
        %v2723 = vpack.c.b16 %v2715, %v2714
        %2732 = vmatprep.subr.bf16.mxu0 0
        %2733 = vmatpush1.bf16.msra.mxu0 %v2716
        %2734 = vmatprep.subr.bf16.mxu0 0
        %2735 = vmatpush1.bf16.msra.mxu0 %v2717
        %2736 = vmatprep.subr.bf16.mxu0 0
        %2737 = vmatpush1.bf16.msra.mxu0 %v2718
        %2738 = vmatprep.subr.bf16.mxu0 0
        %2739 = vmatpush1.bf16.msra.mxu0 %v2719
        %2740 = vmatprep.subr.bf16.mxu0 0
        %2741 = vmatpush1.bf16.msra.mxu0 %v2720
        %2742 = vmatprep.subr.bf16.mxu0 0
        %2743 = vmatpush1.bf16.msra.mxu0 %v2721
        %2744 = vmatprep.subr.bf16.mxu0 0
        %2745 = vmatpush1.bf16.msra.mxu0 %v2722
        %2746 = vmatprep.subr.bf16.mxu0 0
        %2747 = vmatpush1.bf16.msra.mxu0 %v2723
        %2748 = vmatprep.subr.bf16.mxu0 0
        %2749 = vmatpush1.bf16.msra.mxu0 0
        %2750 = vmatprep.subr.bf16.mxu0 0
        %2751 = vmatpush1.bf16.msra.mxu0 0
        %2752 = vmatprep.subr.bf16.mxu0 0
        %2753 = vmatpush1.bf16.msra.mxu0 0
        %2754 = vmatprep.subr.bf16.mxu0 0
        %2755 = vmatpush1.bf16.msra.mxu0 0
        %2756 = vmatprep.subr.bf16.mxu0 0
        %2757 = vmatpush1.bf16.msra.mxu0 0
        %2758 = vmatprep.subr.bf16.mxu0 0
        %2759 = vmatpush1.bf16.msra.mxu0 0
        %2760 = vmatprep.subr.bf16.mxu0 0
        %2761 = vmatpush1.bf16.msra.mxu0 0
        %2762 = vmatprep.subr.bf16.mxu0 0
        %2763 = vmatpush1.bf16.msra.mxu0 0
        %2764 = vmatprep.mubr.bf16.mxu0 0
        %2765 = vmatmul.mubr.bf16.gmra.mrb[0].mxu0 %v2664
        %v2766 = vpop.f32.mrb[0].mxu0
        %v2767 = vadd.f32 0.0, %v2766
        %v2768 = vpop.f32.mrb[0].mxu0
        %v2769 = vpop.f32.mrb[0].mxu0
        %v2770 = vadd.f32 0.0, %v2769
        %v2771 = vpop.f32.mrb[0].mxu0
        %2772 = vmatprep.mubr.bf16.mxu0 0
        %2773 = vmatmul.mubr.bf16.gmra.mrb[0].mxu0 %v2665
        %v2774 = vpop.f32.mrb[0].mxu0
        %v2775 = vadd.f32 0.0, %v2774
        %v2776 = vpop.f32.mrb[0].mxu0
        %v2777 = vpop.f32.mrb[0].mxu0
        %v2778 = vadd.f32 0.0, %v2777
        %v2779 = vpop.f32.mrb[0].mxu0
        %2780 = vmatprep.mubr.bf16.mxu0 0
        %2781 = vmatmul.mubr.bf16.gmra.mrb[0].mxu0 %v2666
        %v2782 = vpop.f32.mrb[0].mxu0
        %v2783 = vadd.f32 0.0, %v2782
        %v2784 = vpop.f32.mrb[0].mxu0
        %v2785 = vpop.f32.mrb[0].mxu0
        %v2786 = vadd.f32 0.0, %v2785
        %v2787 = vpop.f32.mrb[0].mxu0
        %2788 = vmatprep.mubr.bf16.mxu0 0
        %2789 = vmatmul.mubr.bf16.gmra.mrb[0].mxu0 %v2667
        %v2790 = vpop.f32.mrb[0].mxu0
        %v2791 = vadd.f32 0.0, %v2790
        %v2792 = vpop.f32.mrb[0].mxu0
        %v2793 = vpop.f32.mrb[0].mxu0
        %v2794 = vadd.f32 0.0, %v2793
        %v2795 = vpop.f32.mrb[0].mxu0
        %2796 = vdwg.mxu0
        %v2797 = vadd.f32 %v2647, %v2767
        %v2798 = vadd.f32 %v2648, %v2770
        %v2799 = vadd.f32 %v2649, %v2775
        %v2800 = vadd.f32 %v2650, %v2778
        %v2801 = vadd.f32 %v2651, %v2783
        %v2802 = vadd.f32 %v2652, %v2786
        %v2803 = vadd.f32 %v2653, %v2791
        %v2804 = vadd.f32 %v2654, %v2794
        %v2805 = vld [vmem:[%s2655 + $0x1] sm:$0xff]
        %v2806 = vld [vmem:[%s2655 + $0x11] sm:$0xff]
        %v2807 = vld [vmem:[%s2655 + $0x21] sm:$0xff]
        %v2808 = vld [vmem:[%s2655 + $0x31] sm:$0xff]
        %v2809 = vld [vmem:[%s2655 + $0x41] sm:$0xff]
        %v2810 = vld [vmem:[%s2655 + $0x51] sm:$0xff]
        %v2811 = vld [vmem:[%s2655 + $0x61] sm:$0xff]
        %v2812 = vld [vmem:[%s2655 + $0x71] sm:$0xff]
        %v2813 = vpack.c.bf16 %v2806, %v2805
        %v2814 = vpack.c.bf16 %v2808, %v2807
        %v2815 = vpack.c.bf16 %v2810, %v2809
        %v2816 = vpack.c.bf16 %v2812, %v2811
        %v2817 = vld [vmem:[#allocation9 + $0x1c0] sm:$0xf]
        %v2818 = vld [vmem:[#allocation9 + $0x1c4] sm:$0xf]
        %v2819 = vld [vmem:[#allocation9 + $0x1c8] sm:$0xf]
        %v2820 = vld [vmem:[#allocation9 + $0x1cc] sm:$0xf]
        %v2821 = vld [vmem:[#allocation9 + $0x1d0] sm:$0xf]
        %v2822 = vld [vmem:[#allocation9 + $0x1d4] sm:$0xf]
        %v2823 = vld [vmem:[#allocation9 + $0x1d8] sm:$0xf]
        %v2824 = vld [vmem:[#allocation9 + $0x1dc] sm:$0xf]
        %v2825 = vld [vmem:[#allocation9 + $0x1e0] sm:$0xf]
        %v2826 = vld [vmem:[#allocation9 + $0x1e4] sm:$0xf]
        %v2827 = vld [vmem:[#allocation9 + $0x1e8] sm:$0xf]
        %v2828 = vld [vmem:[#allocation9 + $0x1ec] sm:$0xf]
        %v2829 = vld [vmem:[#allocation9 + $0x1f0] sm:$0xf]
        %v2830 = vld [vmem:[#allocation9 + $0x1f4] sm:$0xf]
        %v2831 = vld [vmem:[#allocation9 + $0x1f8] sm:$0xf]
        %v2832 = vld [vmem:[#allocation9 + $0x1fc] sm:$0xf]
        %v2849 = vunpack.c.l.b16 %v2817
        %v2850 = vunpack.c.l.b16 %v2818
        %v2851 = vunpack.c.l.b16 %v2819
        %v2852 = vunpack.c.l.b16 %v2820
        %v2853 = vunpack.c.l.b16 %v2821
        %v2854 = vunpack.c.l.b16 %v2822
        %v2855 = vunpack.c.l.b16 %v2823
        %v2856 = vunpack.c.l.b16 %v2824
        %v2857 = vunpack.c.l.b16 %v2825
        %v2858 = vunpack.c.l.b16 %v2826
        %v2859 = vunpack.c.l.b16 %v2827
        %v2860 = vunpack.c.l.b16 %v2828
        %v2861 = vunpack.c.l.b16 %v2829
        %v2862 = vunpack.c.l.b16 %v2830
        %v2863 = vunpack.c.l.b16 %v2831
        %v2864 = vunpack.c.l.b16 %v2832
        %v2865 = vpack.c.b16 %v2850, %v2849
        %v2866 = vpack.c.b16 %v2852, %v2851
        %v2867 = vpack.c.b16 %v2854, %v2853
        %v2868 = vpack.c.b16 %v2856, %v2855
        %v2869 = vpack.c.b16 %v2858, %v2857
        %v2870 = vpack.c.b16 %v2860, %v2859
        %v2871 = vpack.c.b16 %v2862, %v2861
        %v2872 = vpack.c.b16 %v2864, %v2863
        %2881 = vmatprep.subr.bf16.mxu0 0
        %2882 = vmatpush1.bf16.msra.mxu0 %v2865
        %2883 = vmatprep.subr.bf16.mxu0 0
        %2884 = vmatpush1.bf16.msra.mxu0 %v2866
        %2885 = vmatprep.subr.bf16.mxu0 0
        %2886 = vmatpush1.bf16.msra.mxu0 %v2867
        %2887 = vmatprep.subr.bf16.mxu0 0
        %2888 = vmatpush1.bf16.msra.mxu0 %v2868
        %2889 = vmatprep.subr.bf16.mxu0 0
        %2890 = vmatpush1.bf16.msra.mxu0 %v2869
        %2891 = vmatprep.subr.bf16.mxu0 0
        %2892 = vmatpush1.bf16.msra.mxu0 %v2870
        %2893 = vmatprep.subr.bf16.mxu0 0
        %2894 = vmatpush1.bf16.msra.mxu0 %v2871
        %2895 = vmatprep.subr.bf16.mxu0 0
        %2896 = vmatpush1.bf16.msra.mxu0 %v2872
        %2897 = vmatprep.subr.bf16.mxu0 0
        %2898 = vmatpush1.bf16.msra.mxu0 0
        %2899 = vmatprep.subr.bf16.mxu0 0
        %2900 = vmatpush1.bf16.msra.mxu0 0
        %2901 = vmatprep.subr.bf16.mxu0 0
        %2902 = vmatpush1.bf16.msra.mxu0 0
        %2903 = vmatprep.subr.bf16.mxu0 0
        %2904 = vmatpush1.bf16.msra.mxu0 0
        %2905 = vmatprep.subr.bf16.mxu0 0
        %2906 = vmatpush1.bf16.msra.mxu0 0
        %2907 = vmatprep.subr.bf16.mxu0 0
        %2908 = vmatpush1.bf16.msra.mxu0 0
        %2909 = vmatprep.subr.bf16.mxu0 0
        %2910 = vmatpush1.bf16.msra.mxu0 0
        %2911 = vmatprep.subr.bf16.mxu0 0
        %2912 = vmatpush1.bf16.msra.mxu0 0
        %2913 = vmatprep.mubr.bf16.mxu0 0
        %2914 = vmatmul.mubr.bf16.gmra.mrb[0].mxu0 %v2813
        %v2915 = vpop.f32.mrb[0].mxu0
        %v2916 = vadd.f32 0.0, %v2915
        %v2917 = vpop.f32.mrb[0].mxu0
        %v2918 = vpop.f32.mrb[0].mxu0
        %v2919 = vadd.f32 0.0, %v2918
        %v2920 = vpop.f32.mrb[0].mxu0
        %2921 = vmatprep.mubr.bf16.mxu0 0
        %2922 = vmatmul.mubr.bf16.gmra.mrb[0].mxu0 %v2814
        %v2923 = vpop.f32.mrb[0].mxu0
        %v2924 = vadd.f32 0.0, %v2923
        %v2925 = vpop.f32.mrb[0].mxu0
        %v2926 = vpop.f32.mrb[0].mxu0
        %v2927 = vadd.f32 0.0, %v2926
        %v2928 = vpop.f32.mrb[0].mxu0
        %2929 = vmatprep.mubr.bf16.mxu0 0
        %2930 = vmatmul.mubr.bf16.gmra.mrb[0].mxu0 %v2815
        %v2931 = vpop.f32.mrb[0].mxu0
        %v2932 = vadd.f32 0.0, %v2931
        %v2933 = vpop.f32.mrb[0].mxu0
        %v2934 = vpop.f32.mrb[0].mxu0
        %v2935 = vadd.f32 0.0, %v2934
        %v2936 = vpop.f32.mrb[0].mxu0
        %2937 = vmatprep.mubr.bf16.mxu0 0
        %2938 = vmatmul.mubr.bf16.gmra.mrb[0].mxu0 %v2816
        %v2939 = vpop.f32.mrb[0].mxu0
        %v2940 = vadd.f32 0.0, %v2939
        %v2941 = vpop.f32.mrb[0].mxu0
        %v2942 = vpop.f32.mrb[0].mxu0
        %v2943 = vadd.f32 0.0, %v2942
        %v2944 = vpop.f32.mrb[0].mxu0
        %2945 = vdwg.mxu0
        %v2946 = vadd.f32 %v2797, %v2916
        %v2947 = vadd.f32 %v2798, %v2919
        %v2948 = vadd.f32 %v2799, %v2924
        %v2949 = vadd.f32 %v2800, %v2927
        %v2950 = vadd.f32 %v2801, %v2932
        %v2951 = vadd.f32 %v2802, %v2935
        %v2952 = vadd.f32 %v2803, %v2940
        %v2953 = vadd.f32 %v2804, %v2943
        %v2954 = vld [vmem:[%s2655 + $0x2] sm:$0xff]
        %v2955 = vld [vmem:[%s2655 + $0x12] sm:$0xff]
        %v2956 = vld [vmem:[%s2655 + $0x22] sm:$0xff]
        %v2957 = vld [vmem:[%s2655 + $0x32] sm:$0xff]
        %v2958 = vld [vmem:[%s2655 + $0x42] sm:$0xff]
        %v2959 = vld [vmem:[%s2655 + $0x52] sm:$0xff]
        %v2960 = vld [vmem:[%s2655 + $0x62] sm:$0xff]
        %v2961 = vld [vmem:[%s2655 + $0x72] sm:$0xff]
        %v2962 = vpack.c.bf16 %v2955, %v2954
        %v2963 = vpack.c.bf16 %v2957, %v2956
        %v2964 = vpack.c.bf16 %v2959, %v2958
        %v2965 = vpack.c.bf16 %v2961, %v2960
        %v2966 = vld [vmem:[#allocation9 + $0x200] sm:$0xf]
        %v2967 = vld [vmem:[#allocation9 + $0x204] sm:$0xf]
        %v2968 = vld [vmem:[#allocation9 + $0x208] sm:$0xf]
        %v2969 = vld [vmem:[#allocation9 + $0x20c] sm:$0xf]
        %v2970 = vld [vmem:[#allocation9 + $0x210] sm:$0xf]
        %v2971 = vld [vmem:[#allocation9 + $0x214] sm:$0xf]
        %v2972 = vld [vmem:[#allocation9 + $0x218] sm:$0xf]
        %v2973 = vld [vmem:[#allocation9 + $0x21c] sm:$0xf]
        %v2974 = vld [vmem:[#allocation9 + $0x220] sm:$0xf]
        %v2975 = vld [vmem:[#allocation9 + $0x224] sm:$0xf]
        %v2976 = vld [vmem:[#allocation9 + $0x228] sm:$0xf]
        %v2977 = vld [vmem:[#allocation9 + $0x22c] sm:$0xf]
        %v2978 = vld [vmem:[#allocation9 + $0x230] sm:$0xf]
        %v2979 = vld [vmem:[#allocation9 + $0x234] sm:$0xf]
        %v2980 = vld [vmem:[#allocation9 + $0x238] sm:$0xf]
        %v2981 = vld [vmem:[#allocation9 + $0x23c] sm:$0xf]
        %v2998 = vunpack.c.l.b16 %v2966
        %v2999 = vunpack.c.l.b16 %v2967
        %v3000 = vunpack.c.l.b16 %v2968
        %v3001 = vunpack.c.l.b16 %v2969
        %v3002 = vunpack.c.l.b16 %v2970
        %v3003 = vunpack.c.l.b16 %v2971
        %v3004 = vunpack.c.l.b16 %v2972
        %v3005 = vunpack.c.l.b16 %v2973
        %v3006 = vunpack.c.l.b16 %v2974
        %v3007 = vunpack.c.l.b16 %v2975
        %v3008 = vunpack.c.l.b16 %v2976
        %v3009 = vunpack.c.l.b16 %v2977
        %v3010 = vunpack.c.l.b16 %v2978
        %v3011 = vunpack.c.l.b16 %v2979
        %v3012 = vunpack.c.l.b16 %v2980
        %v3013 = vunpack.c.l.b16 %v2981
        %v3014 = vpack.c.b16 %v2999, %v2998
        %v3015 = vpack.c.b16 %v3001, %v3000
        %v3016 = vpack.c.b16 %v3003, %v3002
        %v3017 = vpack.c.b16 %v3005, %v3004
        %v3018 = vpack.c.b16 %v3007, %v3006
        %v3019 = vpack.c.b16 %v3009, %v3008
        %v3020 = vpack.c.b16 %v3011, %v3010
        %v3021 = vpack.c.b16 %v3013, %v3012
        %3030 = vmatprep.subr.bf16.mxu0 0
        %3031 = vmatpush1.bf16.msra.mxu0 %v3014
        %3032 = vmatprep.subr.bf16.mxu0 0
        %3033 = vmatpush1.bf16.msra.mxu0 %v3015
        %3034 = vmatprep.subr.bf16.mxu0 0
        %3035 = vmatpush1.bf16.msra.mxu0 %v3016
        %3036 = vmatprep.subr.bf16.mxu0 0
        %3037 = vmatpush1.bf16.msra.mxu0 %v3017
        %3038 = vmatprep.subr.bf16.mxu0 0
        %3039 = vmatpush1.bf16.msra.mxu0 %v3018
        %3040 = vmatprep.subr.bf16.mxu0 0
        %3041 = vmatpush1.bf16.msra.mxu0 %v3019
        %3042 = vmatprep.subr.bf16.mxu0 0
        %3043 = vmatpush1.bf16.msra.mxu0 %v3020
        %3044 = vmatprep.subr.bf16.mxu0 0
        %3045 = vmatpush1.bf16.msra.mxu0 %v3021
        %3046 = vmatprep.subr.bf16.mxu0 0
        %3047 = vmatpush1.bf16.msra.mxu0 0
        %3048 = vmatprep.subr.bf16.mxu0 0
        %3049 = vmatpush1.bf16.msra.mxu0 0
        %3050 = vmatprep.subr.bf16.mxu0 0
        %3051 = vmatpush1.bf16.msra.mxu0 0
        %3052 = vmatprep.subr.bf16.mxu0 0
        %3053 = vmatpush1.bf16.msra.mxu0 0
        %3054 = vmatprep.subr.bf16.mxu0 0
        %3055 = vmatpush1.bf16.msra.mxu0 0
        %3056 = vmatprep.subr.bf16.mxu0 0
        %3057 = vmatpush1.bf16.msra.mxu0 0
        %3058 = vmatprep.subr.bf16.mxu0 0
        %3059 = vmatpush1.bf16.msra.mxu0 0
        %3060 = vmatprep.subr.bf16.mxu0 0
        %3061 = vmatpush1.bf16.msra.mxu0 0
        %3062 = vmatprep.mubr.bf16.mxu0 0
        %3063 = vmatmul.mubr.bf16.gmra.mrb[0].mxu0 %v2962
        %v3064 = vpop.f32.mrb[0].mxu0
        %v3065 = vadd.f32 0.0, %v3064
        %v3066 = vpop.f32.mrb[0].mxu0
        %v3067 = vpop.f32.mrb[0].mxu0
        %v3068 = vadd.f32 0.0, %v3067
        %v3069 = vpop.f32.mrb[0].mxu0
        %3070 = vmatprep.mubr.bf16.mxu0 0
        %3071 = vmatmul.mubr.bf16.gmra.mrb[0].mxu0 %v2963
        %v3072 = vpop.f32.mrb[0].mxu0
        %v3073 = vadd.f32 0.0, %v3072
        %v3074 = vpop.f32.mrb[0].mxu0
        %v3075 = vpop.f32.mrb[0].mxu0
        %v3076 = vadd.f32 0.0, %v3075
        %v3077 = vpop.f32.mrb[0].mxu0
        %3078 = vmatprep.mubr.bf16.mxu0 0
        %3079 = vmatmul.mubr.bf16.gmra.mrb[0].mxu0 %v2964
        %v3080 = vpop.f32.mrb[0].mxu0
        %v3081 = vadd.f32 0.0, %v3080
        %v3082 = vpop.f32.mrb[0].mxu0
        %v3083 = vpop.f32.mrb[0].mxu0
        %v3084 = vadd.f32 0.0, %v3083
        %v3085 = vpop.f32.mrb[0].mxu0
        %3086 = vmatprep.mubr.bf16.mxu0 0
        %3087 = vmatmul.mubr.bf16.gmra.mrb[0].mxu0 %v2965
        %v3088 = vpop.f32.mrb[0].mxu0
        %v3089 = vadd.f32 0.0, %v3088
        %v3090 = vpop.f32.mrb[0].mxu0
        %v3091 = vpop.f32.mrb[0].mxu0
        %v3092 = vadd.f32 0.0, %v3091
        %v3093 = vpop.f32.mrb[0].mxu0
        %3094 = vdwg.mxu0
        %v3095 = vadd.f32 %v2946, %v3065
        %v3096 = vadd.f32 %v2947, %v3068
        %v3097 = vadd.f32 %v2948, %v3073
        %v3098 = vadd.f32 %v2949, %v3076
        %v3099 = vadd.f32 %v2950, %v3081
        %v3100 = vadd.f32 %v2951, %v3084
        %v3101 = vadd.f32 %v2952, %v3089
        %v3102 = vadd.f32 %v2953, %v3092
        %v3103 = vld [vmem:[%s4] sm:$0x1]
        %v3105 = vlaneseq
        %v3106 = vshrl.u32 %v3105, 7
        %v3107 = vsub.s32 0, %v3106
        %v3108 = vrot.slane %v3103, %v3107
        %v3110 = vadd.f32 %v3095, %v3108
        %v3111 = vadd.f32 %v3096, %v3108
        %v3112 = vadd.f32 %v3097, %v3108
        %v3113 = vadd.f32 %v3098, %v3108
        %v3114 = vadd.f32 %v3099, %v3108
        %v3115 = vadd.f32 %v3100, %v3108
        %v3116 = vadd.f32 %v3101, %v3108
        %v3117 = vadd.f32 %v3102, %v3108
        %v3118 = vmax.f32 %v3110, 0.0
        %v3119 = vmax.f32 %v3111, 0.0
        %v3120 = vmax.f32 %v3112, 0.0
        %v3121 = vmax.f32 %v3113, 0.0
        %v3122 = vmax.f32 %v3114, 0.0
        %v3123 = vmax.f32 %v3115, 0.0
        %v3124 = vmax.f32 %v3116, 0.0
        %v3125 = vmax.f32 %v3117, 0.0
        %3126 = vst [vmem:[%s271] sm:$0xff] %v3118
        %3127 = vst [vmem:[%s271 + $0x8] sm:$0xff] %v3119
        %3128 = vst [vmem:[%s271 + $0x10] sm:$0xff] %v3120
        %3129 = vst [vmem:[%s271 + $0x18] sm:$0xff] %v3121
        %3130 = vst [vmem:[%s271 + $0x20] sm:$0xff] %v3122
        %3131 = vst [vmem:[%s271 + $0x28] sm:$0xff] %v3123
        %3132 = vst [vmem:[%s271 + $0x30] sm:$0xff] %v3124
        %3133 = vst [vmem:[%s271 + $0x38] sm:$0xff] %v3125
        %s3134 = sand.u32 %s141, 1
        %s3135 = scalar_lea.sflag [#allocation6], %s3134
        %s3136 = sand.u32 %s141, 1
        %s3137 = smul.addr %s3136, 64
        %s3138 = scalar_lea.vmem [#allocation10], %s3137
        // Predicated region
        $region53: #{tpu_custom_call.1} parent=39 // pred_check
          %p3139 = pneg %p151
        $region54: #{tpu_custom_call.1} parent=39 // pred_check_branch
          %3141 = sbr.rel (%p3139) target = $region56
        $region55: #{tpu_custom_call.1} parent=39 // pred_region
          %s3143 = ssub.s32 1024, 1024
          %3144 = vsyncadd %s3135, %s3143
          %s3145 = smul.addr %s23, 8
          %s3146 = smul.addr %s3145, 128
          %s3147 = scalar_lea.hbm %s5, %s3146
          %s3148 = sshll.u32 %s3138, 4
          %s3149 = int_to_ptr.vmem [resolvable:$true] %s3148
          %3154 = dma.vmem_to_hbm [thread:$0]  %s3149, 1024, %s3147, %s3135, 128, 128, 8
        $region56: #{tpu_custom_call.1} parent=39 // pred_fallthru
          _
      $region40: #{tpu_custom_call.1} parent=5 // pred_fallthru
        _
      %p3155 = scmp.le.s32.totalorder 2, %s18
      // Predicated region
      $region57: #{tpu_custom_call.1} parent=5 // pred_check
        %p3156 = pneg %p3155
      $region58: #{tpu_custom_call.1} parent=5 // pred_check_branch
        %3158 = sbr.rel (%p3156) target = $region60
      $region59: #{tpu_custom_call.1} parent=5 // pred_region
        %s3159 = ssub.s32 %s18, 2
        // Predicated region
        $region61: #{tpu_custom_call.1} parent=59 // pred_check
          %p3160 = pneg %p157
        $region62: #{tpu_custom_call.1} parent=59 // pred_check_branch
          %3162 = sbr.rel (%p3160) target = $region64
        $region63: #{tpu_custom_call.1} parent=59 // pred_region
          %s3163 = sand.u32 %s142, 1
          %s3164 = scalar_lea.sflag [#allocation6], %s3163
          %s3165 = sand.u32 %s142, 1
          %s3166 = smul.addr %s3165, 64
          %s3167 = scalar_lea.vmem [#allocation10], %s3166
          %3168 = dma.done %s3164, 1024
        $region64: #{tpu_custom_call.1} parent=59 // pred_fallthru
          _
      $region60: #{tpu_custom_call.1} parent=5 // pred_fallthru
        _
    $region6: #{tpu_custom_call.1} parent=1 // loop_footer
      %s22 = sadd.s32 1, %s18
    $region7: #{tpu_custom_call.1} parent=1 // loop_footer_branch
      %17 = sbr.rel target = $region3
    $region8: #{tpu_custom_call.1} parent=1 // loop_exit
      _
    %3169 = vsyncpa [#allocation5], 1
    %s3170 = scalar_lea.sflag [#allocation5], 1
    %3171 = vsyncpa %s3170, 1
    %3172 = vsyncpa [#allocation8], 1
    %3173 = vsyncpa [#allocation6], 1
    %s3174 = scalar_lea.sflag [#allocation6], 1
    %3175 = vsyncpa %s3174, 1

</llo_original>
